<compile_context>
chip_gen: v7x
topology: tpu7x:2x2x1
jax: 0.10.0
libtpu: 0.0.40
codegen_flags: <defaults>
</compile_context>

<pallas_src>
import functools

import jax
import jax.numpy as jnp
from jax import lax
from jax.experimental import pallas as pl
from jax.experimental.pallas import tpu as pltpu

H1 = 40    # preamp LSTM hidden size
H2 = 8     # poweramp GRU hidden size
CD = 3     # conditioning dim (e.g. bass / mid / treble knobs)
HC = 16    # tone-stack conditioning MLP hidden size
LANES = 128

G1 = 4 * H1            # 160  LSTM gate rows (i, f, g, o)
G2 = 3 * H2            # 24   GRU gate rows (r, z, n)
NG = G1 + G2           # 184  augmented matmul output rows
XROW = H1 + H2         # 48   row of x_t inside the augmented state
ONEROW = XROW + 1      # 49   row of the constant 1
KA = 56                # augmented state rows: h1(40)+h2(8)+x(1)+1(1)+pad(6)


def amp_kernel(x_ref, c_ref,
               w_aug_ref, gw_ih_ref, gb_ih_ref,
               llin_w_ref, llin_b_ref, glin_w_ref, glin_b_ref,
               tw1_ref, tb1_ref, tw2_ref, tb2_ref,
               out_ref,
               coef_sc, h1_sc, c1_sc, h2_sc, bq_sc):
    TT, B = x_ref.shape       # (time tile, lane batch tile)

    # ---- once per batch tile (first time block): tone-stack MLP + zero states ----
    @pl.when(pl.program_id(1) == 0)
    def _init():
        c = c_ref[...]                                                      # (CD, B)
        hts = jnp.tanh(jnp.dot(tw1_ref[...], c,
                               preferred_element_type=jnp.float32) + tb1_ref[...])
        coef = jnp.dot(tw2_ref[...], hts,
                       preferred_element_type=jnp.float32) + tb2_ref[...]   # (5, B)
        # clamp feedback coeffs into the stable biquad triangle: |a2|<1, |a1|<1+a2
        a2 = 0.9 * jnp.tanh(coef[4:5, :])
        a1 = 0.95 * (1.0 + a2) * jnp.tanh(coef[3:4, :])
        coef_sc[0:3, :] = coef[0:3, :]
        coef_sc[3:4, :] = a1
        coef_sc[4:5, :] = a2
        h1_sc[...] = jnp.zeros_like(h1_sc)
        c1_sc[...] = jnp.zeros_like(c1_sc)
        h2_sc[...] = jnp.zeros_like(h2_sc)
        bq_sc[...] = jnp.zeros_like(bq_sc)

    # ---- loop invariants: coefficients + lane-broadcast weight columns (hoisted) ----
    cf = coef_sc[...]
    tb0, tb1c, tb2c = cf[0:1, :], cf[1:2, :], cf[2:3, :]
    ta1, ta2 = cf[3:4, :], cf[4:5, :]

    w_aug = w_aug_ref[...]                                    # (NG, KA), f32
    gw_ih = jnp.broadcast_to(gw_ih_ref[...], (G2, B))         # GRU W_ih (r,z pre-0.5)
    gb_ih = jnp.broadcast_to(gb_ih_ref[...], (G2, B))
    llw = jnp.broadcast_to(llin_w_ref[...], (H1, B))
    llb = jnp.broadcast_to(llin_b_ref[...], (1, B))
    glw = jnp.broadcast_to(glin_w_ref[...], (H2, B))
    glb = jnp.broadcast_to(glin_b_ref[...], (1, B))
    one_row = jnp.ones((1, B), jnp.float32)
    zpad = jnp.zeros((KA - ONEROW - 1, B), jnp.float32)

    def step(carry, x_t):
        h1, c1, h2, u1, u2, y1, y2 = carry

        # --- one augmented recurrent matmul (MXU):
        #     rows 0:160  = 0.5-scaled(i,f,o)/unscaled(g) LSTM pre-activations
        #     rows 160:184 = 0.5-scaled(r,z)/unscaled(n) GRU recurrent half
        state = jnp.concatenate([h1, h2, x_t, one_row, zpad], axis=0)     # (KA, B)
        g = jnp.dot(w_aug, state, preferred_element_type=jnp.float32)     # (NG, B)

        # --- preamp LSTM (PyTorch gate order i,f,g,o); single EUP tanh slab ---
        tl = jnp.tanh(g[0:G1, :])
        i_g = 0.5 + 0.5 * tl[0 * H1:1 * H1, :]
        f_g = 0.5 + 0.5 * tl[1 * H1:2 * H1, :]
        g_g = tl[2 * H1:3 * H1, :]
        o_g = 0.5 + 0.5 * tl[3 * H1:4 * H1, :]
        c1n = f_g * c1 + i_g * g_g
        h1n = o_g * jnp.tanh(c1n)
        # (1,H1)x(H1,B) output linear as VPU mul + sublane reduce (keeps the MXU
        # off the serial nonlinearity path) + skip
        pre = jnp.sum(llw * h1n, axis=0, keepdims=True) + llb + x_t       # (1, B)

        # --- tone stack: conditioned biquad, direct form I ---
        ts = tb0 * pre + tb1c * u1 + tb2c * u2 - ta1 * y1 - ta2 * y2      # (1, B)

        # --- poweramp GRU (PyTorch gate order r,z,n) ---
        gi = gw_ih * ts + gb_ih                                           # (G2, B)
        gh = g[G1:NG, :]                                                  # (G2, B)
        rz = 0.5 + 0.5 * jnp.tanh(gi[0:2 * H2, :] + gh[0:2 * H2, :])      # merged r,z
        r_g = rz[0:H2, :]
        z_g = rz[H2:2 * H2, :]
        n_g = jnp.tanh(gi[2 * H2:3 * H2, :] + r_g * gh[2 * H2:3 * H2, :])
        h2n = n_g + z_g * (h2 - n_g)                                      # (1-z)*n + z*h
        out_t = jnp.sum(glw * h2n, axis=0, keepdims=True) + glb + ts      # (1, B)

        # new biquad states: u1<-pre, u2<-old u1, y1<-ts, y2<-old y1
        return (h1n, c1n, h2n, pre, u1, ts, y1), out_t

    def block8(blk, carry):
        base = pl.multiple_of(blk * 8, 8)
        rows = []
        for j in range(8):                 # Python-unrolled -> effective unroll=8
            x_t = x_ref[pl.ds(base + j, 1), :]
            carry, out_t = step(carry, x_t)
            rows.append(out_t)
        # one aligned full-vreg (8,128) store instead of 8 masked (1,128) stores
        out_ref[pl.ds(base, 8), :] = jnp.concatenate(rows, axis=0)
        return carry

    bqs = bq_sc[...]
    carry0 = (h1_sc[...], c1_sc[...], h2_sc[...],
              bqs[0:1, :], bqs[1:2, :], bqs[2:3, :], bqs[3:4, :])
    h1f, c1f, h2f, u1f, u2f, y1f, y2f = lax.fori_loop(0, TT // 8, block8, carry0)

    # persist recurrent state for the next time block (direct row writes)
    h1_sc[...] = h1f
    c1_sc[...] = c1f
    h2_sc[...] = h2f
    bq_sc[0:1, :] = u1f
    bq_sc[1:2, :] = u2f
    bq_sc[2:3, :] = y1f
    bq_sc[3:4, :] = y2f


def init_params(key):
    ks = jax.random.split(key, 16)

    def u(k, shape, scale):
        return jax.random.uniform(k, shape, jnp.float32, -scale, scale)

    s1 = 1.0 / float(jnp.sqrt(H1))
    s2 = 1.0 / float(jnp.sqrt(H2))
    sc = 1.0 / float(jnp.sqrt(CD))
    sh = 1.0 / float(jnp.sqrt(HC))
    return dict(
        lstm_w_ih=u(ks[0], (4 * H1, 1), s1),
        lstm_w_hh=u(ks[1], (4 * H1, H1), s1),
        lstm_b=u(ks[2], (4 * H1, 1), s1) + u(ks[3], (4 * H1, 1), s1),  # b_ih + b_hh
        lstm_lin_w=u(ks[4], (H1, 1), s1),     # column layout (VPU reduce in-kernel)
        lstm_lin_b=u(ks[5], (1, 1), s1),
        ts_w1=u(ks[6], (HC, CD), sc),
        ts_b1=u(ks[7], (HC, 1), sc),
        ts_w2=u(ks[8], (5, HC), sh),
        ts_b2=u(ks[9], (5, 1), sh),
        gru_w_ih=u(ks[10], (3 * H2, 1), s2),
        gru_w_hh=u(ks[11], (3 * H2, H2), s2),
        gru_b_ih=u(ks[12], (3 * H2, 1), s2),
        gru_b_hh=u(ks[13], (3 * H2, 1), s2),
        gru_lin_w=u(ks[14], (H2, 1), s2),     # column layout
        gru_lin_b=u(ks[15], (1, 1), s2),
    )


def _prepare_weights(params):
    """Build the augmented recurrent matrix and 0.5-pre-scaled gate weights."""
    f32 = jnp.float32
    lw_ih = params['lstm_w_ih'].astype(f32)      # (4H1, 1)
    lw_hh = params['lstm_w_hh'].astype(f32)      # (4H1, H1)
    lb = params['lstm_b'].astype(f32)            # (4H1, 1)  (b_ih + b_hh)
    gw_ih = params['gru_w_ih'].astype(f32)       # (3H2, 1)
    gw_hh = params['gru_w_hh'].astype(f32)       # (3H2, H2)
    gb_ih = params['gru_b_ih'].astype(f32)       # (3H2, 1)
    gb_hh = params['gru_b_hh'].astype(f32)       # (3H2, 1)

    # 0.5 pre-scale of sigmoid-gate rows (LSTM i,f,o; GRU r,z) so that
    # sigmoid(x) = 0.5 + 0.5*tanh(pre_scaled).  LSTM g-gate and GRU n-gate rows
    # are NOT scaled.
    ls = jnp.concatenate([jnp.full((H1, 1), 0.5, f32), jnp.full((H1, 1), 0.5, f32),
                          jnp.ones((H1, 1), f32), jnp.full((H1, 1), 0.5, f32)], axis=0)
    gs = jnp.concatenate([jnp.full((2 * H2, 1), 0.5, f32),
                          jnp.ones((H2, 1), f32)], axis=0)

    # augmented matrix: columns [0:H1]=h1, [H1:H1+H2]=h2, [XROW]=x_t, [ONEROW]=1
    w_aug = jnp.zeros((NG, KA), f32)
    w_aug = w_aug.at[0:G1, 0:H1].set(ls * lw_hh)
    w_aug = w_aug.at[0:G1, XROW].set((ls * lw_ih)[:, 0])
    w_aug = w_aug.at[0:G1, ONEROW].set((ls * lb)[:, 0])
    w_aug = w_aug.at[G1:NG, H1:H1 + H2].set(gs * gw_hh)
    w_aug = w_aug.at[G1:NG, ONEROW].set((gs * gb_hh)[:, 0])

    return (w_aug,
            gs * gw_ih, gs * gb_ih,
            params['lstm_lin_w'].astype(f32), params['lstm_lin_b'].astype(f32),
            params['gru_lin_w'].astype(f32), params['gru_lin_b'].astype(f32),
            params['ts_w1'].astype(f32), params['ts_b1'].astype(f32),
            params['ts_w2'].astype(f32), params['ts_b2'].astype(f32))


@functools.partial(jax.jit, static_argnames=("tt", "bt"))
def amp_forward(x, c, params, *, tt=2048, bt=LANES):
    """x: (T, B, 1) time-major audio, c: (B, CD) conditioning -> (T, B, 1).

    bt = batch-tile lanes (128 default; 256 fills the v6e/v7x MXU N dim when
    B > 128).  Independent batch tiles form a 'parallel' grid axis (v7x megacore).
    """
    T, B, _ = x.shape
    Bp = max(bt, -(-B // bt) * bt)                       # lane-padded batch
    TT = min(tt, -(-T // 8) * 8)
    TT = -(-TT // 8) * 8                                 # time tile, multiple of 8
    nb = -(-T // TT)
    T_pad = nb * TT
    n_bt = Bp // bt

    x2 = jnp.pad(x[..., 0].astype(jnp.float32), ((0, T_pad - T), (0, Bp - B)))
    c2 = jnp.pad(jnp.transpose(c).astype(jnp.float32), ((0, 0), (0, Bp - B)))

    weights = _prepare_weights(params)

    def resident(a):
        # whole array, constant block index -> fetched once, stays VMEM-resident
        return pl.BlockSpec(a.shape, lambda b, i: (0, 0))

    in_specs = ([pl.BlockSpec((TT, bt), lambda b, i: (i, b)),     # x: time x batch tiles
                 pl.BlockSpec((CD, bt), lambda b, i: (0, b))]     # c: per batch tile
                + [resident(w) for w in weights])

    flops = T_pad * Bp * (2 * NG * KA + 10 * (H1 + H2) + 64)
    transc = T_pad * Bp * (5 * H1 + 3 * H2 + 2)
    bytes_acc = (2 * T_pad * Bp + int(c2.size)
                 + sum(int(w.size) for w in weights)) * 4

    out = pl.pallas_call(
        amp_kernel,
        out_shape=jax.ShapeDtypeStruct((T_pad, Bp), jnp.float32),
        grid_spec=pltpu.PrefetchScalarGridSpec(
            num_scalar_prefetch=0,
            grid=(n_bt, nb),
            in_specs=in_specs,
            out_specs=pl.BlockSpec((TT, bt), lambda b, i: (i, b)),
            scratch_shapes=[
                pltpu.VMEM((5, bt), jnp.float32),    # biquad coefficients b0,b1,b2,a1,a2
                pltpu.VMEM((H1, bt), jnp.float32),   # LSTM h
                pltpu.VMEM((H1, bt), jnp.float32),   # LSTM c
                pltpu.VMEM((H2, bt), jnp.float32),   # GRU h
                pltpu.VMEM((4, bt), jnp.float32),    # biquad u1,u2,y1,y2
            ]),
        compiler_params=pltpu.CompilerParams(
            dimension_semantics=("parallel", "arbitrary"),   # batch ∥, time serial
            vmem_limit_bytes=64 * 1024 * 1024),
        cost_estimate=pl.CostEstimate(
            flops=int(flops), transcendentals=int(transc),
            bytes_accessed=int(bytes_acc)),
    )(x2, c2, *weights)

    return out[:T, :B, None]                             # (T, B, 1)


if __name__ == "__main__":
    key = jax.random.PRNGKey(0)
    k_p, k_x, k_c = jax.random.split(key, 3)

    T, B = 64, 8                                         # small time-major audio batch
    params = init_params(k_p)
    x = jax.random.normal(k_x, (T, B, 1), jnp.float32)   # time-major audio
    c = jax.random.uniform(k_c, (B, CD), jnp.float32)    # knob settings in [0,1)

    y = amp_forward(x, c, params, tt=32)                 # 2 time blocks -> state carry
    jax.block_until_ready(y)
    assert y.shape == (T, B, 1)
    assert bool(jnp.all(jnp.isfinite(y)))
    print("KERNEL_OK")
</pallas_src>

<mosaic_0001>
module attributes {stable_mosaic.version = 11 : i64} {
  func.func @amp_kernel(%arg0: i32, %arg1: i32, %arg2: memref<32x128xf32, #tpu.memory_space<vmem>>, %arg3: memref<3x128xf32, #tpu.memory_space<vmem>>, %arg4: memref<184x56xf32, #tpu.memory_space<vmem>>, %arg5: memref<24x1xf32, #tpu.memory_space<vmem>>, %arg6: memref<24x1xf32, #tpu.memory_space<vmem>>, %arg7: memref<40x1xf32, #tpu.memory_space<vmem>>, %arg8: memref<1x1xf32, #tpu.memory_space<vmem>>, %arg9: memref<8x1xf32, #tpu.memory_space<vmem>>, %arg10: memref<1x1xf32, #tpu.memory_space<vmem>>, %arg11: memref<16x3xf32, #tpu.memory_space<vmem>>, %arg12: memref<16x1xf32, #tpu.memory_space<vmem>>, %arg13: memref<5x16xf32, #tpu.memory_space<vmem>>, %arg14: memref<5x1xf32, #tpu.memory_space<vmem>>, %arg15: memref<32x128xf32, #tpu.memory_space<vmem>>, %arg16: memref<5x128xf32, #tpu.memory_space<vmem>>, %arg17: memref<40x128xf32, #tpu.memory_space<vmem>>, %arg18: memref<40x128xf32, #tpu.memory_space<vmem>>, %arg19: memref<8x128xf32, #tpu.memory_space<vmem>>, %arg20: memref<4x128xf32, #tpu.memory_space<vmem>>) attributes {dimension_semantics = [#tpu.dimension_semantics<parallel>, #tpu.dimension_semantics<arbitrary>], iteration_bounds = array<i64: 1, 2>, scalar_prefetch = 0 : i64, scratch_operands = 5 : i64, tpu.core_type = #tpu.core_type<tc>, window_params = [{transform_indices = @transform_0, window_bounds = array<i64: 32, 128>}, {transform_indices = @transform_1, window_bounds = array<i64: 3, 128>}, {pipeline_mode = #tpu.pipeline_mode<synchronous>, transform_indices = @transform_2, window_bounds = array<i64: 184, 56>}, {pipeline_mode = #tpu.pipeline_mode<synchronous>, transform_indices = @transform_3, window_bounds = array<i64: 24, 1>}, {pipeline_mode = #tpu.pipeline_mode<synchronous>, transform_indices = @transform_4, window_bounds = array<i64: 24, 1>}, {pipeline_mode = #tpu.pipeline_mode<synchronous>, transform_indices = @transform_5, window_bounds = array<i64: 40, 1>}, {pipeline_mode = #tpu.pipeline_mode<synchronous>, transform_indices = @transform_6, window_bounds = array<i64: 1, 1>}, {pipeline_mode = #tpu.pipeline_mode<synchronous>, transform_indices = @transform_7, window_bounds = array<i64: 8, 1>}, {pipeline_mode = #tpu.pipeline_mode<synchronous>, transform_indices = @transform_8, window_bounds = array<i64: 1, 1>}, {pipeline_mode = #tpu.pipeline_mode<synchronous>, transform_indices = @transform_9, window_bounds = array<i64: 16, 3>}, {pipeline_mode = #tpu.pipeline_mode<synchronous>, transform_indices = @transform_10, window_bounds = array<i64: 16, 1>}, {pipeline_mode = #tpu.pipeline_mode<synchronous>, transform_indices = @transform_11, window_bounds = array<i64: 5, 16>}, {pipeline_mode = #tpu.pipeline_mode<synchronous>, transform_indices = @transform_12, window_bounds = array<i64: 5, 1>}, {transform_indices = @transform_13, window_bounds = array<i64: 32, 128>}]} {
    %c0_i32 = arith.constant 0 : i32
    %0 = arith.cmpi eq, %arg1, %c0_i32 : i32
    %1 = arith.extui %0 : i1 to i32
    %c0_i32_0 = arith.constant 0 : i32
    %2 = arith.cmpi ne, %1, %c0_i32_0 : i32
    scf.if %2 {
      %c0_38 = arith.constant 0 : index
      %c0_39 = arith.constant 0 : index
      %47 = vector.load %arg3[%c0_38, %c0_39] : memref<3x128xf32, #tpu.memory_space<vmem>>, vector<3x128xf32>
      %c0_40 = arith.constant 0 : index
      %c0_41 = arith.constant 0 : index
      %48 = vector.load %arg11[%c0_40, %c0_41] : memref<16x3xf32, #tpu.memory_space<vmem>>, vector<16x3xf32>
      %cst_42 = arith.constant dense<0.000000e+00> : vector<16x128xf32>
      %49 = tpu.matmul %48, %47, %cst_42 {dimension_numbers = #tpu.dot_dimension_numbers<[1], [0], [0], [1], [0, 0, 1, 1], [], []>} : vector<16x3xf32>, vector<3x128xf32>, vector<16x128xf32> -> vector<16x128xf32>
      %c0_43 = arith.constant 0 : index
      %c0_44 = arith.constant 0 : index
      %50 = vector.load %arg12[%c0_43, %c0_44] : memref<16x1xf32, #tpu.memory_space<vmem>>, vector<16x1xf32>
      %51 = vector.broadcast %50 : vector<16x1xf32> to vector<16x128xf32>
      %52 = arith.addf %49, %51 : vector<16x128xf32>
      %53 = math.tanh %52 : vector<16x128xf32>
      %c0_45 = arith.constant 0 : index
      %c0_46 = arith.constant 0 : index
      %54 = vector.load %arg13[%c0_45, %c0_46] : memref<5x16xf32, #tpu.memory_space<vmem>>, vector<5x16xf32>
      %cst_47 = arith.constant dense<0.000000e+00> : vector<5x128xf32>
      %55 = tpu.matmul %54, %53, %cst_47 {dimension_numbers = #tpu.dot_dimension_numbers<[1], [0], [0], [1], [0, 0, 1, 1], [], []>} : vector<5x16xf32>, vector<16x128xf32>, vector<5x128xf32> -> vector<5x128xf32>
      %c0_48 = arith.constant 0 : index
      %c0_49 = arith.constant 0 : index
      %56 = vector.load %arg14[%c0_48, %c0_49] : memref<5x1xf32, #tpu.memory_space<vmem>>, vector<5x1xf32>
      %57 = vector.broadcast %56 : vector<5x1xf32> to vector<5x128xf32>
      %58 = arith.addf %55, %57 : vector<5x128xf32>
      %59 = vector.extract_strided_slice %58 {offsets = [4, 0], sizes = [1, 128], strides = [1, 1]} : vector<5x128xf32> to vector<1x128xf32>
      %60 = math.tanh %59 : vector<1x128xf32>
      %cst_50 = arith.constant 0.899999976 : f32
      %61 = vector.broadcast %cst_50 : f32 to vector<1x128xf32>
      %62 = arith.mulf %61, %60 : vector<1x128xf32>
      %cst_51 = arith.constant 1.000000e+00 : f32
      %63 = vector.broadcast %cst_51 : f32 to vector<1x128xf32>
      %64 = arith.addf %63, %62 : vector<1x128xf32>
      %cst_52 = arith.constant 0.949999988 : f32
      %65 = vector.broadcast %cst_52 : f32 to vector<1x128xf32>
      %66 = arith.mulf %65, %64 : vector<1x128xf32>
      %67 = vector.extract_strided_slice %58 {offsets = [3, 0], sizes = [1, 128], strides = [1, 1]} : vector<5x128xf32> to vector<1x128xf32>
      %68 = math.tanh %67 : vector<1x128xf32>
      %69 = arith.mulf %66, %68 : vector<1x128xf32>
      %70 = vector.extract_strided_slice %58 {offsets = [0, 0], sizes = [3, 128], strides = [1, 1]} : vector<5x128xf32> to vector<3x128xf32>
      %c0_53 = arith.constant 0 : index
      %c0_54 = arith.constant 0 : index
      %71 = vector.load %arg16[%c0_53, %c0_54] : memref<5x128xf32, #tpu.memory_space<vmem>>, vector<3x128xf32>
      tpu.vector_store %arg16[%c0_53, %c0_54], %70 {strides = array<i32>} : memref<5x128xf32, #tpu.memory_space<vmem>>, vector<3x128xf32>,
      %c3_55 = arith.constant 3 : index
      %c0_56 = arith.constant 0 : index
      %72 = vector.load %arg16[%c3_55, %c0_56] : memref<5x128xf32, #tpu.memory_space<vmem>>, vector<1x128xf32>
      tpu.vector_store %arg16[%c3_55, %c0_56], %69 {strides = array<i32>} : memref<5x128xf32, #tpu.memory_space<vmem>>, vector<1x128xf32>,
      %c4 = arith.constant 4 : index
      %c0_57 = arith.constant 0 : index
      %73 = vector.load %arg16[%c4, %c0_57] : memref<5x128xf32, #tpu.memory_space<vmem>>, vector<1x128xf32>
      tpu.vector_store %arg16[%c4, %c0_57], %62 {strides = array<i32>} : memref<5x128xf32, #tpu.memory_space<vmem>>, vector<1x128xf32>,
      %cst_58 = arith.constant 0.000000e+00 : f32
      %74 = vector.broadcast %cst_58 : f32 to vector<40x128xf32>
      %c0_59 = arith.constant 0 : index
      %c0_60 = arith.constant 0 : index
      %75 = vector.load %arg17[%c0_59, %c0_60] : memref<40x128xf32, #tpu.memory_space<vmem>>, vector<40x128xf32>
      tpu.vector_store %arg17[%c0_59, %c0_60], %74 {strides = array<i32>} : memref<40x128xf32, #tpu.memory_space<vmem>>, vector<40x128xf32>,
      %cst_61 = arith.constant 0.000000e+00 : f32
      %76 = vector.broadcast %cst_61 : f32 to vector<40x128xf32>
      %c0_62 = arith.constant 0 : index
      %c0_63 = arith.constant 0 : index
      %77 = vector.load %arg18[%c0_62, %c0_63] : memref<40x128xf32, #tpu.memory_space<vmem>>, vector<40x128xf32>
      tpu.vector_store %arg18[%c0_62, %c0_63], %76 {strides = array<i32>} : memref<40x128xf32, #tpu.memory_space<vmem>>, vector<40x128xf32>,
      %cst_64 = arith.constant 0.000000e+00 : f32
      %78 = vector.broadcast %cst_64 : f32 to vector<8x128xf32>
      %c0_65 = arith.constant 0 : index
      %c0_66 = arith.constant 0 : index
      %79 = vector.load %arg19[%c0_65, %c0_66] : memref<8x128xf32, #tpu.memory_space<vmem>>, vector<8x128xf32>
      tpu.vector_store %arg19[%c0_65, %c0_66], %78 {strides = array<i32>} : memref<8x128xf32, #tpu.memory_space<vmem>>, vector<8x128xf32>,
      %cst_67 = arith.constant 0.000000e+00 : f32
      %80 = vector.broadcast %cst_67 : f32 to vector<4x128xf32>
      %c0_68 = arith.constant 0 : index
      %c0_69 = arith.constant 0 : index
      %81 = vector.load %arg20[%c0_68, %c0_69] : memref<4x128xf32, #tpu.memory_space<vmem>>, vector<4x128xf32>
      tpu.vector_store %arg20[%c0_68, %c0_69], %80 {strides = array<i32>} : memref<4x128xf32, #tpu.memory_space<vmem>>, vector<4x128xf32>,
    } else {
    }
    %c0 = arith.constant 0 : index
    %c0_1 = arith.constant 0 : index
    %3 = vector.load %arg16[%c0, %c0_1] : memref<5x128xf32, #tpu.memory_space<vmem>>, vector<5x128xf32>
    %4 = vector.extract_strided_slice %3 {offsets = [0, 0], sizes = [1, 128], strides = [1, 1]} : vector<5x128xf32> to vector<1x128xf32>
    %5 = vector.extract_strided_slice %3 {offsets = [1, 0], sizes = [1, 128], strides = [1, 1]} : vector<5x128xf32> to vector<1x128xf32>
    %6 = vector.extract_strided_slice %3 {offsets = [2, 0], sizes = [1, 128], strides = [1, 1]} : vector<5x128xf32> to vector<1x128xf32>
    %7 = vector.extract_strided_slice %3 {offsets = [3, 0], sizes = [1, 128], strides = [1, 1]} : vector<5x128xf32> to vector<1x128xf32>
    %8 = vector.extract_strided_slice %3 {offsets = [4, 0], sizes = [1, 128], strides = [1, 1]} : vector<5x128xf32> to vector<1x128xf32>
    %c0_2 = arith.constant 0 : index
    %c0_3 = arith.constant 0 : index
    %9 = vector.load %arg4[%c0_2, %c0_3] : memref<184x56xf32, #tpu.memory_space<vmem>>, vector<184x56xf32>
    %c0_4 = arith.constant 0 : index
    %c0_5 = arith.constant 0 : index
    %10 = vector.load %arg5[%c0_4, %c0_5] : memref<24x1xf32, #tpu.memory_space<vmem>>, vector<24x1xf32>
    %11 = vector.shape_cast %10 : vector<24x1xf32> to vector<24x1xf32>
    %12 = vector.broadcast %11 : vector<24x1xf32> to vector<24x128xf32>
    %c0_6 = arith.constant 0 : index
    %c0_7 = arith.constant 0 : index
    %13 = vector.load %arg6[%c0_6, %c0_7] : memref<24x1xf32, #tpu.memory_space<vmem>>, vector<24x1xf32>
    %14 = vector.shape_cast %13 : vector<24x1xf32> to vector<24x1xf32>
    %15 = vector.broadcast %14 : vector<24x1xf32> to vector<24x128xf32>
    %c0_8 = arith.constant 0 : index
    %c0_9 = arith.constant 0 : index
    %16 = vector.load %arg7[%c0_8, %c0_9] : memref<40x1xf32, #tpu.memory_space<vmem>>, vector<40x1xf32>
    %17 = vector.shape_cast %16 : vector<40x1xf32> to vector<40x1xf32>
    %18 = vector.broadcast %17 : vector<40x1xf32> to vector<40x128xf32>
    %c0_10 = arith.constant 0 : index
    %c0_11 = arith.constant 0 : index
    %19 = vector.load %arg8[%c0_10, %c0_11] : memref<1x1xf32, #tpu.memory_space<vmem>>, vector<1x1xf32>
    %20 = vector.shape_cast %19 : vector<1x1xf32> to vector<1x1xf32>
    %21 = vector.broadcast %20 : vector<1x1xf32> to vector<1x128xf32>
    %c0_12 = arith.constant 0 : index
    %c0_13 = arith.constant 0 : index
    %22 = vector.load %arg9[%c0_12, %c0_13] : memref<8x1xf32, #tpu.memory_space<vmem>>, vector<8x1xf32>
    %23 = vector.shape_cast %22 : vector<8x1xf32> to vector<8x1xf32>
    %24 = vector.broadcast %23 : vector<8x1xf32> to vector<8x128xf32>
    %c0_14 = arith.constant 0 : index
    %c0_15 = arith.constant 0 : index
    %25 = vector.load %arg10[%c0_14, %c0_15] : memref<1x1xf32, #tpu.memory_space<vmem>>, vector<1x1xf32>
    %26 = vector.shape_cast %25 : vector<1x1xf32> to vector<1x1xf32>
    %27 = vector.broadcast %26 : vector<1x1xf32> to vector<1x128xf32>
    %cst = arith.constant 1.000000e+00 : f32
    %28 = vector.broadcast %cst : f32 to vector<1x128xf32>
    %cst_16 = arith.constant 0.000000e+00 : f32
    %29 = vector.broadcast %cst_16 : f32 to vector<6x128xf32>
    %c0_17 = arith.constant 0 : index
    %c0_18 = arith.constant 0 : index
    %30 = vector.load %arg20[%c0_17, %c0_18] : memref<4x128xf32, #tpu.memory_space<vmem>>, vector<4x128xf32>
    %c0_19 = arith.constant 0 : index
    %c0_20 = arith.constant 0 : index
    %31 = vector.load %arg17[%c0_19, %c0_20] : memref<40x128xf32, #tpu.memory_space<vmem>>, vector<40x128xf32>
    %c0_21 = arith.constant 0 : index
    %c0_22 = arith.constant 0 : index
    %32 = vector.load %arg18[%c0_21, %c0_22] : memref<40x128xf32, #tpu.memory_space<vmem>>, vector<40x128xf32>
    %c0_23 = arith.constant 0 : index
    %c0_24 = arith.constant 0 : index
    %33 = vector.load %arg19[%c0_23, %c0_24] : memref<8x128xf32, #tpu.memory_space<vmem>>, vector<8x128xf32>
    %34 = vector.extract_strided_slice %30 {offsets = [0, 0], sizes = [1, 128], strides = [1, 1]} : vector<4x128xf32> to vector<1x128xf32>
    %35 = vector.extract_strided_slice %30 {offsets = [1, 0], sizes = [1, 128], strides = [1, 1]} : vector<4x128xf32> to vector<1x128xf32>
    %36 = vector.extract_strided_slice %30 {offsets = [2, 0], sizes = [1, 128], strides = [1, 1]} : vector<4x128xf32> to vector<1x128xf32>
    %37 = vector.extract_strided_slice %30 {offsets = [3, 0], sizes = [1, 128], strides = [1, 1]} : vector<4x128xf32> to vector<1x128xf32>
    %c0_i32_25 = arith.constant 0 : i32
    %c4_i32 = arith.constant 4 : i32
    %38 = arith.addi %c0_i32_25, %c4_i32 : i32
    %c1_i32 = arith.constant 1 : i32
    %39:7 = scf.for %arg21 = %c0_i32_25 to %38 step %c1_i32 iter_args(%arg22 = %31, %arg23 = %32, %arg24 = %33, %arg25 = %34, %arg26 = %35, %arg27 = %36, %arg28 = %37) -> (vector<40x128xf32>, vector<40x128xf32>, vector<8x128xf32>, vector<1x128xf32>, vector<1x128xf32>, vector<1x128xf32>, vector<1x128xf32>)  : i32 {
      %c8_i32 = arith.constant 8 : i32
      %47 = arith.muli %arg21, %c8_i32 : i32
      %48 = tpu.assume_multiple %47, 8 : i32
      %c0_i32_38 = arith.constant 0 : i32
      %49 = arith.addi %48, %c0_i32_38 : i32
      %50 = arith.index_cast %49 : i32 to index
      %c0_39 = arith.constant 0 : index
      %51 = vector.load %arg2[%50, %c0_39] : memref<32x128xf32, #tpu.memory_space<vmem>>, vector<1x128xf32>
      %52 = tpu.concatenate %arg22, %arg24, %51, %28, %29 in 0 : vector<40x128xf32>, vector<8x128xf32>, vector<1x128xf32>, vector<1x128xf32>, vector<6x128xf32> -> vector<56x128xf32>
      %cst_40 = arith.constant dense<0.000000e+00> : vector<184x128xf32>
      %53 = tpu.matmul %9, %52, %cst_40 {dimension_numbers = #tpu.dot_dimension_numbers<[1], [0], [0], [1], [0, 0, 1, 1], [], []>} : vector<184x56xf32>, vector<56x128xf32>, vector<184x128xf32> -> vector<184x128xf32>
      %54 = vector.extract_strided_slice %53 {offsets = [0, 0], sizes = [160, 128], strides = [1, 1]} : vector<184x128xf32> to vector<160x128xf32>
      %55 = math.tanh %54 : vector<160x128xf32>
      %56 = vector.extract_strided_slice %55 {offsets = [0, 0], sizes = [40, 128], strides = [1, 1]} : vector<160x128xf32> to vector<40x128xf32>
      %cst_41 = arith.constant 5.000000e-01 : f32
      %57 = vector.broadcast %cst_41 : f32 to vector<40x128xf32>
      %58 = arith.mulf %57, %56 : vector<40x128xf32>
      %cst_42 = arith.constant 5.000000e-01 : f32
      %59 = vector.broadcast %cst_42 : f32 to vector<40x128xf32>
      %60 = arith.addf %59, %58 : vector<40x128xf32>
      %61 = vector.extract_strided_slice %55 {offsets = [40, 0], sizes = [40, 128], strides = [1, 1]} : vector<160x128xf32> to vector<40x128xf32>
      %cst_43 = arith.constant 5.000000e-01 : f32
      %62 = vector.broadcast %cst_43 : f32 to vector<40x128xf32>
      %63 = arith.mulf %62, %61 : vector<40x128xf32>
      %cst_44 = arith.constant 5.000000e-01 : f32
      %64 = vector.broadcast %cst_44 : f32 to vector<40x128xf32>
      %65 = arith.addf %64, %63 : vector<40x128xf32>
      %66 = vector.extract_strided_slice %55 {offsets = [80, 0], sizes = [40, 128], strides = [1, 1]} : vector<160x128xf32> to vector<40x128xf32>
      %67 = vector.extract_strided_slice %55 {offsets = [120, 0], sizes = [40, 128], strides = [1, 1]} : vector<160x128xf32> to vector<40x128xf32>
      %cst_45 = arith.constant 5.000000e-01 : f32
      %68 = vector.broadcast %cst_45 : f32 to vector<40x128xf32>
      %69 = arith.mulf %68, %67 : vector<40x128xf32>
      %cst_46 = arith.constant 5.000000e-01 : f32
      %70 = vector.broadcast %cst_46 : f32 to vector<40x128xf32>
      %71 = arith.addf %70, %69 : vector<40x128xf32>
      %72 = arith.mulf %65, %arg23 : vector<40x128xf32>
      %73 = arith.mulf %60, %66 : vector<40x128xf32>
      %74 = arith.addf %72, %73 : vector<40x128xf32>
      %75 = math.tanh %74 : vector<40x128xf32>
      %76 = arith.mulf %71, %75 : vector<40x128xf32>
      %77 = arith.mulf %18, %76 : vector<40x128xf32>
      %cst_47 = arith.constant dense<0.000000e+00> : vector<128xf32>
      %78 = vector.multi_reduction <add>, %77, %cst_47 [0] : vector<40x128xf32> to vector<128xf32>
      %79 = vector.shape_cast %78 : vector<128xf32> to vector<1x128xf32>
      %80 = arith.addf %79, %21 : vector<1x128xf32>
      %81 = arith.addf %80, %51 : vector<1x128xf32>
      %82 = arith.mulf %4, %81 : vector<1x128xf32>
      %83 = arith.mulf %5, %arg25 : vector<1x128xf32>
      %84 = arith.addf %82, %83 : vector<1x128xf32>
      %85 = arith.mulf %6, %arg26 : vector<1x128xf32>
      %86 = arith.addf %84, %85 : vector<1x128xf32>
      %87 = arith.mulf %7, %arg27 : vector<1x128xf32>
      %88 = arith.subf %86, %87 : vector<1x128xf32>
      %89 = arith.mulf %8, %arg28 : vector<1x128xf32>
      %90 = arith.subf %88, %89 : vector<1x128xf32>
      %91 = vector.broadcast %90 : vector<1x128xf32> to vector<24x128xf32>
      %92 = arith.mulf %12, %91 : vector<24x128xf32>
      %93 = arith.addf %92, %15 : vector<24x128xf32>
      %94 = vector.extract_strided_slice %53 {offsets = [160, 0], sizes = [24, 128], strides = [1, 1]} : vector<184x128xf32> to vector<24x128xf32>
      %95 = vector.extract_strided_slice %93 {offsets = [0, 0], sizes = [16, 128], strides = [1, 1]} : vector<24x128xf32> to vector<16x128xf32>
      %96 = vector.extract_strided_slice %94 {offsets = [0, 0], sizes = [16, 128], strides = [1, 1]} : vector<24x128xf32> to vector<16x128xf32>
      %97 = arith.addf %95, %96 : vector<16x128xf32>
      %98 = math.tanh %97 : vector<16x128xf32>
      %cst_48 = arith.constant 5.000000e-01 : f32
      %99 = vector.broadcast %cst_48 : f32 to vector<16x128xf32>
      %100 = arith.mulf %99, %98 : vector<16x128xf32>
      %cst_49 = arith.constant 5.000000e-01 : f32
      %101 = vector.broadcast %cst_49 : f32 to vector<16x128xf32>
      %102 = arith.addf %101, %100 : vector<16x128xf32>
      %103 = vector.extract_strided_slice %102 {offsets = [0, 0], sizes = [8, 128], strides = [1, 1]} : vector<16x128xf32> to vector<8x128xf32>
      %104 = vector.extract_strided_slice %102 {offsets = [8, 0], sizes = [8, 128], strides = [1, 1]} : vector<16x128xf32> to vector<8x128xf32>
      %105 = vector.extract_strided_slice %93 {offsets = [16, 0], sizes = [8, 128], strides = [1, 1]} : vector<24x128xf32> to vector<8x128xf32>
      %106 = vector.extract_strided_slice %94 {offsets = [16, 0], sizes = [8, 128], strides = [1, 1]} : vector<24x128xf32> to vector<8x128xf32>
      %107 = arith.mulf %103, %106 : vector<8x128xf32>
      %108 = arith.addf %105, %107 : vector<8x128xf32>
      %109 = math.tanh %108 : vector<8x128xf32>
      %110 = arith.subf %arg24, %109 : vector<8x128xf32>
      %111 = arith.mulf %104, %110 : vector<8x128xf32>
      %112 = arith.addf %109, %111 : vector<8x128xf32>
      %113 = arith.mulf %24, %112 : vector<8x128xf32>
      %cst_50 = arith.constant dense<0.000000e+00> : vector<128xf32>
      %114 = vector.multi_reduction <add>, %113, %cst_50 [0] : vector<8x128xf32> to vector<128xf32>
      %115 = vector.shape_cast %114 : vector<128xf32> to vector<1x128xf32>
      %116 = arith.addf %115, %27 : vector<1x128xf32>
      %117 = arith.addf %116, %90 : vector<1x128xf32>
      %c1_i32_51 = arith.constant 1 : i32
      %118 = arith.addi %48, %c1_i32_51 : i32
      %119 = arith.index_cast %118 : i32 to index
      %c0_52 = arith.constant 0 : index
      %120 = vector.load %arg2[%119, %c0_52] : memref<32x128xf32, #tpu.memory_space<vmem>>, vector<1x128xf32>
      %121 = tpu.concatenate %76, %112, %120, %28, %29 in 0 : vector<40x128xf32>, vector<8x128xf32>, vector<1x128xf32>, vector<1x128xf32>, vector<6x128xf32> -> vector<56x128xf32>
      %cst_53 = arith.constant dense<0.000000e+00> : vector<184x128xf32>
      %122 = tpu.matmul %9, %121, %cst_53 {dimension_numbers = #tpu.dot_dimension_numbers<[1], [0], [0], [1], [0, 0, 1, 1], [], []>} : vector<184x56xf32>, vector<56x128xf32>, vector<184x128xf32> -> vector<184x128xf32>
      %123 = vector.extract_strided_slice %122 {offsets = [0, 0], sizes = [160, 128], strides = [1, 1]} : vector<184x128xf32> to vector<160x128xf32>
      %124 = math.tanh %123 : vector<160x128xf32>
      %125 = vector.extract_strided_slice %124 {offsets = [0, 0], sizes = [40, 128], strides = [1, 1]} : vector<160x128xf32> to vector<40x128xf32>
      %cst_54 = arith.constant 5.000000e-01 : f32
      %126 = vector.broadcast %cst_54 : f32 to vector<40x128xf32>
      %127 = arith.mulf %126, %125 : vector<40x128xf32>
      %cst_55 = arith.constant 5.000000e-01 : f32
      %128 = vector.broadcast %cst_55 : f32 to vector<40x128xf32>
      %129 = arith.addf %128, %127 : vector<40x128xf32>
      %130 = vector.extract_strided_slice %124 {offsets = [40, 0], sizes = [40, 128], strides = [1, 1]} : vector<160x128xf32> to vector<40x128xf32>
      %cst_56 = arith.constant 5.000000e-01 : f32
      %131 = vector.broadcast %cst_56 : f32 to vector<40x128xf32>
      %132 = arith.mulf %131, %130 : vector<40x128xf32>
      %cst_57 = arith.constant 5.000000e-01 : f32
      %133 = vector.broadcast %cst_57 : f32 to vector<40x128xf32>
      %134 = arith.addf %133, %132 : vector<40x128xf32>
      %135 = vector.extract_strided_slice %124 {offsets = [80, 0], sizes = [40, 128], strides = [1, 1]} : vector<160x128xf32> to vector<40x128xf32>
      %136 = vector.extract_strided_slice %124 {offsets = [120, 0], sizes = [40, 128], strides = [1, 1]} : vector<160x128xf32> to vector<40x128xf32>
      %cst_58 = arith.constant 5.000000e-01 : f32
      %137 = vector.broadcast %cst_58 : f32 to vector<40x128xf32>
      %138 = arith.mulf %137, %136 : vector<40x128xf32>
      %cst_59 = arith.constant 5.000000e-01 : f32
      %139 = vector.broadcast %cst_59 : f32 to vector<40x128xf32>
      %140 = arith.addf %139, %138 : vector<40x128xf32>
      %141 = arith.mulf %134, %74 : vector<40x128xf32>
      %142 = arith.mulf %129, %135 : vector<40x128xf32>
      %143 = arith.addf %141, %142 : vector<40x128xf32>
      %144 = math.tanh %143 : vector<40x128xf32>
      %145 = arith.mulf %140, %144 : vector<40x128xf32>
      %146 = arith.mulf %18, %145 : vector<40x128xf32>
      %cst_60 = arith.constant dense<0.000000e+00> : vector<128xf32>
      %147 = vector.multi_reduction <add>, %146, %cst_60 [0] : vector<40x128xf32> to vector<128xf32>
      %148 = vector.shape_cast %147 : vector<128xf32> to vector<1x128xf32>
      %149 = arith.addf %148, %21 : vector<1x128xf32>
      %150 = arith.addf %149, %120 : vector<1x128xf32>
      %151 = arith.mulf %4, %150 : vector<1x128xf32>
      %152 = arith.mulf %5, %81 : vector<1x128xf32>
      %153 = arith.addf %151, %152 : vector<1x128xf32>
      %154 = arith.mulf %6, %arg25 : vector<1x128xf32>
      %155 = arith.addf %153, %154 : vector<1x128xf32>
      %156 = arith.mulf %7, %90 : vector<1x128xf32>
      %157 = arith.subf %155, %156 : vector<1x128xf32>
      %158 = arith.mulf %8, %arg27 : vector<1x128xf32>
      %159 = arith.subf %157, %158 : vector<1x128xf32>
      %160 = vector.broadcast %159 : vector<1x128xf32> to vector<24x128xf32>
      %161 = arith.mulf %12, %160 : vector<24x128xf32>
      %162 = arith.addf %161, %15 : vector<24x128xf32>
      %163 = vector.extract_strided_slice %122 {offsets = [160, 0], sizes = [24, 128], strides = [1, 1]} : vector<184x128xf32> to vector<24x128xf32>
      %164 = vector.extract_strided_slice %162 {offsets = [0, 0], sizes = [16, 128], strides = [1, 1]} : vector<24x128xf32> to vector<16x128xf32>
      %165 = vector.extract_strided_slice %163 {offsets = [0, 0], sizes = [16, 128], strides = [1, 1]} : vector<24x128xf32> to vector<16x128xf32>
      %166 = arith.addf %164, %165 : vector<16x128xf32>
      %167 = math.tanh %166 : vector<16x128xf32>
      %cst_61 = arith.constant 5.000000e-01 : f32
      %168 = vector.broadcast %cst_61 : f32 to vector<16x128xf32>
      %169 = arith.mulf %168, %167 : vector<16x128xf32>
      %cst_62 = arith.constant 5.000000e-01 : f32
      %170 = vector.broadcast %cst_62 : f32 to vector<16x128xf32>
      %171 = arith.addf %170, %169 : vector<16x128xf32>
      %172 = vector.extract_strided_slice %171 {offsets = [0, 0], sizes = [8, 128], strides = [1, 1]} : vector<16x128xf32> to vector<8x128xf32>
      %173 = vector.extract_strided_slice %171 {offsets = [8, 0], sizes = [8, 128], strides = [1, 1]} : vector<16x128xf32> to vector<8x128xf32>
      %174 = vector.extract_strided_slice %162 {offsets = [16, 0], sizes = [8, 128], strides = [1, 1]} : vector<24x128xf32> to vector<8x128xf32>
      %175 = vector.extract_strided_slice %163 {offsets = [16, 0], sizes = [8, 128], strides = [1, 1]} : vector<24x128xf32> to vector<8x128xf32>
      %176 = arith.mulf %172, %175 : vector<8x128xf32>
      %177 = arith.addf %174, %176 : vector<8x128xf32>
      %178 = math.tanh %177 : vector<8x128xf32>
      %179 = arith.subf %112, %178 : vector<8x128xf32>
      %180 = arith.mulf %173, %179 : vector<8x128xf32>
      %181 = arith.addf %178, %180 : vector<8x128xf32>
      %182 = arith.mulf %24, %181 : vector<8x128xf32>
      %cst_63 = arith.constant dense<0.000000e+00> : vector<128xf32>
      %183 = vector.multi_reduction <add>, %182, %cst_63 [0] : vector<8x128xf32> to vector<128xf32>
      %184 = vector.shape_cast %183 : vector<128xf32> to vector<1x128xf32>
      %185 = arith.addf %184, %27 : vector<1x128xf32>
      %186 = arith.addf %185, %159 : vector<1x128xf32>
      %c2_i32 = arith.constant 2 : i32
      %187 = arith.addi %48, %c2_i32 : i32
      %188 = arith.index_cast %187 : i32 to index
      %c0_64 = arith.constant 0 : index
      %189 = vector.load %arg2[%188, %c0_64] : memref<32x128xf32, #tpu.memory_space<vmem>>, vector<1x128xf32>
      %190 = tpu.concatenate %145, %181, %189, %28, %29 in 0 : vector<40x128xf32>, vector<8x128xf32>, vector<1x128xf32>, vector<1x128xf32>, vector<6x128xf32> -> vector<56x128xf32>
      %cst_65 = arith.constant dense<0.000000e+00> : vector<184x128xf32>
      %191 = tpu.matmul %9, %190, %cst_65 {dimension_numbers = #tpu.dot_dimension_numbers<[1], [0], [0], [1], [0, 0, 1, 1], [], []>} : vector<184x56xf32>, vector<56x128xf32>, vector<184x128xf32> -> vector<184x128xf32>
      %192 = vector.extract_strided_slice %191 {offsets = [0, 0], sizes = [160, 128], strides = [1, 1]} : vector<184x128xf32> to vector<160x128xf32>
      %193 = math.tanh %192 : vector<160x128xf32>
      %194 = vector.extract_strided_slice %193 {offsets = [0, 0], sizes = [40, 128], strides = [1, 1]} : vector<160x128xf32> to vector<40x128xf32>
      %cst_66 = arith.constant 5.000000e-01 : f32
      %195 = vector.broadcast %cst_66 : f32 to vector<40x128xf32>
      %196 = arith.mulf %195, %194 : vector<40x128xf32>
      %cst_67 = arith.constant 5.000000e-01 : f32
      %197 = vector.broadcast %cst_67 : f32 to vector<40x128xf32>
      %198 = arith.addf %197, %196 : vector<40x128xf32>
      %199 = vector.extract_strided_slice %193 {offsets = [40, 0], sizes = [40, 128], strides = [1, 1]} : vector<160x128xf32> to vector<40x128xf32>
      %cst_68 = arith.constant 5.000000e-01 : f32
      %200 = vector.broadcast %cst_68 : f32 to vector<40x128xf32>
      %201 = arith.mulf %200, %199 : vector<40x128xf32>
      %cst_69 = arith.constant 5.000000e-01 : f32
      %202 = vector.broadcast %cst_69 : f32 to vector<40x128xf32>
      %203 = arith.addf %202, %201 : vector<40x128xf32>
      %204 = vector.extract_strided_slice %193 {offsets = [80, 0], sizes = [40, 128], strides = [1, 1]} : vector<160x128xf32> to vector<40x128xf32>
      %205 = vector.extract_strided_slice %193 {offsets = [120, 0], sizes = [40, 128], strides = [1, 1]} : vector<160x128xf32> to vector<40x128xf32>
      %cst_70 = arith.constant 5.000000e-01 : f32
      %206 = vector.broadcast %cst_70 : f32 to vector<40x128xf32>
      %207 = arith.mulf %206, %205 : vector<40x128xf32>
      %cst_71 = arith.constant 5.000000e-01 : f32
      %208 = vector.broadcast %cst_71 : f32 to vector<40x128xf32>
      %209 = arith.addf %208, %207 : vector<40x128xf32>
      %210 = arith.mulf %203, %143 : vector<40x128xf32>
      %211 = arith.mulf %198, %204 : vector<40x128xf32>
      %212 = arith.addf %210, %211 : vector<40x128xf32>
      %213 = math.tanh %212 : vector<40x128xf32>
      %214 = arith.mulf %209, %213 : vector<40x128xf32>
      %215 = arith.mulf %18, %214 : vector<40x128xf32>
      %cst_72 = arith.constant dense<0.000000e+00> : vector<128xf32>
      %216 = vector.multi_reduction <add>, %215, %cst_72 [0] : vector<40x128xf32> to vector<128xf32>
      %217 = vector.shape_cast %216 : vector<128xf32> to vector<1x128xf32>
      %218 = arith.addf %217, %21 : vector<1x128xf32>
      %219 = arith.addf %218, %189 : vector<1x128xf32>
      %220 = arith.mulf %4, %219 : vector<1x128xf32>
      %221 = arith.mulf %5, %150 : vector<1x128xf32>
      %222 = arith.addf %220, %221 : vector<1x128xf32>
      %223 = arith.mulf %6, %81 : vector<1x128xf32>
      %224 = arith.addf %222, %223 : vector<1x128xf32>
      %225 = arith.mulf %7, %159 : vector<1x128xf32>
      %226 = arith.subf %224, %225 : vector<1x128xf32>
      %227 = arith.mulf %8, %90 : vector<1x128xf32>
      %228 = arith.subf %226, %227 : vector<1x128xf32>
      %229 = vector.broadcast %228 : vector<1x128xf32> to vector<24x128xf32>
      %230 = arith.mulf %12, %229 : vector<24x128xf32>
      %231 = arith.addf %230, %15 : vector<24x128xf32>
      %232 = vector.extract_strided_slice %191 {offsets = [160, 0], sizes = [24, 128], strides = [1, 1]} : vector<184x128xf32> to vector<24x128xf32>
      %233 = vector.extract_strided_slice %231 {offsets = [0, 0], sizes = [16, 128], strides = [1, 1]} : vector<24x128xf32> to vector<16x128xf32>
      %234 = vector.extract_strided_slice %232 {offsets = [0, 0], sizes = [16, 128], strides = [1, 1]} : vector<24x128xf32> to vector<16x128xf32>
      %235 = arith.addf %233, %234 : vector<16x128xf32>
      %236 = math.tanh %235 : vector<16x128xf32>
      %cst_73 = arith.constant 5.000000e-01 : f32
      %237 = vector.broadcast %cst_73 : f32 to vector<16x128xf32>
      %238 = arith.mulf %237, %236 : vector<16x128xf32>
      %cst_74 = arith.constant 5.000000e-01 : f32
      %239 = vector.broadcast %cst_74 : f32 to vector<16x128xf32>
      %240 = arith.addf %239, %238 : vector<16x128xf32>
      %241 = vector.extract_strided_slice %240 {offsets = [0, 0], sizes = [8, 128], strides = [1, 1]} : vector<16x128xf32> to vector<8x128xf32>
      %242 = vector.extract_strided_slice %240 {offsets = [8, 0], sizes = [8, 128], strides = [1, 1]} : vector<16x128xf32> to vector<8x128xf32>
      %243 = vector.extract_strided_slice %231 {offsets = [16, 0], sizes = [8, 128], strides = [1, 1]} : vector<24x128xf32> to vector<8x128xf32>
      %244 = vector.extract_strided_slice %232 {offsets = [16, 0], sizes = [8, 128], strides = [1, 1]} : vector<24x128xf32> to vector<8x128xf32>
      %245 = arith.mulf %241, %244 : vector<8x128xf32>
      %246 = arith.addf %243, %245 : vector<8x128xf32>
      %247 = math.tanh %246 : vector<8x128xf32>
      %248 = arith.subf %181, %247 : vector<8x128xf32>
      %249 = arith.mulf %242, %248 : vector<8x128xf32>
      %250 = arith.addf %247, %249 : vector<8x128xf32>
      %251 = arith.mulf %24, %250 : vector<8x128xf32>
      %cst_75 = arith.constant dense<0.000000e+00> : vector<128xf32>
      %252 = vector.multi_reduction <add>, %251, %cst_75 [0] : vector<8x128xf32> to vector<128xf32>
      %253 = vector.shape_cast %252 : vector<128xf32> to vector<1x128xf32>
      %254 = arith.addf %253, %27 : vector<1x128xf32>
      %255 = arith.addf %254, %228 : vector<1x128xf32>
      %c3_i32 = arith.constant 3 : i32
      %256 = arith.addi %48, %c3_i32 : i32
      %257 = arith.index_cast %256 : i32 to index
      %c0_76 = arith.constant 0 : index
      %258 = vector.load %arg2[%257, %c0_76] : memref<32x128xf32, #tpu.memory_space<vmem>>, vector<1x128xf32>
      %259 = tpu.concatenate %214, %250, %258, %28, %29 in 0 : vector<40x128xf32>, vector<8x128xf32>, vector<1x128xf32>, vector<1x128xf32>, vector<6x128xf32> -> vector<56x128xf32>
      %cst_77 = arith.constant dense<0.000000e+00> : vector<184x128xf32>
      %260 = tpu.matmul %9, %259, %cst_77 {dimension_numbers = #tpu.dot_dimension_numbers<[1], [0], [0], [1], [0, 0, 1, 1], [], []>} : vector<184x56xf32>, vector<56x128xf32>, vector<184x128xf32> -> vector<184x128xf32>
      %261 = vector.extract_strided_slice %260 {offsets = [0, 0], sizes = [160, 128], strides = [1, 1]} : vector<184x128xf32> to vector<160x128xf32>
      %262 = math.tanh %261 : vector<160x128xf32>
      %263 = vector.extract_strided_slice %262 {offsets = [0, 0], sizes = [40, 128], strides = [1, 1]} : vector<160x128xf32> to vector<40x128xf32>
      %cst_78 = arith.constant 5.000000e-01 : f32
      %264 = vector.broadcast %cst_78 : f32 to vector<40x128xf32>
      %265 = arith.mulf %264, %263 : vector<40x128xf32>
      %cst_79 = arith.constant 5.000000e-01 : f32
      %266 = vector.broadcast %cst_79 : f32 to vector<40x128xf32>
      %267 = arith.addf %266, %265 : vector<40x128xf32>
      %268 = vector.extract_strided_slice %262 {offsets = [40, 0], sizes = [40, 128], strides = [1, 1]} : vector<160x128xf32> to vector<40x128xf32>
      %cst_80 = arith.constant 5.000000e-01 : f32
      %269 = vector.broadcast %cst_80 : f32 to vector<40x128xf32>
      %270 = arith.mulf %269, %268 : vector<40x128xf32>
      %cst_81 = arith.constant 5.000000e-01 : f32
      %271 = vector.broadcast %cst_81 : f32 to vector<40x128xf32>
      %272 = arith.addf %271, %270 : vector<40x128xf32>
      %273 = vector.extract_strided_slice %262 {offsets = [80, 0], sizes = [40, 128], strides = [1, 1]} : vector<160x128xf32> to vector<40x128xf32>
      %274 = vector.extract_strided_slice %262 {offsets = [120, 0], sizes = [40, 128], strides = [1, 1]} : vector<160x128xf32> to vector<40x128xf32>
      %cst_82 = arith.constant 5.000000e-01 : f32
      %275 = vector.broadcast %cst_82 : f32 to vector<40x128xf32>
      %276 = arith.mulf %275, %274 : vector<40x128xf32>
      %cst_83 = arith.constant 5.000000e-01 : f32
      %277 = vector.broadcast %cst_83 : f32 to vector<40x128xf32>
      %278 = arith.addf %277, %276 : vector<40x128xf32>
      %279 = arith.mulf %272, %212 : vector<40x128xf32>
      %280 = arith.mulf %267, %273 : vector<40x128xf32>
      %281 = arith.addf %279, %280 : vector<40x128xf32>
      %282 = math.tanh %281 : vector<40x128xf32>
      %283 = arith.mulf %278, %282 : vector<40x128xf32>
      %284 = arith.mulf %18, %283 : vector<40x128xf32>
      %cst_84 = arith.constant dense<0.000000e+00> : vector<128xf32>
      %285 = vector.multi_reduction <add>, %284, %cst_84 [0] : vector<40x128xf32> to vector<128xf32>
      %286 = vector.shape_cast %285 : vector<128xf32> to vector<1x128xf32>
      %287 = arith.addf %286, %21 : vector<1x128xf32>
      %288 = arith.addf %287, %258 : vector<1x128xf32>
      %289 = arith.mulf %4, %288 : vector<1x128xf32>
      %290 = arith.mulf %5, %219 : vector<1x128xf32>
      %291 = arith.addf %289, %290 : vector<1x128xf32>
      %292 = arith.mulf %6, %150 : vector<1x128xf32>
      %293 = arith.addf %291, %292 : vector<1x128xf32>
      %294 = arith.mulf %7, %228 : vector<1x128xf32>
      %295 = arith.subf %293, %294 : vector<1x128xf32>
      %296 = arith.mulf %8, %159 : vector<1x128xf32>
      %297 = arith.subf %295, %296 : vector<1x128xf32>
      %298 = vector.broadcast %297 : vector<1x128xf32> to vector<24x128xf32>
      %299 = arith.mulf %12, %298 : vector<24x128xf32>
      %300 = arith.addf %299, %15 : vector<24x128xf32>
      %301 = vector.extract_strided_slice %260 {offsets = [160, 0], sizes = [24, 128], strides = [1, 1]} : vector<184x128xf32> to vector<24x128xf32>
      %302 = vector.extract_strided_slice %300 {offsets = [0, 0], sizes = [16, 128], strides = [1, 1]} : vector<24x128xf32> to vector<16x128xf32>
      %303 = vector.extract_strided_slice %301 {offsets = [0, 0], sizes = [16, 128], strides = [1, 1]} : vector<24x128xf32> to vector<16x128xf32>
      %304 = arith.addf %302, %303 : vector<16x128xf32>
      %305 = math.tanh %304 : vector<16x128xf32>
      %cst_85 = arith.constant 5.000000e-01 : f32
      %306 = vector.broadcast %cst_85 : f32 to vector<16x128xf32>
      %307 = arith.mulf %306, %305 : vector<16x128xf32>
      %cst_86 = arith.constant 5.000000e-01 : f32
      %308 = vector.broadcast %cst_86 : f32 to vector<16x128xf32>
      %309 = arith.addf %308, %307 : vector<16x128xf32>
      %310 = vector.extract_strided_slice %309 {offsets = [0, 0], sizes = [8, 128], strides = [1, 1]} : vector<16x128xf32> to vector<8x128xf32>
      %311 = vector.extract_strided_slice %309 {offsets = [8, 0], sizes = [8, 128], strides = [1, 1]} : vector<16x128xf32> to vector<8x128xf32>
      %312 = vector.extract_strided_slice %300 {offsets = [16, 0], sizes = [8, 128], strides = [1, 1]} : vector<24x128xf32> to vector<8x128xf32>
      %313 = vector.extract_strided_slice %301 {offsets = [16, 0], sizes = [8, 128], strides = [1, 1]} : vector<24x128xf32> to vector<8x128xf32>
      %314 = arith.mulf %310, %313 : vector<8x128xf32>
      %315 = arith.addf %312, %314 : vector<8x128xf32>
      %316 = math.tanh %315 : vector<8x128xf32>
      %317 = arith.subf %250, %316 : vector<8x128xf32>
      %318 = arith.mulf %311, %317 : vector<8x128xf32>
      %319 = arith.addf %316, %318 : vector<8x128xf32>
      %320 = arith.mulf %24, %319 : vector<8x128xf32>
      %cst_87 = arith.constant dense<0.000000e+00> : vector<128xf32>
      %321 = vector.multi_reduction <add>, %320, %cst_87 [0] : vector<8x128xf32> to vector<128xf32>
      %322 = vector.shape_cast %321 : vector<128xf32> to vector<1x128xf32>
      %323 = arith.addf %322, %27 : vector<1x128xf32>
      %324 = arith.addf %323, %297 : vector<1x128xf32>
      %c4_i32_88 = arith.constant 4 : i32
      %325 = arith.addi %48, %c4_i32_88 : i32
      %326 = arith.index_cast %325 : i32 to index
      %c0_89 = arith.constant 0 : index
      %327 = vector.load %arg2[%326, %c0_89] : memref<32x128xf32, #tpu.memory_space<vmem>>, vector<1x128xf32>
      %328 = tpu.concatenate %283, %319, %327, %28, %29 in 0 : vector<40x128xf32>, vector<8x128xf32>, vector<1x128xf32>, vector<1x128xf32>, vector<6x128xf32> -> vector<56x128xf32>
      %cst_90 = arith.constant dense<0.000000e+00> : vector<184x128xf32>
      %329 = tpu.matmul %9, %328, %cst_90 {dimension_numbers = #tpu.dot_dimension_numbers<[1], [0], [0], [1], [0, 0, 1, 1], [], []>} : vector<184x56xf32>, vector<56x128xf32>, vector<184x128xf32> -> vector<184x128xf32>
      %330 = vector.extract_strided_slice %329 {offsets = [0, 0], sizes = [160, 128], strides = [1, 1]} : vector<184x128xf32> to vector<160x128xf32>
      %331 = math.tanh %330 : vector<160x128xf32>
      %332 = vector.extract_strided_slice %331 {offsets = [0, 0], sizes = [40, 128], strides = [1, 1]} : vector<160x128xf32> to vector<40x128xf32>
      %cst_91 = arith.constant 5.000000e-01 : f32
      %333 = vector.broadcast %cst_91 : f32 to vector<40x128xf32>
      %334 = arith.mulf %333, %332 : vector<40x128xf32>
      %cst_92 = arith.constant 5.000000e-01 : f32
      %335 = vector.broadcast %cst_92 : f32 to vector<40x128xf32>
      %336 = arith.addf %335, %334 : vector<40x128xf32>
      %337 = vector.extract_strided_slice %331 {offsets = [40, 0], sizes = [40, 128], strides = [1, 1]} : vector<160x128xf32> to vector<40x128xf32>
      %cst_93 = arith.constant 5.000000e-01 : f32
      %338 = vector.broadcast %cst_93 : f32 to vector<40x128xf32>
      %339 = arith.mulf %338, %337 : vector<40x128xf32>
      %cst_94 = arith.constant 5.000000e-01 : f32
      %340 = vector.broadcast %cst_94 : f32 to vector<40x128xf32>
      %341 = arith.addf %340, %339 : vector<40x128xf32>
      %342 = vector.extract_strided_slice %331 {offsets = [80, 0], sizes = [40, 128], strides = [1, 1]} : vector<160x128xf32> to vector<40x128xf32>
      %343 = vector.extract_strided_slice %331 {offsets = [120, 0], sizes = [40, 128], strides = [1, 1]} : vector<160x128xf32> to vector<40x128xf32>
      %cst_95 = arith.constant 5.000000e-01 : f32
      %344 = vector.broadcast %cst_95 : f32 to vector<40x128xf32>
      %345 = arith.mulf %344, %343 : vector<40x128xf32>
      %cst_96 = arith.constant 5.000000e-01 : f32
      %346 = vector.broadcast %cst_96 : f32 to vector<40x128xf32>
      %347 = arith.addf %346, %345 : vector<40x128xf32>
      %348 = arith.mulf %341, %281 : vector<40x128xf32>
      %349 = arith.mulf %336, %342 : vector<40x128xf32>
      %350 = arith.addf %348, %349 : vector<40x128xf32>
      %351 = math.tanh %350 : vector<40x128xf32>
      %352 = arith.mulf %347, %351 : vector<40x128xf32>
      %353 = arith.mulf %18, %352 : vector<40x128xf32>
      %cst_97 = arith.constant dense<0.000000e+00> : vector<128xf32>
      %354 = vector.multi_reduction <add>, %353, %cst_97 [0] : vector<40x128xf32> to vector<128xf32>
      %355 = vector.shape_cast %354 : vector<128xf32> to vector<1x128xf32>
      %356 = arith.addf %355, %21 : vector<1x128xf32>
      %357 = arith.addf %356, %327 : vector<1x128xf32>
      %358 = arith.mulf %4, %357 : vector<1x128xf32>
      %359 = arith.mulf %5, %288 : vector<1x128xf32>
      %360 = arith.addf %358, %359 : vector<1x128xf32>
      %361 = arith.mulf %6, %219 : vector<1x128xf32>
      %362 = arith.addf %360, %361 : vector<1x128xf32>
      %363 = arith.mulf %7, %297 : vector<1x128xf32>
      %364 = arith.subf %362, %363 : vector<1x128xf32>
      %365 = arith.mulf %8, %228 : vector<1x128xf32>
      %366 = arith.subf %364, %365 : vector<1x128xf32>
      %367 = vector.broadcast %366 : vector<1x128xf32> to vector<24x128xf32>
      %368 = arith.mulf %12, %367 : vector<24x128xf32>
      %369 = arith.addf %368, %15 : vector<24x128xf32>
      %370 = vector.extract_strided_slice %329 {offsets = [160, 0], sizes = [24, 128], strides = [1, 1]} : vector<184x128xf32> to vector<24x128xf32>
      %371 = vector.extract_strided_slice %369 {offsets = [0, 0], sizes = [16, 128], strides = [1, 1]} : vector<24x128xf32> to vector<16x128xf32>
      %372 = vector.extract_strided_slice %370 {offsets = [0, 0], sizes = [16, 128], strides = [1, 1]} : vector<24x128xf32> to vector<16x128xf32>
      %373 = arith.addf %371, %372 : vector<16x128xf32>
      %374 = math.tanh %373 : vector<16x128xf32>
      %cst_98 = arith.constant 5.000000e-01 : f32
      %375 = vector.broadcast %cst_98 : f32 to vector<16x128xf32>
      %376 = arith.mulf %375, %374 : vector<16x128xf32>
      %cst_99 = arith.constant 5.000000e-01 : f32
      %377 = vector.broadcast %cst_99 : f32 to vector<16x128xf32>
      %378 = arith.addf %377, %376 : vector<16x128xf32>
      %379 = vector.extract_strided_slice %378 {offsets = [0, 0], sizes = [8, 128], strides = [1, 1]} : vector<16x128xf32> to vector<8x128xf32>
      %380 = vector.extract_strided_slice %378 {offsets = [8, 0], sizes = [8, 128], strides = [1, 1]} : vector<16x128xf32> to vector<8x128xf32>
      %381 = vector.extract_strided_slice %369 {offsets = [16, 0], sizes = [8, 128], strides = [1, 1]} : vector<24x128xf32> to vector<8x128xf32>
      %382 = vector.extract_strided_slice %370 {offsets = [16, 0], sizes = [8, 128], strides = [1, 1]} : vector<24x128xf32> to vector<8x128xf32>
      %383 = arith.mulf %379, %382 : vector<8x128xf32>
      %384 = arith.addf %381, %383 : vector<8x128xf32>
      %385 = math.tanh %384 : vector<8x128xf32>
      %386 = arith.subf %319, %385 : vector<8x128xf32>
      %387 = arith.mulf %380, %386 : vector<8x128xf32>
      %388 = arith.addf %385, %387 : vector<8x128xf32>
      %389 = arith.mulf %24, %388 : vector<8x128xf32>
      %cst_100 = arith.constant dense<0.000000e+00> : vector<128xf32>
      %390 = vector.multi_reduction <add>, %389, %cst_100 [0] : vector<8x128xf32> to vector<128xf32>
      %391 = vector.shape_cast %390 : vector<128xf32> to vector<1x128xf32>
      %392 = arith.addf %391, %27 : vector<1x128xf32>
      %393 = arith.addf %392, %366 : vector<1x128xf32>
      %c5_i32 = arith.constant 5 : i32
      %394 = arith.addi %48, %c5_i32 : i32
      %395 = arith.index_cast %394 : i32 to index
      %c0_101 = arith.constant 0 : index
      %396 = vector.load %arg2[%395, %c0_101] : memref<32x128xf32, #tpu.memory_space<vmem>>, vector<1x128xf32>
      %397 = tpu.concatenate %352, %388, %396, %28, %29 in 0 : vector<40x128xf32>, vector<8x128xf32>, vector<1x128xf32>, vector<1x128xf32>, vector<6x128xf32> -> vector<56x128xf32>
      %cst_102 = arith.constant dense<0.000000e+00> : vector<184x128xf32>
      %398 = tpu.matmul %9, %397, %cst_102 {dimension_numbers = #tpu.dot_dimension_numbers<[1], [0], [0], [1], [0, 0, 1, 1], [], []>} : vector<184x56xf32>, vector<56x128xf32>, vector<184x128xf32> -> vector<184x128xf32>
      %399 = vector.extract_strided_slice %398 {offsets = [0, 0], sizes = [160, 128], strides = [1, 1]} : vector<184x128xf32> to vector<160x128xf32>
      %400 = math.tanh %399 : vector<160x128xf32>
      %401 = vector.extract_strided_slice %400 {offsets = [0, 0], sizes = [40, 128], strides = [1, 1]} : vector<160x128xf32> to vector<40x128xf32>
      %cst_103 = arith.constant 5.000000e-01 : f32
      %402 = vector.broadcast %cst_103 : f32 to vector<40x128xf32>
      %403 = arith.mulf %402, %401 : vector<40x128xf32>
      %cst_104 = arith.constant 5.000000e-01 : f32
      %404 = vector.broadcast %cst_104 : f32 to vector<40x128xf32>
      %405 = arith.addf %404, %403 : vector<40x128xf32>
      %406 = vector.extract_strided_slice %400 {offsets = [40, 0], sizes = [40, 128], strides = [1, 1]} : vector<160x128xf32> to vector<40x128xf32>
      %cst_105 = arith.constant 5.000000e-01 : f32
      %407 = vector.broadcast %cst_105 : f32 to vector<40x128xf32>
      %408 = arith.mulf %407, %406 : vector<40x128xf32>
      %cst_106 = arith.constant 5.000000e-01 : f32
      %409 = vector.broadcast %cst_106 : f32 to vector<40x128xf32>
      %410 = arith.addf %409, %408 : vector<40x128xf32>
      %411 = vector.extract_strided_slice %400 {offsets = [80, 0], sizes = [40, 128], strides = [1, 1]} : vector<160x128xf32> to vector<40x128xf32>
      %412 = vector.extract_strided_slice %400 {offsets = [120, 0], sizes = [40, 128], strides = [1, 1]} : vector<160x128xf32> to vector<40x128xf32>
      %cst_107 = arith.constant 5.000000e-01 : f32
      %413 = vector.broadcast %cst_107 : f32 to vector<40x128xf32>
      %414 = arith.mulf %413, %412 : vector<40x128xf32>
      %cst_108 = arith.constant 5.000000e-01 : f32
      %415 = vector.broadcast %cst_108 : f32 to vector<40x128xf32>
      %416 = arith.addf %415, %414 : vector<40x128xf32>
      %417 = arith.mulf %410, %350 : vector<40x128xf32>
      %418 = arith.mulf %405, %411 : vector<40x128xf32>
      %419 = arith.addf %417, %418 : vector<40x128xf32>
      %420 = math.tanh %419 : vector<40x128xf32>
      %421 = arith.mulf %416, %420 : vector<40x128xf32>
      %422 = arith.mulf %18, %421 : vector<40x128xf32>
      %cst_109 = arith.constant dense<0.000000e+00> : vector<128xf32>
      %423 = vector.multi_reduction <add>, %422, %cst_109 [0] : vector<40x128xf32> to vector<128xf32>
      %424 = vector.shape_cast %423 : vector<128xf32> to vector<1x128xf32>
      %425 = arith.addf %424, %21 : vector<1x128xf32>
      %426 = arith.addf %425, %396 : vector<1x128xf32>
      %427 = arith.mulf %4, %426 : vector<1x128xf32>
      %428 = arith.mulf %5, %357 : vector<1x128xf32>
      %429 = arith.addf %427, %428 : vector<1x128xf32>
      %430 = arith.mulf %6, %288 : vector<1x128xf32>
      %431 = arith.addf %429, %430 : vector<1x128xf32>
      %432 = arith.mulf %7, %366 : vector<1x128xf32>
      %433 = arith.subf %431, %432 : vector<1x128xf32>
      %434 = arith.mulf %8, %297 : vector<1x128xf32>
      %435 = arith.subf %433, %434 : vector<1x128xf32>
      %436 = vector.broadcast %435 : vector<1x128xf32> to vector<24x128xf32>
      %437 = arith.mulf %12, %436 : vector<24x128xf32>
      %438 = arith.addf %437, %15 : vector<24x128xf32>
      %439 = vector.extract_strided_slice %398 {offsets = [160, 0], sizes = [24, 128], strides = [1, 1]} : vector<184x128xf32> to vector<24x128xf32>
      %440 = vector.extract_strided_slice %438 {offsets = [0, 0], sizes = [16, 128], strides = [1, 1]} : vector<24x128xf32> to vector<16x128xf32>
      %441 = vector.extract_strided_slice %439 {offsets = [0, 0], sizes = [16, 128], strides = [1, 1]} : vector<24x128xf32> to vector<16x128xf32>
      %442 = arith.addf %440, %441 : vector<16x128xf32>
      %443 = math.tanh %442 : vector<16x128xf32>
      %cst_110 = arith.constant 5.000000e-01 : f32
      %444 = vector.broadcast %cst_110 : f32 to vector<16x128xf32>
      %445 = arith.mulf %444, %443 : vector<16x128xf32>
      %cst_111 = arith.constant 5.000000e-01 : f32
      %446 = vector.broadcast %cst_111 : f32 to vector<16x128xf32>
      %447 = arith.addf %446, %445 : vector<16x128xf32>
      %448 = vector.extract_strided_slice %447 {offsets = [0, 0], sizes = [8, 128], strides = [1, 1]} : vector<16x128xf32> to vector<8x128xf32>
      %449 = vector.extract_strided_slice %447 {offsets = [8, 0], sizes = [8, 128], strides = [1, 1]} : vector<16x128xf32> to vector<8x128xf32>
      %450 = vector.extract_strided_slice %438 {offsets = [16, 0], sizes = [8, 128], strides = [1, 1]} : vector<24x128xf32> to vector<8x128xf32>
      %451 = vector.extract_strided_slice %439 {offsets = [16, 0], sizes = [8, 128], strides = [1, 1]} : vector<24x128xf32> to vector<8x128xf32>
      %452 = arith.mulf %448, %451 : vector<8x128xf32>
      %453 = arith.addf %450, %452 : vector<8x128xf32>
      %454 = math.tanh %453 : vector<8x128xf32>
      %455 = arith.subf %388, %454 : vector<8x128xf32>
      %456 = arith.mulf %449, %455 : vector<8x128xf32>
      %457 = arith.addf %454, %456 : vector<8x128xf32>
      %458 = arith.mulf %24, %457 : vector<8x128xf32>
      %cst_112 = arith.constant dense<0.000000e+00> : vector<128xf32>
      %459 = vector.multi_reduction <add>, %458, %cst_112 [0] : vector<8x128xf32> to vector<128xf32>
      %460 = vector.shape_cast %459 : vector<128xf32> to vector<1x128xf32>
      %461 = arith.addf %460, %27 : vector<1x128xf32>
      %462 = arith.addf %461, %435 : vector<1x128xf32>
      %c6_i32 = arith.constant 6 : i32
      %463 = arith.addi %48, %c6_i32 : i32
      %464 = arith.index_cast %463 : i32 to index
      %c0_113 = arith.constant 0 : index
      %465 = vector.load %arg2[%464, %c0_113] : memref<32x128xf32, #tpu.memory_space<vmem>>, vector<1x128xf32>
      %466 = tpu.concatenate %421, %457, %465, %28, %29 in 0 : vector<40x128xf32>, vector<8x128xf32>, vector<1x128xf32>, vector<1x128xf32>, vector<6x128xf32> -> vector<56x128xf32>
      %cst_114 = arith.constant dense<0.000000e+00> : vector<184x128xf32>
      %467 = tpu.matmul %9, %466, %cst_114 {dimension_numbers = #tpu.dot_dimension_numbers<[1], [0], [0], [1], [0, 0, 1, 1], [], []>} : vector<184x56xf32>, vector<56x128xf32>, vector<184x128xf32> -> vector<184x128xf32>
      %468 = vector.extract_strided_slice %467 {offsets = [0, 0], sizes = [160, 128], strides = [1, 1]} : vector<184x128xf32> to vector<160x128xf32>
      %469 = math.tanh %468 : vector<160x128xf32>
      %470 = vector.extract_strided_slice %469 {offsets = [0, 0], sizes = [40, 128], strides = [1, 1]} : vector<160x128xf32> to vector<40x128xf32>
      %cst_115 = arith.constant 5.000000e-01 : f32
      %471 = vector.broadcast %cst_115 : f32 to vector<40x128xf32>
      %472 = arith.mulf %471, %470 : vector<40x128xf32>
      %cst_116 = arith.constant 5.000000e-01 : f32
      %473 = vector.broadcast %cst_116 : f32 to vector<40x128xf32>
      %474 = arith.addf %473, %472 : vector<40x128xf32>
      %475 = vector.extract_strided_slice %469 {offsets = [40, 0], sizes = [40, 128], strides = [1, 1]} : vector<160x128xf32> to vector<40x128xf32>
      %cst_117 = arith.constant 5.000000e-01 : f32
      %476 = vector.broadcast %cst_117 : f32 to vector<40x128xf32>
      %477 = arith.mulf %476, %475 : vector<40x128xf32>
      %cst_118 = arith.constant 5.000000e-01 : f32
      %478 = vector.broadcast %cst_118 : f32 to vector<40x128xf32>
      %479 = arith.addf %478, %477 : vector<40x128xf32>
      %480 = vector.extract_strided_slice %469 {offsets = [80, 0], sizes = [40, 128], strides = [1, 1]} : vector<160x128xf32> to vector<40x128xf32>
      %481 = vector.extract_strided_slice %469 {offsets = [120, 0], sizes = [40, 128], strides = [1, 1]} : vector<160x128xf32> to vector<40x128xf32>
      %cst_119 = arith.constant 5.000000e-01 : f32
      %482 = vector.broadcast %cst_119 : f32 to vector<40x128xf32>
      %483 = arith.mulf %482, %481 : vector<40x128xf32>
      %cst_120 = arith.constant 5.000000e-01 : f32
      %484 = vector.broadcast %cst_120 : f32 to vector<40x128xf32>
      %485 = arith.addf %484, %483 : vector<40x128xf32>
      %486 = arith.mulf %479, %419 : vector<40x128xf32>
      %487 = arith.mulf %474, %480 : vector<40x128xf32>
      %488 = arith.addf %486, %487 : vector<40x128xf32>
      %489 = math.tanh %488 : vector<40x128xf32>
      %490 = arith.mulf %485, %489 : vector<40x128xf32>
      %491 = arith.mulf %18, %490 : vector<40x128xf32>
      %cst_121 = arith.constant dense<0.000000e+00> : vector<128xf32>
      %492 = vector.multi_reduction <add>, %491, %cst_121 [0] : vector<40x128xf32> to vector<128xf32>
      %493 = vector.shape_cast %492 : vector<128xf32> to vector<1x128xf32>
      %494 = arith.addf %493, %21 : vector<1x128xf32>
      %495 = arith.addf %494, %465 : vector<1x128xf32>
      %496 = arith.mulf %4, %495 : vector<1x128xf32>
      %497 = arith.mulf %5, %426 : vector<1x128xf32>
      %498 = arith.addf %496, %497 : vector<1x128xf32>
      %499 = arith.mulf %6, %357 : vector<1x128xf32>
      %500 = arith.addf %498, %499 : vector<1x128xf32>
      %501 = arith.mulf %7, %435 : vector<1x128xf32>
      %502 = arith.subf %500, %501 : vector<1x128xf32>
      %503 = arith.mulf %8, %366 : vector<1x128xf32>
      %504 = arith.subf %502, %503 : vector<1x128xf32>
      %505 = vector.broadcast %504 : vector<1x128xf32> to vector<24x128xf32>
      %506 = arith.mulf %12, %505 : vector<24x128xf32>
      %507 = arith.addf %506, %15 : vector<24x128xf32>
      %508 = vector.extract_strided_slice %467 {offsets = [160, 0], sizes = [24, 128], strides = [1, 1]} : vector<184x128xf32> to vector<24x128xf32>
      %509 = vector.extract_strided_slice %507 {offsets = [0, 0], sizes = [16, 128], strides = [1, 1]} : vector<24x128xf32> to vector<16x128xf32>
      %510 = vector.extract_strided_slice %508 {offsets = [0, 0], sizes = [16, 128], strides = [1, 1]} : vector<24x128xf32> to vector<16x128xf32>
      %511 = arith.addf %509, %510 : vector<16x128xf32>
      %512 = math.tanh %511 : vector<16x128xf32>
      %cst_122 = arith.constant 5.000000e-01 : f32
      %513 = vector.broadcast %cst_122 : f32 to vector<16x128xf32>
      %514 = arith.mulf %513, %512 : vector<16x128xf32>
      %cst_123 = arith.constant 5.000000e-01 : f32
      %515 = vector.broadcast %cst_123 : f32 to vector<16x128xf32>
      %516 = arith.addf %515, %514 : vector<16x128xf32>
      %517 = vector.extract_strided_slice %516 {offsets = [0, 0], sizes = [8, 128], strides = [1, 1]} : vector<16x128xf32> to vector<8x128xf32>
      %518 = vector.extract_strided_slice %516 {offsets = [8, 0], sizes = [8, 128], strides = [1, 1]} : vector<16x128xf32> to vector<8x128xf32>
      %519 = vector.extract_strided_slice %507 {offsets = [16, 0], sizes = [8, 128], strides = [1, 1]} : vector<24x128xf32> to vector<8x128xf32>
      %520 = vector.extract_strided_slice %508 {offsets = [16, 0], sizes = [8, 128], strides = [1, 1]} : vector<24x128xf32> to vector<8x128xf32>
      %521 = arith.mulf %517, %520 : vector<8x128xf32>
      %522 = arith.addf %519, %521 : vector<8x128xf32>
      %523 = math.tanh %522 : vector<8x128xf32>
      %524 = arith.subf %457, %523 : vector<8x128xf32>
      %525 = arith.mulf %518, %524 : vector<8x128xf32>
      %526 = arith.addf %523, %525 : vector<8x128xf32>
      %527 = arith.mulf %24, %526 : vector<8x128xf32>
      %cst_124 = arith.constant dense<0.000000e+00> : vector<128xf32>
      %528 = vector.multi_reduction <add>, %527, %cst_124 [0] : vector<8x128xf32> to vector<128xf32>
      %529 = vector.shape_cast %528 : vector<128xf32> to vector<1x128xf32>
      %530 = arith.addf %529, %27 : vector<1x128xf32>
      %531 = arith.addf %530, %504 : vector<1x128xf32>
      %c7_i32 = arith.constant 7 : i32
      %532 = arith.addi %48, %c7_i32 : i32
      %533 = arith.index_cast %532 : i32 to index
      %c0_125 = arith.constant 0 : index
      %534 = vector.load %arg2[%533, %c0_125] : memref<32x128xf32, #tpu.memory_space<vmem>>, vector<1x128xf32>
      %535 = tpu.concatenate %490, %526, %534, %28, %29 in 0 : vector<40x128xf32>, vector<8x128xf32>, vector<1x128xf32>, vector<1x128xf32>, vector<6x128xf32> -> vector<56x128xf32>
      %cst_126 = arith.constant dense<0.000000e+00> : vector<184x128xf32>
      %536 = tpu.matmul %9, %535, %cst_126 {dimension_numbers = #tpu.dot_dimension_numbers<[1], [0], [0], [1], [0, 0, 1, 1], [], []>} : vector<184x56xf32>, vector<56x128xf32>, vector<184x128xf32> -> vector<184x128xf32>
      %537 = vector.extract_strided_slice %536 {offsets = [0, 0], sizes = [160, 128], strides = [1, 1]} : vector<184x128xf32> to vector<160x128xf32>
      %538 = math.tanh %537 : vector<160x128xf32>
      %539 = vector.extract_strided_slice %538 {offsets = [0, 0], sizes = [40, 128], strides = [1, 1]} : vector<160x128xf32> to vector<40x128xf32>
      %cst_127 = arith.constant 5.000000e-01 : f32
      %540 = vector.broadcast %cst_127 : f32 to vector<40x128xf32>
      %541 = arith.mulf %540, %539 : vector<40x128xf32>
      %cst_128 = arith.constant 5.000000e-01 : f32
      %542 = vector.broadcast %cst_128 : f32 to vector<40x128xf32>
      %543 = arith.addf %542, %541 : vector<40x128xf32>
      %544 = vector.extract_strided_slice %538 {offsets = [40, 0], sizes = [40, 128], strides = [1, 1]} : vector<160x128xf32> to vector<40x128xf32>
      %cst_129 = arith.constant 5.000000e-01 : f32
      %545 = vector.broadcast %cst_129 : f32 to vector<40x128xf32>
      %546 = arith.mulf %545, %544 : vector<40x128xf32>
      %cst_130 = arith.constant 5.000000e-01 : f32
      %547 = vector.broadcast %cst_130 : f32 to vector<40x128xf32>
      %548 = arith.addf %547, %546 : vector<40x128xf32>
      %549 = vector.extract_strided_slice %538 {offsets = [80, 0], sizes = [40, 128], strides = [1, 1]} : vector<160x128xf32> to vector<40x128xf32>
      %550 = vector.extract_strided_slice %538 {offsets = [120, 0], sizes = [40, 128], strides = [1, 1]} : vector<160x128xf32> to vector<40x128xf32>
      %cst_131 = arith.constant 5.000000e-01 : f32
      %551 = vector.broadcast %cst_131 : f32 to vector<40x128xf32>
      %552 = arith.mulf %551, %550 : vector<40x128xf32>
      %cst_132 = arith.constant 5.000000e-01 : f32
      %553 = vector.broadcast %cst_132 : f32 to vector<40x128xf32>
      %554 = arith.addf %553, %552 : vector<40x128xf32>
      %555 = arith.mulf %548, %488 : vector<40x128xf32>
      %556 = arith.mulf %543, %549 : vector<40x128xf32>
      %557 = arith.addf %555, %556 : vector<40x128xf32>
      %558 = math.tanh %557 : vector<40x128xf32>
      %559 = arith.mulf %554, %558 : vector<40x128xf32>
      %560 = arith.mulf %18, %559 : vector<40x128xf32>
      %cst_133 = arith.constant dense<0.000000e+00> : vector<128xf32>
      %561 = vector.multi_reduction <add>, %560, %cst_133 [0] : vector<40x128xf32> to vector<128xf32>
      %562 = vector.shape_cast %561 : vector<128xf32> to vector<1x128xf32>
      %563 = arith.addf %562, %21 : vector<1x128xf32>
      %564 = arith.addf %563, %534 : vector<1x128xf32>
      %565 = arith.mulf %4, %564 : vector<1x128xf32>
      %566 = arith.mulf %5, %495 : vector<1x128xf32>
      %567 = arith.addf %565, %566 : vector<1x128xf32>
      %568 = arith.mulf %6, %426 : vector<1x128xf32>
      %569 = arith.addf %567, %568 : vector<1x128xf32>
      %570 = arith.mulf %7, %504 : vector<1x128xf32>
      %571 = arith.subf %569, %570 : vector<1x128xf32>
      %572 = arith.mulf %8, %435 : vector<1x128xf32>
      %573 = arith.subf %571, %572 : vector<1x128xf32>
      %574 = vector.broadcast %573 : vector<1x128xf32> to vector<24x128xf32>
      %575 = arith.mulf %12, %574 : vector<24x128xf32>
      %576 = arith.addf %575, %15 : vector<24x128xf32>
      %577 = vector.extract_strided_slice %536 {offsets = [160, 0], sizes = [24, 128], strides = [1, 1]} : vector<184x128xf32> to vector<24x128xf32>
      %578 = vector.extract_strided_slice %576 {offsets = [0, 0], sizes = [16, 128], strides = [1, 1]} : vector<24x128xf32> to vector<16x128xf32>
      %579 = vector.extract_strided_slice %577 {offsets = [0, 0], sizes = [16, 128], strides = [1, 1]} : vector<24x128xf32> to vector<16x128xf32>
      %580 = arith.addf %578, %579 : vector<16x128xf32>
      %581 = math.tanh %580 : vector<16x128xf32>
      %cst_134 = arith.constant 5.000000e-01 : f32
      %582 = vector.broadcast %cst_134 : f32 to vector<16x128xf32>
      %583 = arith.mulf %582, %581 : vector<16x128xf32>
      %cst_135 = arith.constant 5.000000e-01 : f32
      %584 = vector.broadcast %cst_135 : f32 to vector<16x128xf32>
      %585 = arith.addf %584, %583 : vector<16x128xf32>
      %586 = vector.extract_strided_slice %585 {offsets = [0, 0], sizes = [8, 128], strides = [1, 1]} : vector<16x128xf32> to vector<8x128xf32>
      %587 = vector.extract_strided_slice %585 {offsets = [8, 0], sizes = [8, 128], strides = [1, 1]} : vector<16x128xf32> to vector<8x128xf32>
      %588 = vector.extract_strided_slice %576 {offsets = [16, 0], sizes = [8, 128], strides = [1, 1]} : vector<24x128xf32> to vector<8x128xf32>
      %589 = vector.extract_strided_slice %577 {offsets = [16, 0], sizes = [8, 128], strides = [1, 1]} : vector<24x128xf32> to vector<8x128xf32>
      %590 = arith.mulf %586, %589 : vector<8x128xf32>
      %591 = arith.addf %588, %590 : vector<8x128xf32>
      %592 = math.tanh %591 : vector<8x128xf32>
      %593 = arith.subf %526, %592 : vector<8x128xf32>
      %594 = arith.mulf %587, %593 : vector<8x128xf32>
      %595 = arith.addf %592, %594 : vector<8x128xf32>
      %596 = arith.mulf %24, %595 : vector<8x128xf32>
      %cst_136 = arith.constant dense<0.000000e+00> : vector<128xf32>
      %597 = vector.multi_reduction <add>, %596, %cst_136 [0] : vector<8x128xf32> to vector<128xf32>
      %598 = vector.shape_cast %597 : vector<128xf32> to vector<1x128xf32>
      %599 = arith.addf %598, %27 : vector<1x128xf32>
      %600 = arith.addf %599, %573 : vector<1x128xf32>
      %601 = tpu.concatenate %117, %186, %255, %324, %393, %462, %531, %600 in 0 : vector<1x128xf32>, vector<1x128xf32>, vector<1x128xf32>, vector<1x128xf32>, vector<1x128xf32>, vector<1x128xf32>, vector<1x128xf32>, vector<1x128xf32> -> vector<8x128xf32>
      %602 = arith.index_cast %48 : i32 to index
      %c0_137 = arith.constant 0 : index
      %603 = vector.load %arg15[%602, %c0_137] : memref<32x128xf32, #tpu.memory_space<vmem>>, vector<8x128xf32>
      tpu.vector_store %arg15[%602, %c0_137], %601 {strides = array<i32>} : memref<32x128xf32, #tpu.memory_space<vmem>>, vector<8x128xf32>,
      scf.yield %559, %557, %595, %564, %495, %573, %504 : vector<40x128xf32>, vector<40x128xf32>, vector<8x128xf32>, vector<1x128xf32>, vector<1x128xf32>, vector<1x128xf32>, vector<1x128xf32>
    }
    %c4_i32_26 = arith.constant 4 : i32
    %c0_27 = arith.constant 0 : index
    %c0_28 = arith.constant 0 : index
    %40 = vector.load %arg17[%c0_27, %c0_28] : memref<40x128xf32, #tpu.memory_space<vmem>>, vector<40x128xf32>
    tpu.vector_store %arg17[%c0_27, %c0_28], %39#0 {strides = array<i32>} : memref<40x128xf32, #tpu.memory_space<vmem>>, vector<40x128xf32>,
    %c0_29 = arith.constant 0 : index
    %c0_30 = arith.constant 0 : index
    %41 = vector.load %arg18[%c0_29, %c0_30] : memref<40x128xf32, #tpu.memory_space<vmem>>, vector<40x128xf32>
    tpu.vector_store %arg18[%c0_29, %c0_30], %39#1 {strides = array<i32>} : memref<40x128xf32, #tpu.memory_space<vmem>>, vector<40x128xf32>,
    %c0_31 = arith.constant 0 : index
    %c0_32 = arith.constant 0 : index
    %42 = vector.load %arg19[%c0_31, %c0_32] : memref<8x128xf32, #tpu.memory_space<vmem>>, vector<8x128xf32>
    tpu.vector_store %arg19[%c0_31, %c0_32], %39#2 {strides = array<i32>} : memref<8x128xf32, #tpu.memory_space<vmem>>, vector<8x128xf32>,
    %c0_33 = arith.constant 0 : index
    %c0_34 = arith.constant 0 : index
    %43 = vector.load %arg20[%c0_33, %c0_34] : memref<4x128xf32, #tpu.memory_space<vmem>>, vector<1x128xf32>
    tpu.vector_store %arg20[%c0_33, %c0_34], %39#3 {strides = array<i32>} : memref<4x128xf32, #tpu.memory_space<vmem>>, vector<1x128xf32>,
    %c1 = arith.constant 1 : index
    %c0_35 = arith.constant 0 : index
    %44 = vector.load %arg20[%c1, %c0_35] : memref<4x128xf32, #tpu.memory_space<vmem>>, vector<1x128xf32>
    tpu.vector_store %arg20[%c1, %c0_35], %39#4 {strides = array<i32>} : memref<4x128xf32, #tpu.memory_space<vmem>>, vector<1x128xf32>,
    %c2 = arith.constant 2 : index
    %c0_36 = arith.constant 0 : index
    %45 = vector.load %arg20[%c2, %c0_36] : memref<4x128xf32, #tpu.memory_space<vmem>>, vector<1x128xf32>
    tpu.vector_store %arg20[%c2, %c0_36], %39#5 {strides = array<i32>} : memref<4x128xf32, #tpu.memory_space<vmem>>, vector<1x128xf32>,
    %c3 = arith.constant 3 : index
    %c0_37 = arith.constant 0 : index
    %46 = vector.load %arg20[%c3, %c0_37] : memref<4x128xf32, #tpu.memory_space<vmem>>, vector<1x128xf32>
    tpu.vector_store %arg20[%c3, %c0_37], %39#6 {strides = array<i32>} : memref<4x128xf32, #tpu.memory_space<vmem>>, vector<1x128xf32>,
    return
  }
  func.func @transform_0(%arg0: i32, %arg1: i32) -> (i32, i32) {
    %c0_i32 = arith.constant 0 : i32
    return %arg1, %arg0 : i32, i32
  }
  func.func @transform_1(%arg0: i32, %arg1: i32) -> (i32, i32) {
    %c0_i32 = arith.constant 0 : i32
    %c0_i32_0 = arith.constant 0 : i32
    return %c0_i32, %arg0 : i32, i32
  }
  func.func @transform_2(%arg0: i32, %arg1: i32) -> (i32, i32) {
    %c0_i32 = arith.constant 0 : i32
    %c0_i32_0 = arith.constant 0 : i32
    %c0_i32_1 = arith.constant 0 : i32
    return %c0_i32, %c0_i32_0 : i32, i32
  }
  func.func @transform_3(%arg0: i32, %arg1: i32) -> (i32, i32) {
    %c0_i32 = arith.constant 0 : i32
    %c0_i32_0 = arith.constant 0 : i32
    %c0_i32_1 = arith.constant 0 : i32
    return %c0_i32, %c0_i32_0 : i32, i32
  }
  func.func @transform_4(%arg0: i32, %arg1: i32) -> (i32, i32) {
    %c0_i32 = arith.constant 0 : i32
    %c0_i32_0 = arith.constant 0 : i32
    %c0_i32_1 = arith.constant 0 : i32
    return %c0_i32, %c0_i32_0 : i32, i32
  }
  func.func @transform_5(%arg0: i32, %arg1: i32) -> (i32, i32) {
    %c0_i32 = arith.constant 0 : i32
    %c0_i32_0 = arith.constant 0 : i32
    %c0_i32_1 = arith.constant 0 : i32
    return %c0_i32, %c0_i32_0 : i32, i32
  }
  func.func @transform_6(%arg0: i32, %arg1: i32) -> (i32, i32) {
    %c0_i32 = arith.constant 0 : i32
    %c0_i32_0 = arith.constant 0 : i32
    %c0_i32_1 = arith.constant 0 : i32
    return %c0_i32, %c0_i32_0 : i32, i32
  }
  func.func @transform_7(%arg0: i32, %arg1: i32) -> (i32, i32) {
    %c0_i32 = arith.constant 0 : i32
    %c0_i32_0 = arith.constant 0 : i32
    %c0_i32_1 = arith.constant 0 : i32
    return %c0_i32, %c0_i32_0 : i32, i32
  }
  func.func @transform_8(%arg0: i32, %arg1: i32) -> (i32, i32) {
    %c0_i32 = arith.constant 0 : i32
    %c0_i32_0 = arith.constant 0 : i32
    %c0_i32_1 = arith.constant 0 : i32
    return %c0_i32, %c0_i32_0 : i32, i32
  }
  func.func @transform_9(%arg0: i32, %arg1: i32) -> (i32, i32) {
    %c0_i32 = arith.constant 0 : i32
    %c0_i32_0 = arith.constant 0 : i32
    %c0_i32_1 = arith.constant 0 : i32
    return %c0_i32, %c0_i32_0 : i32, i32
  }
  func.func @transform_10(%arg0: i32, %arg1: i32) -> (i32, i32) {
    %c0_i32 = arith.constant 0 : i32
    %c0_i32_0 = arith.constant 0 : i32
    %c0_i32_1 = arith.constant 0 : i32
    return %c0_i32, %c0_i32_0 : i32, i32
  }
  func.func @transform_11(%arg0: i32, %arg1: i32) -> (i32, i32) {
    %c0_i32 = arith.constant 0 : i32
    %c0_i32_0 = arith.constant 0 : i32
    %c0_i32_1 = arith.constant 0 : i32
    return %c0_i32, %c0_i32_0 : i32, i32
  }
  func.func @transform_12(%arg0: i32, %arg1: i32) -> (i32, i32) {
    %c0_i32 = arith.constant 0 : i32
    %c0_i32_0 = arith.constant 0 : i32
    %c0_i32_1 = arith.constant 0 : i32
    return %c0_i32, %c0_i32_0 : i32, i32
  }
  func.func @transform_13(%arg0: i32, %arg1: i32) -> (i32, i32) {
    %c0_i32 = arith.constant 0 : i32
    return %arg1, %arg0 : i32, i32
  }
}

</mosaic_0001>

<llo_original>
// kernel: amp_forward.1
$region0: #{amp_forward.1}
  #allocation0 [shape = 'u32[]', space=smem, size = 0x4, offset = 0x4, fixed_abs, tag = 'smem constant byte address 0x4 - core index']
  #allocation1 [shape = 'u32[144,128]{1,0:T(1,128)}', space=vmem, size = 0x12000, scoped, tag = 'internal scratch']
  #allocation2 [shape = 'f32[5,128]{1,0:T(8,128)}', space=vmem, size = 0x1000, scoped, tag = 'scratch operand']
  #allocation3 [shape = 'f32[40,128]{1,0:T(8,128)}', space=vmem, size = 0x5000, scoped, tag = 'scratch operand']
  #allocation4 [shape = 'f32[40,128]{1,0:T(8,128)}', space=vmem, size = 0x5000, scoped, tag = 'scratch operand']
  #allocation5 [shape = 'f32[8,128]{1,0:T(8,128)}', space=vmem, size = 0x1000, scoped, tag = 'scratch operand']
  #allocation6 [shape = 'f32[4,128]{1,0:T(4,128)}', space=vmem, size = 0x800, scoped, tag = 'scratch operand']
  #allocation7 [shape = 'f32[1,1]{1,0:T(1,128)S(1)}', space=vmem, size = 0x200, scoped, tag = 'scoped memory for amp_forward.1']
  #allocation8 [shape = 'f32[1,1]{1,0:T(1,128)S(1)}', space=vmem, size = 0x200, scoped, tag = 'scoped memory for amp_forward.1']
  %s0 = inlined_call_operand.hbm [shape: f32[64,128], index: 0, kind: input, shape index: {}]
  %s1 = inlined_call_operand.hbm [shape: f32[3,128], index: 1, kind: input, shape index: {}]
  %s2 = inlined_call_operand.hbm [shape: f32[184,56], index: 2, kind: input, shape index: {}]
  %s3 = inlined_call_operand.hbm [shape: f32[24,1], index: 3, kind: input, shape index: {}]
  %s4 = inlined_call_operand.hbm [shape: f32[24,1], index: 4, kind: input, shape index: {}]
  %s5 = inlined_call_operand.hbm [shape: f32[40,1], index: 5, kind: input, shape index: {}]
  %s6 = inlined_call_operand.<no memory space> [shape: f32[1,1], index: 6, kind: input, shape index: {}]
  %s7 = inlined_call_operand.hbm [shape: f32[8,1], index: 7, kind: input, shape index: {}]
  %s8 = inlined_call_operand.<no memory space> [shape: f32[1,1], index: 8, kind: input, shape index: {}]
  %s9 = inlined_call_operand.hbm [shape: f32[16,3], index: 9, kind: input, shape index: {}]
  %s10 = inlined_call_operand.hbm [shape: f32[16,1], index: 10, kind: input, shape index: {}]
  %s11 = inlined_call_operand.hbm [shape: f32[5,16], index: 11, kind: input, shape index: {}]
  %s12 = inlined_call_operand.hbm [shape: f32[5,1], index: 12, kind: input, shape index: {}]
  %s13 = inlined_call_operand.hbm [shape: f32[64,128], index: 13, kind: output, shape index: {}]
  %s14 = sld [smem:[#allocation0]]
  $region140: #{amp_forward.1} parent=0
    _
  %s16 = ssub.s32 1, %s14
  %s17 = scalar_select 0, %s16, %s14
  %v18 = vstv %s6
  %19 = vst [vmem:[#allocation7] sm:$0x1] %v18
  %v20 = vstv %s8
  %21 = vst [vmem:[#allocation8] sm:$0x1] %v20
  $region1: #{amp_forward.1} parent=0
    #allocation9 [shape = 'u8[32768]{0}', space=vmem, size = 0x8000, scoped, tag = 'input window, operand 0']
    #allocation10 [shape = 's32[2]{0}', space=sflag, size = 0x8, scoped, tag = 'scoped memory for amp_forward.1']
    #allocation11 [shape = 's32[2]{0}', space=sflag, size = 0x8, scoped, tag = 'scoped memory for amp_forward.1']
    #allocation12 [shape = 'u8[2048]{0}', space=vmem, size = 0x800, scoped, tag = 'input window, operand 1, single buffered']
    #allocation13 [shape = 's32[1]{0}', space=sflag, size = 0x4, scoped, tag = 'scoped memory for amp_forward.1']
    #allocation14 [shape = 'u8[94208]{0}', space=vmem, size = 0x17000, scoped, tag = 'input window, operand 2, single buffered']
    #allocation15 [shape = 'u8[12288]{0}', space=vmem, size = 0x3000, scoped, tag = 'input window, operand 3, single buffered']
    #allocation16 [shape = 's32[1]{0}', space=sflag, size = 0x4, scoped, tag = 'scoped memory for amp_forward.1']
    #allocation17 [shape = 'u8[12288]{0}', space=vmem, size = 0x3000, scoped, tag = 'input window, operand 4, single buffered']
    #allocation18 [shape = 'u8[20480]{0}', space=vmem, size = 0x5000, scoped, tag = 'input window, operand 5, single buffered']
    #allocation19 [shape = 's32[1]{0}', space=sflag, size = 0x4, scoped, tag = 'scoped memory for amp_forward.1']
    #allocation20 [shape = 'u8[4096]{0}', space=vmem, size = 0x1000, scoped, tag = 'input window, operand 7, single buffered']
    #allocation21 [shape = 'u8[8192]{0}', space=vmem, size = 0x2000, scoped, tag = 'input window, operand 9, single buffered']
    #allocation22 [shape = 's32[1]{0}', space=sflag, size = 0x4, scoped, tag = 'scoped memory for amp_forward.1']
    #allocation23 [shape = 'u8[8192]{0}', space=vmem, size = 0x2000, scoped, tag = 'input window, operand 10, single buffered']
    #allocation24 [shape = 'u8[4096]{0}', space=vmem, size = 0x1000, scoped, tag = 'input window, operand 11, single buffered']
    #allocation25 [shape = 's32[1]{0}', space=sflag, size = 0x4, scoped, tag = 'scoped memory for amp_forward.1']
    #allocation26 [shape = 'u8[4096]{0}', space=vmem, size = 0x1000, scoped, tag = 'input window, operand 12, single buffered']
    #allocation27 [shape = 'u8[32768]{0}', space=vmem, size = 0x8000, scoped, tag = 'output window, operand 0']
    %22 = vsyncpa [#allocation10], 0
    %s23 = scalar_lea.sflag [#allocation10], 1
    %24 = vsyncpa %s23, 0
    %25 = vsyncpa [#allocation13], 0
    %26 = vsyncpa [#allocation16], 0
    %27 = vsyncpa [#allocation19], 0
    %28 = vsyncpa [#allocation22], 0
    %29 = vsyncpa [#allocation25], 0
    %30 = vsyncpa [#allocation11], 0
    %s31 = scalar_lea.sflag [#allocation11], 1
    %32 = vsyncpa %s31, 0
    loop: start=0, step=1, limit=4
    $region2: #{amp_forward.1} parent=1 // loop_pre_header
      _
    $region3: #{amp_forward.1} parent=1 // loop_header
      %s34 = sphi 0, %s38
      %p35 = scmp.ge.s32.totalorder %s34, 4
      %s41 = sphi 0, %s53
      %s42 = sphi 0, %s49
      %s43 = sphi 0, %s41
      %s44 = sphi 0, %s42
      %s45 = sphi 0, %s43
      %s46 = sphi 0, %s44
      %s58 = sphi 0, %s60
      %s61 = sphi 0, %s58
      %s62 = sphi 0, %s61
      %s78 = sphi 0, %s62
      %s84 = sphi 0, %s86
      %s87 = sphi 0, %s84
      %s88 = sphi 0, %s87
      %s104 = sphi 0, %s88
      %s108 = sphi 0, %s108
      %s110 = sphi 0, %s108
      %s111 = sphi 0, %s110
      %s125 = sphi 0, %s111
      %s129 = sphi 0, %s129
      %s131 = sphi 0, %s129
      %s132 = sphi 0, %s131
      %s146 = sphi 0, %s132
      %s150 = sphi 0, %s150
      %s152 = sphi 0, %s150
      %s153 = sphi 0, %s152
      %s167 = sphi 0, %s153
      %s171 = sphi 0, %s171
      %s173 = sphi 0, %s171
      %s174 = sphi 0, %s173
      %s188 = sphi 0, %s174
      %s192 = sphi 0, %s192
      %s194 = sphi 0, %s192
      %s195 = sphi 0, %s194
      %s209 = sphi 0, %s195
      %s213 = sphi 0, %s213
      %s215 = sphi 0, %s213
      %s216 = sphi 0, %s215
      %s230 = sphi 0, %s216
      %s234 = sphi 0, %s234
      %s236 = sphi 0, %s234
      %s237 = sphi 0, %s236
      %s251 = sphi 0, %s237
      %s255 = sphi 0, %s255
      %s257 = sphi 0, %s255
      %s258 = sphi 0, %s257
      %s272 = sphi 0, %s258
      %s276 = sphi 0, %s276
      %s278 = sphi 0, %s276
      %s279 = sphi 0, %s278
      %s293 = sphi 0, %s279
      %s297 = sphi 0, %s297
      %s299 = sphi 0, %s297
      %s300 = sphi 0, %s299
      %s314 = sphi 0, %s300
      %s318 = sphi 0, %s318
      %s320 = sphi 0, %s318
      %s321 = sphi 0, %s320
      %s335 = sphi 0, %s321
      %s343 = sphi 0, %s345
      %s346 = sphi 0, %s343
      %s347 = sphi 0, %s346
      %s363 = sphi 0, %s347
    $region4: #{amp_forward.1} parent=1 // loop_header_branch
      %37 = sbr.rel (%p35) target = $region8
    $region5: #{amp_forward.1} parent=1 // loop_body
      %s39 = ssub.s32 %s34, 1
      %s40 = ssub.s32 %s34, 2
      %s47 = sadd.s32 1, %s42
      %p48 = scmp.ge.s32.totalorder %s47, 2
      %s49 = scalar_select %p48, 0, %s47
      %s50 = sadd.s32 1, %s41
      %s51 = scalar_select %p48, %s50, %s41
      %p52 = scmp.ge.s32.totalorder %s51, 1
      %s53 = scalar_select %p52, 0, %s51
      %s54 = ssub.s32 %s42, %s49
      %s55 = ssub.s32 %s41, %s53
      %s56 = sor.u32 %s54, %s55
      %p57 = scmp.eq.s32.totalorder %s56, 0
      %s59 = sadd.s32 %s58, 1
      %s60 = scalar_select %p57, %s58, %s59
      %p63 = pneg %p57
      %p64 = scmp.eq.s32.totalorder %s34, 1
      %p65 = por %p63, %p64
      %p66 = scmp.ne.s32.totalorder %s58, %s61
      %p67 = scmp.eq.s32.totalorder %s34, 0
      %p68 = por %p66, %p67
      %p69 = scmp.ne.s32.totalorder %s58, %s61
      %p70 = scmp.eq.s32.totalorder %s39, 1
      %p71 = por %p69, %p70
      %p72 = scmp.ne.s32.totalorder %s61, %s62
      %p73 = scmp.eq.s32.totalorder %s39, 0
      %p74 = por %p72, %p73
      %p75 = scmp.ne.s32.totalorder %s61, %s62
      %p76 = scmp.eq.s32.totalorder %s40, 1
      %p77 = por %p75, %p76
      %p79 = scmp.ne.s32.totalorder %s62, %s78
      %p80 = scmp.eq.s32.totalorder %s40, 0
      %p81 = por %p79, %p80
      %s82 = ssub.s32 %s41, %s53
      %p83 = scmp.eq.s32.totalorder %s82, 0
      %s85 = sadd.s32 %s84, 1
      %s86 = scalar_select %p83, %s84, %s85
      %p89 = pneg %p83
      %p90 = scmp.eq.s32.totalorder %s34, 1
      %p91 = por %p89, %p90
      %p92 = scmp.ne.s32.totalorder %s84, %s87
      %p93 = scmp.eq.s32.totalorder %s34, 0
      %p94 = por %p92, %p93
      %p95 = scmp.ne.s32.totalorder %s84, %s87
      %p96 = scmp.eq.s32.totalorder %s39, 1
      %p97 = por %p95, %p96
      %p98 = scmp.ne.s32.totalorder %s87, %s88
      %p99 = scmp.eq.s32.totalorder %s39, 0
      %p100 = por %p98, %p99
      %p101 = scmp.ne.s32.totalorder %s87, %s88
      %p102 = scmp.eq.s32.totalorder %s40, 1
      %p103 = por %p101, %p102
      %p105 = scmp.ne.s32.totalorder %s88, %s104
      %p106 = scmp.eq.s32.totalorder %s40, 0
      %p107 = por %p105, %p106
      %s109 = sadd.s32 %s108, 1
      %p112 = scmp.eq.s32.totalorder %s34, 1
      %p113 = scmp.ne.s32.totalorder %s108, %s110
      %p114 = scmp.eq.s32.totalorder %s34, 0
      %p115 = por %p113, %p114
      %p116 = scmp.ne.s32.totalorder %s108, %s110
      %p117 = scmp.eq.s32.totalorder %s39, 1
      %p118 = por %p116, %p117
      %p119 = scmp.ne.s32.totalorder %s110, %s111
      %p120 = scmp.eq.s32.totalorder %s39, 0
      %p121 = por %p119, %p120
      %p122 = scmp.ne.s32.totalorder %s110, %s111
      %p123 = scmp.eq.s32.totalorder %s40, 1
      %p124 = por %p122, %p123
      %p126 = scmp.ne.s32.totalorder %s111, %s125
      %p127 = scmp.eq.s32.totalorder %s40, 0
      %p128 = por %p126, %p127
      %s130 = sadd.s32 %s129, 1
      %p133 = scmp.eq.s32.totalorder %s34, 1
      %p134 = scmp.ne.s32.totalorder %s129, %s131
      %p135 = scmp.eq.s32.totalorder %s34, 0
      %p136 = por %p134, %p135
      %p137 = scmp.ne.s32.totalorder %s129, %s131
      %p138 = scmp.eq.s32.totalorder %s39, 1
      %p139 = por %p137, %p138
      %p140 = scmp.ne.s32.totalorder %s131, %s132
      %p141 = scmp.eq.s32.totalorder %s39, 0
      %p142 = por %p140, %p141
      %p143 = scmp.ne.s32.totalorder %s131, %s132
      %p144 = scmp.eq.s32.totalorder %s40, 1
      %p145 = por %p143, %p144
      %p147 = scmp.ne.s32.totalorder %s132, %s146
      %p148 = scmp.eq.s32.totalorder %s40, 0
      %p149 = por %p147, %p148
      %s151 = sadd.s32 %s150, 1
      %p154 = scmp.eq.s32.totalorder %s34, 1
      %p155 = scmp.ne.s32.totalorder %s150, %s152
      %p156 = scmp.eq.s32.totalorder %s34, 0
      %p157 = por %p155, %p156
      %p158 = scmp.ne.s32.totalorder %s150, %s152
      %p159 = scmp.eq.s32.totalorder %s39, 1
      %p160 = por %p158, %p159
      %p161 = scmp.ne.s32.totalorder %s152, %s153
      %p162 = scmp.eq.s32.totalorder %s39, 0
      %p163 = por %p161, %p162
      %p164 = scmp.ne.s32.totalorder %s152, %s153
      %p165 = scmp.eq.s32.totalorder %s40, 1
      %p166 = por %p164, %p165
      %p168 = scmp.ne.s32.totalorder %s153, %s167
      %p169 = scmp.eq.s32.totalorder %s40, 0
      %p170 = por %p168, %p169
      %s172 = sadd.s32 %s171, 1
      %p175 = scmp.eq.s32.totalorder %s34, 1
      %p176 = scmp.ne.s32.totalorder %s171, %s173
      %p177 = scmp.eq.s32.totalorder %s34, 0
      %p178 = por %p176, %p177
      %p179 = scmp.ne.s32.totalorder %s171, %s173
      %p180 = scmp.eq.s32.totalorder %s39, 1
      %p181 = por %p179, %p180
      %p182 = scmp.ne.s32.totalorder %s173, %s174
      %p183 = scmp.eq.s32.totalorder %s39, 0
      %p184 = por %p182, %p183
      %p185 = scmp.ne.s32.totalorder %s173, %s174
      %p186 = scmp.eq.s32.totalorder %s40, 1
      %p187 = por %p185, %p186
      %p189 = scmp.ne.s32.totalorder %s174, %s188
      %p190 = scmp.eq.s32.totalorder %s40, 0
      %p191 = por %p189, %p190
      %s193 = sadd.s32 %s192, 1
      %p196 = scmp.eq.s32.totalorder %s34, 1
      %p197 = scmp.ne.s32.totalorder %s192, %s194
      %p198 = scmp.eq.s32.totalorder %s34, 0
      %p199 = por %p197, %p198
      %p200 = scmp.ne.s32.totalorder %s192, %s194
      %p201 = scmp.eq.s32.totalorder %s39, 1
      %p202 = por %p200, %p201
      %p203 = scmp.ne.s32.totalorder %s194, %s195
      %p204 = scmp.eq.s32.totalorder %s39, 0
      %p205 = por %p203, %p204
      %p206 = scmp.ne.s32.totalorder %s194, %s195
      %p207 = scmp.eq.s32.totalorder %s40, 1
      %p208 = por %p206, %p207
      %p210 = scmp.ne.s32.totalorder %s195, %s209
      %p211 = scmp.eq.s32.totalorder %s40, 0
      %p212 = por %p210, %p211
      %s214 = sadd.s32 %s213, 1
      %p217 = scmp.eq.s32.totalorder %s34, 1
      %p218 = scmp.ne.s32.totalorder %s213, %s215
      %p219 = scmp.eq.s32.totalorder %s34, 0
      %p220 = por %p218, %p219
      %p221 = scmp.ne.s32.totalorder %s213, %s215
      %p222 = scmp.eq.s32.totalorder %s39, 1
      %p223 = por %p221, %p222
      %p224 = scmp.ne.s32.totalorder %s215, %s216
      %p225 = scmp.eq.s32.totalorder %s39, 0
      %p226 = por %p224, %p225
      %p227 = scmp.ne.s32.totalorder %s215, %s216
      %p228 = scmp.eq.s32.totalorder %s40, 1
      %p229 = por %p227, %p228
      %p231 = scmp.ne.s32.totalorder %s216, %s230
      %p232 = scmp.eq.s32.totalorder %s40, 0
      %p233 = por %p231, %p232
      %s235 = sadd.s32 %s234, 1
      %p238 = scmp.eq.s32.totalorder %s34, 1
      %p239 = scmp.ne.s32.totalorder %s234, %s236
      %p240 = scmp.eq.s32.totalorder %s34, 0
      %p241 = por %p239, %p240
      %p242 = scmp.ne.s32.totalorder %s234, %s236
      %p243 = scmp.eq.s32.totalorder %s39, 1
      %p244 = por %p242, %p243
      %p245 = scmp.ne.s32.totalorder %s236, %s237
      %p246 = scmp.eq.s32.totalorder %s39, 0
      %p247 = por %p245, %p246
      %p248 = scmp.ne.s32.totalorder %s236, %s237
      %p249 = scmp.eq.s32.totalorder %s40, 1
      %p250 = por %p248, %p249
      %p252 = scmp.ne.s32.totalorder %s237, %s251
      %p253 = scmp.eq.s32.totalorder %s40, 0
      %p254 = por %p252, %p253
      %s256 = sadd.s32 %s255, 1
      %p259 = scmp.eq.s32.totalorder %s34, 1
      %p260 = scmp.ne.s32.totalorder %s255, %s257
      %p261 = scmp.eq.s32.totalorder %s34, 0
      %p262 = por %p260, %p261
      %p263 = scmp.ne.s32.totalorder %s255, %s257
      %p264 = scmp.eq.s32.totalorder %s39, 1
      %p265 = por %p263, %p264
      %p266 = scmp.ne.s32.totalorder %s257, %s258
      %p267 = scmp.eq.s32.totalorder %s39, 0
      %p268 = por %p266, %p267
      %p269 = scmp.ne.s32.totalorder %s257, %s258
      %p270 = scmp.eq.s32.totalorder %s40, 1
      %p271 = por %p269, %p270
      %p273 = scmp.ne.s32.totalorder %s258, %s272
      %p274 = scmp.eq.s32.totalorder %s40, 0
      %p275 = por %p273, %p274
      %s277 = sadd.s32 %s276, 1
      %p280 = scmp.eq.s32.totalorder %s34, 1
      %p281 = scmp.ne.s32.totalorder %s276, %s278
      %p282 = scmp.eq.s32.totalorder %s34, 0
      %p283 = por %p281, %p282
      %p284 = scmp.ne.s32.totalorder %s276, %s278
      %p285 = scmp.eq.s32.totalorder %s39, 1
      %p286 = por %p284, %p285
      %p287 = scmp.ne.s32.totalorder %s278, %s279
      %p288 = scmp.eq.s32.totalorder %s39, 0
      %p289 = por %p287, %p288
      %p290 = scmp.ne.s32.totalorder %s278, %s279
      %p291 = scmp.eq.s32.totalorder %s40, 1
      %p292 = por %p290, %p291
      %p294 = scmp.ne.s32.totalorder %s279, %s293
      %p295 = scmp.eq.s32.totalorder %s40, 0
      %p296 = por %p294, %p295
      %s298 = sadd.s32 %s297, 1
      %p301 = scmp.eq.s32.totalorder %s34, 1
      %p302 = scmp.ne.s32.totalorder %s297, %s299
      %p303 = scmp.eq.s32.totalorder %s34, 0
      %p304 = por %p302, %p303
      %p305 = scmp.ne.s32.totalorder %s297, %s299
      %p306 = scmp.eq.s32.totalorder %s39, 1
      %p307 = por %p305, %p306
      %p308 = scmp.ne.s32.totalorder %s299, %s300
      %p309 = scmp.eq.s32.totalorder %s39, 0
      %p310 = por %p308, %p309
      %p311 = scmp.ne.s32.totalorder %s299, %s300
      %p312 = scmp.eq.s32.totalorder %s40, 1
      %p313 = por %p311, %p312
      %p315 = scmp.ne.s32.totalorder %s300, %s314
      %p316 = scmp.eq.s32.totalorder %s40, 0
      %p317 = por %p315, %p316
      %s319 = sadd.s32 %s318, 1
      %p322 = scmp.eq.s32.totalorder %s34, 1
      %p323 = scmp.ne.s32.totalorder %s318, %s320
      %p324 = scmp.eq.s32.totalorder %s34, 0
      %p325 = por %p323, %p324
      %p326 = scmp.ne.s32.totalorder %s318, %s320
      %p327 = scmp.eq.s32.totalorder %s39, 1
      %p328 = por %p326, %p327
      %p329 = scmp.ne.s32.totalorder %s320, %s321
      %p330 = scmp.eq.s32.totalorder %s39, 0
      %p331 = por %p329, %p330
      %p332 = scmp.ne.s32.totalorder %s320, %s321
      %p333 = scmp.eq.s32.totalorder %s40, 1
      %p334 = por %p332, %p333
      %p336 = scmp.ne.s32.totalorder %s321, %s335
      %p337 = scmp.eq.s32.totalorder %s40, 0
      %p338 = por %p336, %p337
      %s339 = ssub.s32 %s42, %s49
      %s340 = ssub.s32 %s41, %s53
      %s341 = sor.u32 %s339, %s340
      %p342 = scmp.eq.s32.totalorder %s341, 0
      %s344 = sadd.s32 %s343, 1
      %s345 = scalar_select %p342, %s343, %s344
      %p348 = pneg %p342
      %p349 = scmp.eq.s32.totalorder %s34, 1
      %p350 = por %p348, %p349
      %p351 = scmp.ne.s32.totalorder %s343, %s346
      %p352 = scmp.eq.s32.totalorder %s34, 0
      %p353 = por %p351, %p352
      %p354 = scmp.ne.s32.totalorder %s343, %s346
      %p355 = scmp.eq.s32.totalorder %s39, 1
      %p356 = por %p354, %p355
      %p357 = scmp.ne.s32.totalorder %s346, %s347
      %p358 = scmp.eq.s32.totalorder %s39, 0
      %p359 = por %p357, %p358
      %p360 = scmp.ne.s32.totalorder %s346, %s347
      %p361 = scmp.eq.s32.totalorder %s40, 1
      %p362 = por %p360, %p361
      %p364 = scmp.ne.s32.totalorder %s347, %s363
      %p365 = scmp.eq.s32.totalorder %s40, 0
      %p366 = por %p364, %p365
      %p367 = scmp.le.s32.totalorder 1, %s34
      %p368 = scmp.lt.s32.totalorder %s34, 3
      %p369 = pnand %p367, %p368
      %p370 = pneg %p369
      // Predicated region
      $region9: #{amp_forward.1} parent=5 // pred_check
        _
      $region10: #{amp_forward.1} parent=5 // pred_check_branch
        %372 = sbr.rel (%p369) target = $region12
      $region11: #{amp_forward.1} parent=5 // pred_region
        %s373 = ssub.s32 %s34, 1
        // Predicated region
        $region13: #{amp_forward.1} parent=11 // pred_check
          %p374 = pneg %p100
        $region14: #{amp_forward.1} parent=11 // pred_check_branch
          %376 = sbr.rel (%p374) target = $region16
        $region15: #{amp_forward.1} parent=11 // pred_region
          %s378 = ssub.s32 64, 64
          %379 = vsyncadd [#allocation13], %s378
          %s380 = smul.addr %s43, 64
          %s381 = scalar_lea.hbm %s1, %s380
          %s383 = sshll.u32 [#allocation12], 4
          %s384 = int_to_ptr.vmem [resolvable:$true] %s383
          %386 = dma.hbm_to_vmem [thread:$0]  %s381, 64, %s384, [#allocation13]
        $region16: #{amp_forward.1} parent=11 // pred_fallthru
          _
        // Predicated region
        $region17: #{amp_forward.1} parent=11 // pred_check
          %p387 = pneg %p121
        $region18: #{amp_forward.1} parent=11 // pred_check_branch
          %389 = sbr.rel (%p387) target = $region20
        $region19: #{amp_forward.1} parent=11 // pred_region
          %s391 = ssub.s32 2944, 2944
          %392 = vsyncadd [#allocation13], %s391
          %s393 = sshll.u32 [#allocation14], 4
          %s394 = int_to_ptr.vmem [resolvable:$true] %s393
          %399 = dma.hbm_to_vmem [thread:$0]  %s2, 2944, %s394, [#allocation13], 128, 128, 8
        $region20: #{amp_forward.1} parent=11 // pred_fallthru
          _
        // Predicated region
        $region21: #{amp_forward.1} parent=11 // pred_check
          %p400 = pneg %p142
        $region22: #{amp_forward.1} parent=11 // pred_check_branch
          %402 = sbr.rel (%p400) target = $region24
        $region23: #{amp_forward.1} parent=11 // pred_region
          %s404 = ssub.s32 384, 384
          %405 = vsyncadd [#allocation16], %s404
          %s406 = sshll.u32 [#allocation15], 4
          %s407 = int_to_ptr.vmem [resolvable:$true] %s406
          %412 = dma.hbm_to_vmem [thread:$0]  %s3, 384, %s407, [#allocation16], 128, 128, 8
        $region24: #{amp_forward.1} parent=11 // pred_fallthru
          _
        // Predicated region
        $region25: #{amp_forward.1} parent=11 // pred_check
          %p413 = pneg %p163
        $region26: #{amp_forward.1} parent=11 // pred_check_branch
          %415 = sbr.rel (%p413) target = $region28
        $region27: #{amp_forward.1} parent=11 // pred_region
          %s417 = ssub.s32 384, 384
          %418 = vsyncadd [#allocation16], %s417
          %s419 = sshll.u32 [#allocation17], 4
          %s420 = int_to_ptr.vmem [resolvable:$true] %s419
          %425 = dma.hbm_to_vmem [thread:$0]  %s4, 384, %s420, [#allocation16], 128, 128, 8
        $region28: #{amp_forward.1} parent=11 // pred_fallthru
          _
        // Predicated region
        $region29: #{amp_forward.1} parent=11 // pred_check
          %p426 = pneg %p184
        $region30: #{amp_forward.1} parent=11 // pred_check_branch
          %428 = sbr.rel (%p426) target = $region32
        $region31: #{amp_forward.1} parent=11 // pred_region
          %s430 = ssub.s32 640, 640
          %431 = vsyncadd [#allocation19], %s430
          %s432 = sshll.u32 [#allocation18], 4
          %s433 = int_to_ptr.vmem [resolvable:$true] %s432
          %438 = dma.hbm_to_vmem [thread:$0]  %s5, 640, %s433, [#allocation19], 128, 128, 8
        $region32: #{amp_forward.1} parent=11 // pred_fallthru
          _
        // Predicated region
        $region33: #{amp_forward.1} parent=11 // pred_check
          %p439 = pneg %p205
        $region34: #{amp_forward.1} parent=11 // pred_check_branch
          %441 = sbr.rel (%p439) target = $region36
        $region35: #{amp_forward.1} parent=11 // pred_region
          _
        $region36: #{amp_forward.1} parent=11 // pred_fallthru
          _
        // Predicated region
        $region37: #{amp_forward.1} parent=11 // pred_check
          %p442 = pneg %p226
        $region38: #{amp_forward.1} parent=11 // pred_check_branch
          %444 = sbr.rel (%p442) target = $region40
        $region39: #{amp_forward.1} parent=11 // pred_region
          %s446 = ssub.s32 128, 128
          %447 = vsyncadd [#allocation19], %s446
          %s449 = sshll.u32 [#allocation20], 4
          %s450 = int_to_ptr.vmem [resolvable:$true] %s449
          %452 = dma.hbm_to_vmem [thread:$0]  %s7, 128, %s450, [#allocation19]
        $region40: #{amp_forward.1} parent=11 // pred_fallthru
          _
        // Predicated region
        $region41: #{amp_forward.1} parent=11 // pred_check
          %p453 = pneg %p247
        $region42: #{amp_forward.1} parent=11 // pred_check_branch
          %455 = sbr.rel (%p453) target = $region44
        $region43: #{amp_forward.1} parent=11 // pred_region
          _
        $region44: #{amp_forward.1} parent=11 // pred_fallthru
          _
        // Predicated region
        $region45: #{amp_forward.1} parent=11 // pred_check
          %p456 = pneg %p268
        $region46: #{amp_forward.1} parent=11 // pred_check_branch
          %458 = sbr.rel (%p456) target = $region48
        $region47: #{amp_forward.1} parent=11 // pred_region
          %s460 = ssub.s32 256, 256
          %461 = vsyncadd [#allocation22], %s460
          %s462 = sshll.u32 [#allocation21], 4
          %s463 = int_to_ptr.vmem [resolvable:$true] %s462
          %468 = dma.hbm_to_vmem [thread:$0]  %s9, 256, %s463, [#allocation22], 128, 128, 8
        $region48: #{amp_forward.1} parent=11 // pred_fallthru
          _
        // Predicated region
        $region49: #{amp_forward.1} parent=11 // pred_check
          %p469 = pneg %p289
        $region50: #{amp_forward.1} parent=11 // pred_check_branch
          %471 = sbr.rel (%p469) target = $region52
        $region51: #{amp_forward.1} parent=11 // pred_region
          %s473 = ssub.s32 256, 256
          %474 = vsyncadd [#allocation22], %s473
          %s475 = sshll.u32 [#allocation23], 4
          %s476 = int_to_ptr.vmem [resolvable:$true] %s475
          %481 = dma.hbm_to_vmem [thread:$0]  %s10, 256, %s476, [#allocation22], 128, 128, 8
        $region52: #{amp_forward.1} parent=11 // pred_fallthru
          _
        // Predicated region
        $region53: #{amp_forward.1} parent=11 // pred_check
          %p482 = pneg %p310
        $region54: #{amp_forward.1} parent=11 // pred_check_branch
          %484 = sbr.rel (%p482) target = $region56
        $region55: #{amp_forward.1} parent=11 // pred_region
          %s486 = ssub.s32 128, 128
          %487 = vsyncadd [#allocation25], %s486
          %s489 = sshll.u32 [#allocation24], 4
          %s490 = int_to_ptr.vmem [resolvable:$true] %s489
          %492 = dma.hbm_to_vmem [thread:$0]  %s11, 128, %s490, [#allocation25]
        $region56: #{amp_forward.1} parent=11 // pred_fallthru
          _
        // Predicated region
        $region57: #{amp_forward.1} parent=11 // pred_check
          %p493 = pneg %p331
        $region58: #{amp_forward.1} parent=11 // pred_check_branch
          %495 = sbr.rel (%p493) target = $region60
        $region59: #{amp_forward.1} parent=11 // pred_region
          %s497 = ssub.s32 128, 128
          %498 = vsyncadd [#allocation25], %s497
          %s500 = sshll.u32 [#allocation26], 4
          %s501 = int_to_ptr.vmem [resolvable:$true] %s500
          %503 = dma.hbm_to_vmem [thread:$0]  %s12, 128, %s501, [#allocation25]
        $region60: #{amp_forward.1} parent=11 // pred_fallthru
          _
      $region12: #{amp_forward.1} parent=5 // pred_fallthru
        _
      %p504 = scmp.lt.s32.totalorder %s34, 2
      // Predicated region
      $region61: #{amp_forward.1} parent=5 // pred_check
        %p505 = pneg %p504
      $region62: #{amp_forward.1} parent=5 // pred_check_branch
        %507 = sbr.rel (%p505) target = $region64
      $region63: #{amp_forward.1} parent=5 // pred_region
        // Predicated region
        $region65: #{amp_forward.1} parent=63 // pred_check
          %p508 = pneg %p68
        $region66: #{amp_forward.1} parent=63 // pred_check_branch
          %510 = sbr.rel (%p508) target = $region68
        $region67: #{amp_forward.1} parent=63 // pred_region
          %s511 = sand.u32 %s58, 1
          %s512 = scalar_lea.sflag [#allocation10], %s511
          %s513 = sand.u32 %s58, 1
          %s514 = smul.addr %s513, 32
          %s515 = scalar_lea.vmem [#allocation9], %s514
          %s516 = smul.u32 4, %s42
          %s518 = ssub.s32 512, 512
          %519 = vsyncadd %s512, %s518
          %s520 = sadd.s32 %s41, %s516
          %s521 = smul.addr %s520, 128
          %s522 = scalar_lea.hbm %s0, %s521
          %s523 = sshll.u32 %s515, 4
          %s524 = int_to_ptr.vmem [resolvable:$true] %s523
          %529 = dma.hbm_to_vmem [thread:$0]  %s522, 512, %s524, %s512, 128, 128, 8
        $region68: #{amp_forward.1} parent=63 // pred_fallthru
          _
      $region64: #{amp_forward.1} parent=5 // pred_fallthru
        _
      %p530 = scmp.le.s32.totalorder 1, %s34
      %p531 = scmp.lt.s32.totalorder %s34, 3
      %p532 = pnand %p530, %p531
      %p533 = pneg %p532
      // Predicated region
      $region69: #{amp_forward.1} parent=5 // pred_check
        _
      $region70: #{amp_forward.1} parent=5 // pred_check_branch
        %535 = sbr.rel (%p532) target = $region72
      $region71: #{amp_forward.1} parent=5 // pred_region
        %s536 = ssub.s32 %s34, 1
        %s537 = sand.u32 %s61, 1
        %s538 = scalar_lea.sflag [#allocation10], %s537
        %s539 = sand.u32 %s61, 1
        %s540 = smul.addr %s539, 32
        %s541 = scalar_lea.vmem [#allocation9], %s540
        // Predicated region
        $region73: #{amp_forward.1} parent=71 // pred_check
          %p542 = pneg %p74
        $region74: #{amp_forward.1} parent=71 // pred_check_branch
          %544 = sbr.rel (%p542) target = $region76
        $region75: #{amp_forward.1} parent=71 // pred_region
          %545 = dma.done %s538, 512
        $region76: #{amp_forward.1} parent=71 // pred_fallthru
          _
        // Predicated region
        $region77: #{amp_forward.1} parent=71 // pred_check
          %p546 = pneg %p100
        $region78: #{amp_forward.1} parent=71 // pred_check_branch
          %548 = sbr.rel (%p546) target = $region80
        $region79: #{amp_forward.1} parent=71 // pred_region
          %549 = dma.done [#allocation13], 64
        $region80: #{amp_forward.1} parent=71 // pred_fallthru
          _
        // Predicated region
        $region81: #{amp_forward.1} parent=71 // pred_check
          %p550 = pneg %p121
        $region82: #{amp_forward.1} parent=71 // pred_check_branch
          %552 = sbr.rel (%p550) target = $region84
        $region83: #{amp_forward.1} parent=71 // pred_region
          %553 = dma.done [#allocation13], 2944
        $region84: #{amp_forward.1} parent=71 // pred_fallthru
          _
        // Predicated region
        $region85: #{amp_forward.1} parent=71 // pred_check
          %p554 = pneg %p142
        $region86: #{amp_forward.1} parent=71 // pred_check_branch
          %556 = sbr.rel (%p554) target = $region88
        $region87: #{amp_forward.1} parent=71 // pred_region
          %557 = dma.done [#allocation16], 384
        $region88: #{amp_forward.1} parent=71 // pred_fallthru
          _
        // Predicated region
        $region89: #{amp_forward.1} parent=71 // pred_check
          %p558 = pneg %p163
        $region90: #{amp_forward.1} parent=71 // pred_check_branch
          %560 = sbr.rel (%p558) target = $region92
        $region91: #{amp_forward.1} parent=71 // pred_region
          %561 = dma.done [#allocation16], 384
        $region92: #{amp_forward.1} parent=71 // pred_fallthru
          _
        // Predicated region
        $region93: #{amp_forward.1} parent=71 // pred_check
          %p562 = pneg %p184
        $region94: #{amp_forward.1} parent=71 // pred_check_branch
          %564 = sbr.rel (%p562) target = $region96
        $region95: #{amp_forward.1} parent=71 // pred_region
          %565 = dma.done [#allocation19], 640
        $region96: #{amp_forward.1} parent=71 // pred_fallthru
          _
        // Predicated region
        $region97: #{amp_forward.1} parent=71 // pred_check
          %p566 = pneg %p226
        $region98: #{amp_forward.1} parent=71 // pred_check_branch
          %568 = sbr.rel (%p566) target = $region100
        $region99: #{amp_forward.1} parent=71 // pred_region
          %569 = dma.done [#allocation19], 128
        $region100: #{amp_forward.1} parent=71 // pred_fallthru
          _
        // Predicated region
        $region101: #{amp_forward.1} parent=71 // pred_check
          %p570 = pneg %p268
        $region102: #{amp_forward.1} parent=71 // pred_check_branch
          %572 = sbr.rel (%p570) target = $region104
        $region103: #{amp_forward.1} parent=71 // pred_region
          %573 = dma.done [#allocation22], 256
        $region104: #{amp_forward.1} parent=71 // pred_fallthru
          _
        // Predicated region
        $region105: #{amp_forward.1} parent=71 // pred_check
          %p574 = pneg %p289
        $region106: #{amp_forward.1} parent=71 // pred_check_branch
          %576 = sbr.rel (%p574) target = $region108
        $region107: #{amp_forward.1} parent=71 // pred_region
          %577 = dma.done [#allocation22], 256
        $region108: #{amp_forward.1} parent=71 // pred_fallthru
          _
        // Predicated region
        $region109: #{amp_forward.1} parent=71 // pred_check
          %p578 = pneg %p310
        $region110: #{amp_forward.1} parent=71 // pred_check_branch
          %580 = sbr.rel (%p578) target = $region112
        $region111: #{amp_forward.1} parent=71 // pred_region
          %581 = dma.done [#allocation25], 128
        $region112: #{amp_forward.1} parent=71 // pred_fallthru
          _
        // Predicated region
        $region113: #{amp_forward.1} parent=71 // pred_check
          %p582 = pneg %p331
        $region114: #{amp_forward.1} parent=71 // pred_check_branch
          %584 = sbr.rel (%p582) target = $region116
        $region115: #{amp_forward.1} parent=71 // pred_region
          %585 = dma.done [#allocation25], 128
        $region116: #{amp_forward.1} parent=71 // pred_fallthru
          _
        %s586 = sand.u32 %s61, 1
        %s587 = scalar_lea.sflag [#allocation10], %s586
        %s588 = sand.u32 %s61, 1
        %s589 = smul.addr %s588, 32
        %s590 = scalar_lea.vmem [#allocation9], %s589
        %p591 = pneg %p74
        %p592 = pneg %p71
        %p593 = pneg %p100
        %p594 = pneg %p97
        %p595 = pneg %p121
        %p596 = pneg %p118
        %p597 = pneg %p142
        %p598 = pneg %p139
        %p599 = pneg %p163
        %p600 = pneg %p160
        %p601 = pneg %p184
        %p602 = pneg %p181
        %p603 = pneg %p205
        %p604 = pneg %p202
        %p605 = pneg %p226
        %p606 = pneg %p223
        %p607 = pneg %p247
        %p608 = pneg %p244
        %p609 = pneg %p268
        %p610 = pneg %p265
        %p611 = pneg %p289
        %p612 = pneg %p286
        %p613 = pneg %p310
        %p614 = pneg %p307
        %p615 = pneg %p331
        %p616 = pneg %p328
        %p617 = pneg %p359
        %p618 = pneg %p356
        %s619 = sand.u32 %s346, 1
        %s620 = scalar_lea.sflag [#allocation11], %s619
        %s621 = sand.u32 %s346, 1
        %s622 = smul.addr %s621, 32
        %s623 = scalar_lea.vmem [#allocation27], %s622
        %s624 = smul.u32 4, %s44
        %s625 = smul.u32 4, %s44
        %p626 = scmp.eq.s32.totalorder %s44, 0
        // Predicated region
        $region117: #{amp_forward.1} parent=71 // pred_check
          %p627 = pneg %p626
        $region118: #{amp_forward.1} parent=71 // pred_check_branch
          %629 = sbr.rel (%p627) target = $region120
        $region119: #{amp_forward.1} parent=71 // pred_region
          %v630 = vld [vmem:[#allocation12] sm:$0x7]
          %v631 = vld [vmem:[#allocation21] sm:$0xff]
          %v632 = vld [vmem:[#allocation21 + $0x8] sm:$0xff]
          %v633 = vld [vmem:[#allocation23] sm:$0xff]
          %v634 = vld [vmem:[#allocation23 + $0x8] sm:$0xff]
          %636 = vset.pattern.permute.xlu0 0
          %637 = vperm.xlu0 %636, %v633
          %v638 = vpop.permute.xlu0 %637
          %641 = vset.pattern.permute.xlu0 0
          %642 = vperm.xlu0 %641, %v634
          %v643 = vpop.permute.xlu0 %642
          %vm645 = vcmask 23552
          %v647 = vsel %vm645, %v631, 0
          %v650 = vsel %vm645, %v632, 0
          %vm652 = vcmask 1042432
          %v654 = vsel %vm652, %v630, 0
          %656 = vmatprep.subr.mxu0 0.0
          %657 = vmatpush1.msra.mxu0 %v654
          %658 = vmatprep.subr.mxu0 0.0
          %659 = vmatpush1.msra.mxu0 0.0
          %660 = vmatprep.subr.mxu0 0.0
          %661 = vmatpush1.msra.mxu0 0.0
          %662 = vmatprep.subr.mxu0 0.0
          %663 = vmatpush1.msra.mxu0 0.0
          %664 = vmatprep.subr.mxu0 0.0
          %665 = vmatpush1.msra.mxu0 0.0
          %666 = vmatprep.subr.mxu0 0.0
          %667 = vmatpush1.msra.mxu0 0.0
          %668 = vmatprep.subr.mxu0 0.0
          %669 = vmatpush1.msra.mxu0 0.0
          %670 = vmatprep.subr.mxu0 0.0
          %671 = vmatpush1.msra.mxu0 0.0
          %672 = vmatprep.subr.mxu0 0.0
          %673 = vmatpush1.msra.mxu0 0.0
          %674 = vmatprep.subr.mxu0 0.0
          %675 = vmatpush1.msra.mxu0 0.0
          %676 = vmatprep.subr.mxu0 0.0
          %677 = vmatpush1.msra.mxu0 0.0
          %678 = vmatprep.subr.mxu0 0.0
          %679 = vmatpush1.msra.mxu0 0.0
          %680 = vmatprep.subr.mxu0 0.0
          %681 = vmatpush1.msra.mxu0 0.0
          %682 = vmatprep.subr.mxu0 0.0
          %683 = vmatpush1.msra.mxu0 0.0
          %684 = vmatprep.subr.mxu0 0.0
          %685 = vmatpush1.msra.mxu0 0.0
          %686 = vmatprep.subr.mxu0 0.0
          %687 = vmatpush1.msra.mxu0 0.0
          %688 = vmatprep.subr.mxu0 0.0
          %689 = vmatpush1.msra.mxu0 0.0
          %690 = vmatprep.subr.mxu0 0.0
          %691 = vmatpush1.msra.mxu0 0.0
          %692 = vmatprep.subr.mxu0 0.0
          %693 = vmatpush1.msra.mxu0 0.0
          %694 = vmatprep.subr.mxu0 0.0
          %695 = vmatpush1.msra.mxu0 0.0
          %696 = vmatprep.subr.mxu0 0.0
          %697 = vmatpush1.msra.mxu0 0.0
          %698 = vmatprep.subr.mxu0 0.0
          %699 = vmatpush1.msra.mxu0 0.0
          %700 = vmatprep.subr.mxu0 0.0
          %701 = vmatpush1.msra.mxu0 0.0
          %702 = vmatprep.subr.mxu0 0.0
          %703 = vmatpush1.msra.mxu0 0.0
          %704 = vmatprep.subr.mxu0 0.0
          %705 = vmatpush1.msra.mxu0 0.0
          %706 = vmatprep.subr.mxu0 0.0
          %707 = vmatpush1.msra.mxu0 0.0
          %708 = vmatprep.subr.mxu0 0.0
          %709 = vmatpush1.msra.mxu0 0.0
          %710 = vmatprep.subr.mxu0 0.0
          %711 = vmatpush1.msra.mxu0 0.0
          %712 = vmatprep.subr.mxu0 0.0
          %713 = vmatpush1.msra.mxu0 0.0
          %714 = vmatprep.subr.mxu0 0.0
          %715 = vmatpush1.msra.mxu0 0.0
          %716 = vmatprep.subr.mxu0 0.0
          %717 = vmatpush1.msra.mxu0 0.0
          %718 = vmatprep.subr.mxu0 0.0
          %719 = vmatpush1.msra.mxu0 0.0
          %720 = vmatprep.mubr.f32.mxu0 0.0
          %721 = vmatmul.mubr.f32.gmra.mrb[0].mxu0 %v647
          %v722 = vpop.f32.mrb[0].mxu0
          %v723 = vadd.f32 %v638, %v722
          %v724 = vpop.f32.mrb[0].mxu0
          %725 = vmatprep.mubr.f32.mxu0 0.0
          %726 = vmatmul.mubr.f32.gmra.mrb[0].mxu0 %v650
          %v727 = vpop.f32.mrb[0].mxu0
          %v728 = vadd.f32 %v643, %v727
          %v729 = vpop.f32.mrb[0].mxu0
          %730 = vdwg.mxu0
          %v731 = vtanh.pop %v723
          %v732 = vtanh.pop %v728
          %v733 = vld [vmem:[#allocation24] sm:$0x1f]
          %v734 = vld [vmem:[#allocation26] sm:$0x1f]
          %736 = vset.pattern.permute.xlu0 0
          %737 = vperm.xlu0 %736, %v734
          %v738 = vpop.permute.xlu0 %737
          %vm740 = vcmask 130048
          %v742 = vsel %vm740, %v733, 0
          %744 = vmatprep.subr.mxu0 0.0
          %745 = vmatpush1.msra.mxu0 %v731
          %746 = vmatprep.subr.mxu0 0.0
          %747 = vmatpush1.msra.mxu0 %v732
          %748 = vmatprep.subr.mxu0 0.0
          %749 = vmatpush1.msra.mxu0 0.0
          %750 = vmatprep.subr.mxu0 0.0
          %751 = vmatpush1.msra.mxu0 0.0
          %752 = vmatprep.subr.mxu0 0.0
          %753 = vmatpush1.msra.mxu0 0.0
          %754 = vmatprep.subr.mxu0 0.0
          %755 = vmatpush1.msra.mxu0 0.0
          %756 = vmatprep.subr.mxu0 0.0
          %757 = vmatpush1.msra.mxu0 0.0
          %758 = vmatprep.subr.mxu0 0.0
          %759 = vmatpush1.msra.mxu0 0.0
          %760 = vmatprep.subr.mxu0 0.0
          %761 = vmatpush1.msra.mxu0 0.0
          %762 = vmatprep.subr.mxu0 0.0
          %763 = vmatpush1.msra.mxu0 0.0
          %764 = vmatprep.subr.mxu0 0.0
          %765 = vmatpush1.msra.mxu0 0.0
          %766 = vmatprep.subr.mxu0 0.0
          %767 = vmatpush1.msra.mxu0 0.0
          %768 = vmatprep.subr.mxu0 0.0
          %769 = vmatpush1.msra.mxu0 0.0
          %770 = vmatprep.subr.mxu0 0.0
          %771 = vmatpush1.msra.mxu0 0.0
          %772 = vmatprep.subr.mxu0 0.0
          %773 = vmatpush1.msra.mxu0 0.0
          %774 = vmatprep.subr.mxu0 0.0
          %775 = vmatpush1.msra.mxu0 0.0
          %776 = vmatprep.subr.mxu0 0.0
          %777 = vmatpush1.msra.mxu0 0.0
          %778 = vmatprep.subr.mxu0 0.0
          %779 = vmatpush1.msra.mxu0 0.0
          %780 = vmatprep.subr.mxu0 0.0
          %781 = vmatpush1.msra.mxu0 0.0
          %782 = vmatprep.subr.mxu0 0.0
          %783 = vmatpush1.msra.mxu0 0.0
          %784 = vmatprep.subr.mxu0 0.0
          %785 = vmatpush1.msra.mxu0 0.0
          %786 = vmatprep.subr.mxu0 0.0
          %787 = vmatpush1.msra.mxu0 0.0
          %788 = vmatprep.subr.mxu0 0.0
          %789 = vmatpush1.msra.mxu0 0.0
          %790 = vmatprep.subr.mxu0 0.0
          %791 = vmatpush1.msra.mxu0 0.0
          %792 = vmatprep.subr.mxu0 0.0
          %793 = vmatpush1.msra.mxu0 0.0
          %794 = vmatprep.subr.mxu0 0.0
          %795 = vmatpush1.msra.mxu0 0.0
          %796 = vmatprep.subr.mxu0 0.0
          %797 = vmatpush1.msra.mxu0 0.0
          %798 = vmatprep.subr.mxu0 0.0
          %799 = vmatpush1.msra.mxu0 0.0
          %800 = vmatprep.subr.mxu0 0.0
          %801 = vmatpush1.msra.mxu0 0.0
          %802 = vmatprep.subr.mxu0 0.0
          %803 = vmatpush1.msra.mxu0 0.0
          %804 = vmatprep.subr.mxu0 0.0
          %805 = vmatpush1.msra.mxu0 0.0
          %806 = vmatprep.subr.mxu0 0.0
          %807 = vmatpush1.msra.mxu0 0.0
          %808 = vmatprep.mubr.f32.mxu0 0.0
          %809 = vmatmul.mubr.f32.gmra.mrb[0].mxu0 %v742
          %v810 = vpop.f32.mrb[0].mxu0
          %v811 = vadd.f32 %v738, %v810
          %v812 = vpop.f32.mrb[0].mxu0
          %813 = vdwg.mxu0
          %v814 = vtanh.pop %v811
          %v815 = vmul.f32 %v814, 0.9
          %v816 = vadd.f32 %v815, 1.0
          %v817 = vmul.f32 %v816, 0.95
          %v819 = vrot.slane %v814, 7
          %v821 = vmul.f32 %v817, %v819
          %822 = vst [vmem:[#allocation2] sm:$0x7] %v811
          %823 = vst [vmem:[#allocation2 - $0x1] sm:$0x10] %v821
          %824 = vst [vmem:[#allocation2] sm:$0x10] %v815
          %825 = vst [vmem:[#allocation3] sm:$0xff] 0.0
          %826 = vst [vmem:[#allocation3 + $0x8] sm:$0xff] 0.0
          %827 = vst [vmem:[#allocation3 + $0x10] sm:$0xff] 0.0
          %828 = vst [vmem:[#allocation3 + $0x18] sm:$0xff] 0.0
          %829 = vst [vmem:[#allocation3 + $0x20] sm:$0xff] 0.0
          %830 = vst [vmem:[#allocation4] sm:$0xff] 0.0
          %831 = vst [vmem:[#allocation4 + $0x8] sm:$0xff] 0.0
          %832 = vst [vmem:[#allocation4 + $0x10] sm:$0xff] 0.0
          %833 = vst [vmem:[#allocation4 + $0x18] sm:$0xff] 0.0
          %834 = vst [vmem:[#allocation4 + $0x20] sm:$0xff] 0.0
          %835 = vst [vmem:[#allocation5] sm:$0xff] 0.0
          %836 = vst [vmem:[#allocation6] sm:$0xf] 0.0
        $region120: #{amp_forward.1} parent=71 // pred_fallthru
          _
        %v837 = vld [vmem:[#allocation2] sm:$0x1f]
        %v838 = vld [vmem:[#allocation14] sm:$0xff]
        %v839 = vld [vmem:[#allocation14 + $0x8] sm:$0xff]
        %v840 = vld [vmem:[#allocation14 + $0x10] sm:$0xff]
        %v841 = vld [vmem:[#allocation14 + $0x18] sm:$0xff]
        %v842 = vld [vmem:[#allocation14 + $0x20] sm:$0xff]
        %v843 = vld [vmem:[#allocation14 + $0x28] sm:$0xff]
        %v844 = vld [vmem:[#allocation14 + $0x30] sm:$0xff]
        %v845 = vld [vmem:[#allocation14 + $0x38] sm:$0xff]
        %v846 = vld [vmem:[#allocation14 + $0x40] sm:$0xff]
        %v847 = vld [vmem:[#allocation14 + $0x48] sm:$0xff]
        %v848 = vld [vmem:[#allocation14 + $0x50] sm:$0xff]
        %v849 = vld [vmem:[#allocation14 + $0x58] sm:$0xff]
        %v850 = vld [vmem:[#allocation14 + $0x60] sm:$0xff]
        %v851 = vld [vmem:[#allocation14 + $0x68] sm:$0xff]
        %v852 = vld [vmem:[#allocation14 + $0x70] sm:$0xff]
        %v853 = vld [vmem:[#allocation14 + $0x78] sm:$0xff]
        %v854 = vld [vmem:[#allocation14 + $0x80] sm:$0xff]
        %v855 = vld [vmem:[#allocation14 + $0x88] sm:$0xff]
        %v856 = vld [vmem:[#allocation14 + $0x90] sm:$0xff]
        %v857 = vld [vmem:[#allocation14 + $0x98] sm:$0xff]
        %v858 = vld [vmem:[#allocation14 + $0xa0] sm:$0xff]
        %v859 = vld [vmem:[#allocation14 + $0xa8] sm:$0xff]
        %v860 = vld [vmem:[#allocation14 + $0xb0] sm:$0xff]
        %v861 = vld [vmem:[#allocation15] sm:$0xff]
        %v862 = vld [vmem:[#allocation15 + $0x8] sm:$0xff]
        %v863 = vld [vmem:[#allocation15 + $0x10] sm:$0xff]
        %865 = vset.pattern.permute.xlu0 0
        %866 = vperm.xlu0 %865, %v861
        %v867 = vpop.permute.xlu0 %866
        %870 = vset.pattern.permute.xlu0 0
        %871 = vperm.xlu0 %870, %v862
        %v872 = vpop.permute.xlu0 %871
        %875 = vset.pattern.permute.xlu0 0
        %876 = vperm.xlu0 %875, %v863
        %v877 = vpop.permute.xlu0 %876
        %v879 = vld [vmem:[#allocation17] sm:$0xff]
        %v880 = vld [vmem:[#allocation17 + $0x8] sm:$0xff]
        %v881 = vld [vmem:[#allocation17 + $0x10] sm:$0xff]
        %883 = vset.pattern.permute.xlu0 0
        %884 = vperm.xlu0 %883, %v879
        %v885 = vpop.permute.xlu0 %884
        %888 = vset.pattern.permute.xlu0 0
        %889 = vperm.xlu0 %888, %v880
        %v890 = vpop.permute.xlu0 %889
        %893 = vset.pattern.permute.xlu0 0
        %894 = vperm.xlu0 %893, %v881
        %v895 = vpop.permute.xlu0 %894
        %v897 = vld [vmem:[#allocation18] sm:$0xff]
        %v898 = vld [vmem:[#allocation18 + $0x8] sm:$0xff]
        %v899 = vld [vmem:[#allocation18 + $0x10] sm:$0xff]
        %v900 = vld [vmem:[#allocation18 + $0x18] sm:$0xff]
        %v901 = vld [vmem:[#allocation18 + $0x20] sm:$0xff]
        %903 = vset.pattern.permute.xlu0 0
        %904 = vperm.xlu0 %903, %v897
        %v905 = vpop.permute.xlu0 %904
        %908 = vset.pattern.permute.xlu0 0
        %909 = vperm.xlu0 %908, %v898
        %v910 = vpop.permute.xlu0 %909
        %913 = vset.pattern.permute.xlu0 0
        %914 = vperm.xlu0 %913, %v899
        %v915 = vpop.permute.xlu0 %914
        %918 = vset.pattern.permute.xlu0 0
        %919 = vperm.xlu0 %918, %v900
        %v920 = vpop.permute.xlu0 %919
        %923 = vset.pattern.permute.xlu0 0
        %924 = vperm.xlu0 %923, %v901
        %v925 = vpop.permute.xlu0 %924
        %v927 = vld [vmem:[#allocation7] sm:$0x1]
        %929 = vset.pattern.permute.xlu0 0
        %930 = vperm.xlu0 %929, %v927
        %v931 = vpop.permute.xlu0 %930
        %v933 = vlaneseq
        %v934 = vshrl.u32 %v933, 7
        %v935 = vsub.s32 0, %v934
        %v936 = vrot.slane %v931, %v935
        %v937 = vld [vmem:[#allocation20] sm:$0xff]
        %939 = vset.pattern.permute.xlu0 0
        %940 = vperm.xlu0 %939, %v937
        %v941 = vpop.permute.xlu0 %940
        %v943 = vld [vmem:[#allocation8] sm:$0x1]
        %945 = vset.pattern.permute.xlu0 0
        %946 = vperm.xlu0 %945, %v943
        %v947 = vpop.permute.xlu0 %946
        %v949 = vlaneseq
        %v950 = vshrl.u32 %v949, 7
        %v951 = vsub.s32 0, %v950
        %v952 = vrot.slane %v947, %v951
        %v953 = vld [vmem:[#allocation6] sm:$0xf]
        %v954 = vld [vmem:[#allocation3] sm:$0xff]
        %v955 = vld [vmem:[#allocation3 + $0x8] sm:$0xff]
        %v956 = vld [vmem:[#allocation3 + $0x10] sm:$0xff]
        %v957 = vld [vmem:[#allocation3 + $0x18] sm:$0xff]
        %v958 = vld [vmem:[#allocation3 + $0x20] sm:$0xff]
        %v959 = vld [vmem:[#allocation4] sm:$0xff]
        %v960 = vld [vmem:[#allocation4 + $0x8] sm:$0xff]
        %v961 = vld [vmem:[#allocation4 + $0x10] sm:$0xff]
        %v962 = vld [vmem:[#allocation4 + $0x18] sm:$0xff]
        %v963 = vld [vmem:[#allocation4 + $0x20] sm:$0xff]
        %v964 = vld [vmem:[#allocation5] sm:$0xff]
        %v966 = vrot.slane %v953, 1
        %v968 = vrot.slane %v953, 2
        %v970 = vrot.slane %v953, 3
        loop: start=0, step=1, limit=4
        $region121: #{amp_forward.1} parent=71 // loop_pre_header
          _
        $region122: #{amp_forward.1} parent=71 // loop_header
          %s973 = sphi 0, %s977
          %p974 = scmp.ge.s32.totalorder %s973, 4
          %v978 = vphi %v954, %v3709
          %v979 = vphi %v955, %v3710
          %v980 = vphi %v956, %v3711
          %v981 = vphi %v957, %v3712
          %v982 = vphi %v958, %v3713
          %v983 = vphi %v959, %v3699
          %v984 = vphi %v960, %v3700
          %v985 = vphi %v961, %v3701
          %v986 = vphi %v962, %v3702
          %v987 = vphi %v963, %v3703
          %v988 = vphi %v964, %v3785
          %v989 = vphi %v953, %v3730
          %v990 = vphi %v966, %v3389
          %v991 = vphi %v968, %v3761
          %v992 = vphi %v970, %v3420
        $region123: #{amp_forward.1} parent=71 // loop_header_branch
          %976 = sbr.rel (%p974) target = $region127
        $region124: #{amp_forward.1} parent=71 // loop_body
          %s993 = smul.u32 %s973, 8
          %s994 = scalar_lea.vmem %s541, %s993 [#allocation9]
          %v995 = vld [vmem:[%s994] sm:$0x1]
          %vm996 = vcmask 1040384
          %v997 = vsel %vm996, %v995, 1.0
          %vm998 = vcmask 1041408
          %v999 = vsel %vm998, %v997, 0.0
          %vm1000 = vcmask 457728
          %v1002 = vsel %vm1000, %v838, 0
          %v1005 = vsel %vm1000, %v839, 0
          %v1008 = vsel %vm1000, %v840, 0
          %v1011 = vsel %vm1000, %v841, 0
          %v1014 = vsel %vm1000, %v842, 0
          %v1017 = vsel %vm1000, %v843, 0
          %v1020 = vsel %vm1000, %v844, 0
          %v1023 = vsel %vm1000, %v845, 0
          %v1026 = vsel %vm1000, %v846, 0
          %v1029 = vsel %vm1000, %v847, 0
          %v1032 = vsel %vm1000, %v848, 0
          %v1035 = vsel %vm1000, %v849, 0
          %v1038 = vsel %vm1000, %v850, 0
          %v1041 = vsel %vm1000, %v851, 0
          %v1044 = vsel %vm1000, %v852, 0
          %v1047 = vsel %vm1000, %v853, 0
          %v1050 = vsel %vm1000, %v854, 0
          %v1053 = vsel %vm1000, %v855, 0
          %v1056 = vsel %vm1000, %v856, 0
          %v1059 = vsel %vm1000, %v857, 0
          %v1062 = vsel %vm1000, %v858, 0
          %v1065 = vsel %vm1000, %v859, 0
          %v1068 = vsel %vm1000, %v860, 0
          %1070 = vmatprep.subr.mxu0 0.0
          %1071 = vmatpush1.msra.mxu0 %v978
          %1072 = vmatprep.subr.mxu0 0.0
          %1073 = vmatpush1.msra.mxu0 %v979
          %1074 = vmatprep.subr.mxu0 0.0
          %1075 = vmatpush1.msra.mxu0 %v980
          %1076 = vmatprep.subr.mxu0 0.0
          %1077 = vmatpush1.msra.mxu0 %v981
          %1078 = vmatprep.subr.mxu0 0.0
          %1079 = vmatpush1.msra.mxu0 %v982
          %1080 = vmatprep.subr.mxu0 0.0
          %1081 = vmatpush1.msra.mxu0 %v988
          %1082 = vmatprep.subr.mxu0 0.0
          %1083 = vmatpush1.msra.mxu0 %v999
          %1084 = vmatprep.subr.mxu0 0.0
          %1085 = vmatpush1.msra.mxu0 0.0
          %1086 = vmatprep.subr.mxu0 0.0
          %1087 = vmatpush1.msra.mxu0 0.0
          %1088 = vmatprep.subr.mxu0 0.0
          %1089 = vmatpush1.msra.mxu0 0.0
          %1090 = vmatprep.subr.mxu0 0.0
          %1091 = vmatpush1.msra.mxu0 0.0
          %1092 = vmatprep.subr.mxu0 0.0
          %1093 = vmatpush1.msra.mxu0 0.0
          %1094 = vmatprep.subr.mxu0 0.0
          %1095 = vmatpush1.msra.mxu0 0.0
          %1096 = vmatprep.subr.mxu0 0.0
          %1097 = vmatpush1.msra.mxu0 0.0
          %1098 = vmatprep.subr.mxu0 0.0
          %1099 = vmatpush1.msra.mxu0 0.0
          %1100 = vmatprep.subr.mxu0 0.0
          %1101 = vmatpush1.msra.mxu0 0.0
          %1102 = vmatprep.subr.mxu0 0.0
          %1103 = vmatpush1.msra.mxu0 0.0
          %1104 = vmatprep.subr.mxu0 0.0
          %1105 = vmatpush1.msra.mxu0 0.0
          %1106 = vmatprep.subr.mxu0 0.0
          %1107 = vmatpush1.msra.mxu0 0.0
          %1108 = vmatprep.subr.mxu0 0.0
          %1109 = vmatpush1.msra.mxu0 0.0
          %1110 = vmatprep.subr.mxu0 0.0
          %1111 = vmatpush1.msra.mxu0 0.0
          %1112 = vmatprep.subr.mxu0 0.0
          %1113 = vmatpush1.msra.mxu0 0.0
          %1114 = vmatprep.subr.mxu0 0.0
          %1115 = vmatpush1.msra.mxu0 0.0
          %1116 = vmatprep.subr.mxu0 0.0
          %1117 = vmatpush1.msra.mxu0 0.0
          %1118 = vmatprep.subr.mxu0 0.0
          %1119 = vmatpush1.msra.mxu0 0.0
          %1120 = vmatprep.subr.mxu0 0.0
          %1121 = vmatpush1.msra.mxu0 0.0
          %1122 = vmatprep.subr.mxu0 0.0
          %1123 = vmatpush1.msra.mxu0 0.0
          %1124 = vmatprep.subr.mxu0 0.0
          %1125 = vmatpush1.msra.mxu0 0.0
          %1126 = vmatprep.subr.mxu0 0.0
          %1127 = vmatpush1.msra.mxu0 0.0
          %1128 = vmatprep.subr.mxu0 0.0
          %1129 = vmatpush1.msra.mxu0 0.0
          %1130 = vmatprep.subr.mxu0 0.0
          %1131 = vmatpush1.msra.mxu0 0.0
          %1132 = vmatprep.subr.mxu0 0.0
          %1133 = vmatpush1.msra.mxu0 0.0
          %1134 = vmatprep.mubr.f32.mxu0 0.0
          %1135 = vmatmul.mubr.f32.gmra.mrb[0].mxu0 %v1002
          %v1136 = vpop.f32.mrb[0].mxu0
          %v1137 = vadd.f32 0.0, %v1136
          %v1138 = vpop.f32.mrb[0].mxu0
          %1139 = vmatprep.mubr.f32.mxu0 0.0
          %1140 = vmatmul.mubr.f32.gmra.mrb[0].mxu0 %v1005
          %v1141 = vpop.f32.mrb[0].mxu0
          %v1142 = vadd.f32 0.0, %v1141
          %v1143 = vpop.f32.mrb[0].mxu0
          %1144 = vmatprep.mubr.f32.mxu0 0.0
          %1145 = vmatmul.mubr.f32.gmra.mrb[0].mxu0 %v1008
          %v1146 = vpop.f32.mrb[0].mxu0
          %v1147 = vadd.f32 0.0, %v1146
          %v1148 = vpop.f32.mrb[0].mxu0
          %1149 = vmatprep.mubr.f32.mxu0 0.0
          %1150 = vmatmul.mubr.f32.gmra.mrb[0].mxu0 %v1011
          %v1151 = vpop.f32.mrb[0].mxu0
          %v1152 = vadd.f32 0.0, %v1151
          %v1153 = vpop.f32.mrb[0].mxu0
          %1154 = vmatprep.mubr.f32.mxu0 0.0
          %1155 = vmatmul.mubr.f32.gmra.mrb[0].mxu0 %v1014
          %v1156 = vpop.f32.mrb[0].mxu0
          %v1157 = vadd.f32 0.0, %v1156
          %v1158 = vpop.f32.mrb[0].mxu0
          %1159 = vmatprep.mubr.f32.mxu0 0.0
          %1160 = vmatmul.mubr.f32.gmra.mrb[0].mxu0 %v1017
          %v1161 = vpop.f32.mrb[0].mxu0
          %v1162 = vadd.f32 0.0, %v1161
          %v1163 = vpop.f32.mrb[0].mxu0
          %1164 = vmatprep.mubr.f32.mxu0 0.0
          %1165 = vmatmul.mubr.f32.gmra.mrb[0].mxu0 %v1020
          %v1166 = vpop.f32.mrb[0].mxu0
          %v1167 = vadd.f32 0.0, %v1166
          %v1168 = vpop.f32.mrb[0].mxu0
          %1169 = vmatprep.mubr.f32.mxu0 0.0
          %1170 = vmatmul.mubr.f32.gmra.mrb[0].mxu0 %v1023
          %v1171 = vpop.f32.mrb[0].mxu0
          %v1172 = vadd.f32 0.0, %v1171
          %v1173 = vpop.f32.mrb[0].mxu0
          %1174 = vmatprep.mubr.f32.mxu0 0.0
          %1175 = vmatmul.mubr.f32.gmra.mrb[0].mxu0 %v1026
          %v1176 = vpop.f32.mrb[0].mxu0
          %v1177 = vadd.f32 0.0, %v1176
          %v1178 = vpop.f32.mrb[0].mxu0
          %1179 = vmatprep.mubr.f32.mxu0 0.0
          %1180 = vmatmul.mubr.f32.gmra.mrb[0].mxu0 %v1029
          %v1181 = vpop.f32.mrb[0].mxu0
          %v1182 = vadd.f32 0.0, %v1181
          %v1183 = vpop.f32.mrb[0].mxu0
          %1184 = vmatprep.mubr.f32.mxu0 0.0
          %1185 = vmatmul.mubr.f32.gmra.mrb[0].mxu0 %v1032
          %v1186 = vpop.f32.mrb[0].mxu0
          %v1187 = vadd.f32 0.0, %v1186
          %v1188 = vpop.f32.mrb[0].mxu0
          %1189 = vmatprep.mubr.f32.mxu0 0.0
          %1190 = vmatmul.mubr.f32.gmra.mrb[0].mxu0 %v1035
          %v1191 = vpop.f32.mrb[0].mxu0
          %v1192 = vadd.f32 0.0, %v1191
          %v1193 = vpop.f32.mrb[0].mxu0
          %1194 = vmatprep.mubr.f32.mxu0 0.0
          %1195 = vmatmul.mubr.f32.gmra.mrb[0].mxu0 %v1038
          %v1196 = vpop.f32.mrb[0].mxu0
          %v1197 = vadd.f32 0.0, %v1196
          %v1198 = vpop.f32.mrb[0].mxu0
          %1199 = vmatprep.mubr.f32.mxu0 0.0
          %1200 = vmatmul.mubr.f32.gmra.mrb[0].mxu0 %v1041
          %v1201 = vpop.f32.mrb[0].mxu0
          %v1202 = vadd.f32 0.0, %v1201
          %v1203 = vpop.f32.mrb[0].mxu0
          %1204 = vmatprep.mubr.f32.mxu0 0.0
          %1205 = vmatmul.mubr.f32.gmra.mrb[0].mxu0 %v1044
          %v1206 = vpop.f32.mrb[0].mxu0
          %v1207 = vadd.f32 0.0, %v1206
          %v1208 = vpop.f32.mrb[0].mxu0
          %1209 = vmatprep.mubr.f32.mxu0 0.0
          %1210 = vmatmul.mubr.f32.gmra.mrb[0].mxu0 %v1047
          %v1211 = vpop.f32.mrb[0].mxu0
          %v1212 = vadd.f32 0.0, %v1211
          %v1213 = vpop.f32.mrb[0].mxu0
          %1214 = vmatprep.mubr.f32.mxu0 0.0
          %1215 = vmatmul.mubr.f32.gmra.mrb[0].mxu0 %v1050
          %v1216 = vpop.f32.mrb[0].mxu0
          %v1217 = vadd.f32 0.0, %v1216
          %v1218 = vpop.f32.mrb[0].mxu0
          %1219 = vmatprep.mubr.f32.mxu0 0.0
          %1220 = vmatmul.mubr.f32.gmra.mrb[0].mxu0 %v1053
          %v1221 = vpop.f32.mrb[0].mxu0
          %v1222 = vadd.f32 0.0, %v1221
          %v1223 = vpop.f32.mrb[0].mxu0
          %1224 = vmatprep.mubr.f32.mxu0 0.0
          %1225 = vmatmul.mubr.f32.gmra.mrb[0].mxu0 %v1056
          %v1226 = vpop.f32.mrb[0].mxu0
          %v1227 = vadd.f32 0.0, %v1226
          %v1228 = vpop.f32.mrb[0].mxu0
          %1229 = vmatprep.mubr.f32.mxu0 0.0
          %1230 = vmatmul.mubr.f32.gmra.mrb[0].mxu0 %v1059
          %v1231 = vpop.f32.mrb[0].mxu0
          %v1232 = vadd.f32 0.0, %v1231
          %v1233 = vpop.f32.mrb[0].mxu0
          %1234 = vmatprep.mubr.f32.mxu0 0.0
          %1235 = vmatmul.mubr.f32.gmra.mrb[0].mxu0 %v1062
          %v1236 = vpop.f32.mrb[0].mxu0
          %v1237 = vadd.f32 0.0, %v1236
          %v1238 = vpop.f32.mrb[0].mxu0
          %1239 = vmatprep.mubr.f32.mxu0 0.0
          %1240 = vmatmul.mubr.f32.gmra.mrb[0].mxu0 %v1065
          %v1241 = vpop.f32.mrb[0].mxu0
          %v1242 = vadd.f32 0.0, %v1241
          %v1243 = vpop.f32.mrb[0].mxu0
          %1244 = vmatprep.mubr.f32.mxu0 0.0
          %1245 = vmatmul.mubr.f32.gmra.mrb[0].mxu0 %v1068
          %v1246 = vpop.f32.mrb[0].mxu0
          %v1247 = vadd.f32 0.0, %v1246
          %v1248 = vpop.f32.mrb[0].mxu0
          %1249 = vdwg.mxu0
          %v1250 = vtanh.pop %v1137
          %v1251 = vtanh.pop %v1142
          %v1252 = vtanh.pop %v1147
          %v1253 = vtanh.pop %v1152
          %v1254 = vtanh.pop %v1157
          %v1255 = vtanh.pop %v1162
          %v1256 = vtanh.pop %v1167
          %v1257 = vtanh.pop %v1172
          %v1258 = vtanh.pop %v1177
          %v1259 = vtanh.pop %v1182
          %v1260 = vtanh.pop %v1187
          %v1261 = vtanh.pop %v1192
          %v1262 = vtanh.pop %v1197
          %v1263 = vtanh.pop %v1202
          %v1264 = vtanh.pop %v1207
          %v1265 = vtanh.pop %v1212
          %v1266 = vtanh.pop %v1217
          %v1267 = vtanh.pop %v1222
          %v1268 = vtanh.pop %v1227
          %v1269 = vtanh.pop %v1232
          %v1270 = vmul.f32 %v1250, 0.5
          %v1271 = vmul.f32 %v1251, 0.5
          %v1272 = vmul.f32 %v1252, 0.5
          %v1273 = vmul.f32 %v1253, 0.5
          %v1274 = vmul.f32 %v1254, 0.5
          %v1275 = vadd.f32 %v1270, 0.5
          %v1276 = vadd.f32 %v1271, 0.5
          %v1277 = vadd.f32 %v1272, 0.5
          %v1278 = vadd.f32 %v1273, 0.5
          %v1279 = vadd.f32 %v1274, 0.5
          %v1280 = vmul.f32 %v1255, 0.5
          %v1281 = vmul.f32 %v1256, 0.5
          %v1282 = vmul.f32 %v1257, 0.5
          %v1283 = vmul.f32 %v1258, 0.5
          %v1284 = vmul.f32 %v1259, 0.5
          %v1285 = vadd.f32 %v1280, 0.5
          %v1286 = vadd.f32 %v1281, 0.5
          %v1287 = vadd.f32 %v1282, 0.5
          %v1288 = vadd.f32 %v1283, 0.5
          %v1289 = vadd.f32 %v1284, 0.5
          %v1290 = vmul.f32 %v1265, 0.5
          %v1291 = vmul.f32 %v1266, 0.5
          %v1292 = vmul.f32 %v1267, 0.5
          %v1293 = vmul.f32 %v1268, 0.5
          %v1294 = vmul.f32 %v1269, 0.5
          %v1295 = vadd.f32 %v1290, 0.5
          %v1296 = vadd.f32 %v1291, 0.5
          %v1297 = vadd.f32 %v1292, 0.5
          %v1298 = vadd.f32 %v1293, 0.5
          %v1299 = vadd.f32 %v1294, 0.5
          %v1300 = vmul.f32 %v1285, %v983
          %v1301 = vmul.f32 %v1286, %v984
          %v1302 = vmul.f32 %v1287, %v985
          %v1303 = vmul.f32 %v1288, %v986
          %v1304 = vmul.f32 %v1289, %v987
          %v1305 = vmul.f32 %v1275, %v1260
          %v1306 = vmul.f32 %v1276, %v1261
          %v1307 = vmul.f32 %v1277, %v1262
          %v1308 = vmul.f32 %v1278, %v1263
          %v1309 = vmul.f32 %v1279, %v1264
          %v1310 = vadd.f32 %v1300, %v1305
          %v1311 = vadd.f32 %v1301, %v1306
          %v1312 = vadd.f32 %v1302, %v1307
          %v1313 = vadd.f32 %v1303, %v1308
          %v1314 = vadd.f32 %v1304, %v1309
          %v1315 = vtanh.pop %v1310
          %v1316 = vtanh.pop %v1311
          %v1317 = vtanh.pop %v1312
          %v1318 = vtanh.pop %v1313
          %v1319 = vtanh.pop %v1314
          %v1320 = vmul.f32 %v1295, %v1315
          %v1321 = vmul.f32 %v1296, %v1316
          %v1322 = vmul.f32 %v1297, %v1317
          %v1323 = vmul.f32 %v1298, %v1318
          %v1324 = vmul.f32 %v1299, %v1319
          %v1325 = vmul.f32 %v905, %v1320
          %v1326 = vmul.f32 %v910, %v1321
          %v1327 = vmul.f32 %v915, %v1322
          %v1328 = vmul.f32 %v920, %v1323
          %v1329 = vmul.f32 %v925, %v1324
          %v1330 = vadd.f32 %v1325, %v1326
          %v1331 = vadd.f32 %v1330, %v1327
          %v1332 = vadd.f32 %v1331, %v1328
          %v1333 = vadd.f32 %v1332, %v1329
          %v1334 = vrot.slane %v1333, 4
          %v1335 = vadd.f32 %v1333, %v1334
          %v1336 = vrot.slane %v1335, 2
          %v1337 = vadd.f32 %v1335, %v1336
          %v1338 = vrot.slane %v1337, 1
          %v1339 = vadd.f32 %v1337, %v1338
          %v1340 = vadd.f32 %v1339, %v936
          %v1341 = vadd.f32 %v1340, %v995
          %v1342 = vmul.f32 %v837, %v1341
          %v1344 = vrot.slane %v989, 7
          %v1346 = vmul.f32 %v837, %v1344
          %v1348 = vrot.slane %v1346, 1
          %v1350 = vadd.f32 %v1342, %v1348
          %v1352 = vrot.slane %v990, 6
          %v1354 = vmul.f32 %v837, %v1352
          %v1356 = vrot.slane %v1354, 2
          %v1358 = vadd.f32 %v1350, %v1356
          %v1360 = vrot.slane %v991, 5
          %v1362 = vmul.f32 %v837, %v1360
          %v1364 = vrot.slane %v1362, 3
          %v1366 = vsub.f32 %v1358, %v1364
          %v1368 = vrot.slane %v992, 4
          %v1370 = vmul.f32 %v837, %v1368
          %v1372 = vrot.slane %v1370, 4
          %v1374 = vsub.f32 %v1366, %v1372
          %v1375 = vlaneseq
          %v1376 = vshrl.u32 %v1375, 7
          %v1377 = vsub.s32 0, %v1376
          %v1378 = vrot.slane %v1374, %v1377
          %v1379 = vmul.f32 %v867, %v1378
          %v1380 = vmul.f32 %v872, %v1378
          %v1381 = vmul.f32 %v877, %v1378
          %v1382 = vadd.f32 %v1379, %v885
          %v1383 = vadd.f32 %v1380, %v890
          %v1384 = vadd.f32 %v1381, %v895
          %v1385 = vadd.f32 %v1382, %v1237
          %v1386 = vadd.f32 %v1383, %v1242
          %v1387 = vtanh.pop %v1385
          %v1388 = vtanh.pop %v1386
          %v1389 = vmul.f32 %v1387, 0.5
          %v1390 = vmul.f32 %v1388, 0.5
          %v1391 = vadd.f32 %v1389, 0.5
          %v1392 = vadd.f32 %v1390, 0.5
          %v1393 = vmul.f32 %v1391, %v1247
          %v1394 = vadd.f32 %v1384, %v1393
          %v1395 = vtanh.pop %v1394
          %v1396 = vsub.f32 %v988, %v1395
          %v1397 = vmul.f32 %v1392, %v1396
          %v1398 = vadd.f32 %v1395, %v1397
          %v1399 = vmul.f32 %v941, %v1398
          %v1400 = vrot.slane %v1399, 4
          %v1401 = vadd.f32 %v1399, %v1400
          %v1402 = vrot.slane %v1401, 2
          %v1403 = vadd.f32 %v1401, %v1402
          %v1404 = vrot.slane %v1403, 1
          %v1405 = vadd.f32 %v1403, %v1404
          %v1406 = vadd.f32 %v1405, %v952
          %v1407 = vadd.f32 %v1406, %v1374
          %s1408 = sadd.s32 %s993, 1
          %s1409 = scalar_lea.vmem %s541, %s1408 [#allocation9]
          %v1410 = vld [vmem:[%s1409] sm:$0x1]
          %v1411 = vsel %vm996, %v1410, 1.0
          %v1412 = vsel %vm998, %v1411, 0.0
          %1413 = vmatprep.subr.mxu0 0.0
          %1414 = vmatpush1.msra.mxu0 %v1320
          %1415 = vmatprep.subr.mxu0 0.0
          %1416 = vmatpush1.msra.mxu0 %v1321
          %1417 = vmatprep.subr.mxu0 0.0
          %1418 = vmatpush1.msra.mxu0 %v1322
          %1419 = vmatprep.subr.mxu0 0.0
          %1420 = vmatpush1.msra.mxu0 %v1323
          %1421 = vmatprep.subr.mxu0 0.0
          %1422 = vmatpush1.msra.mxu0 %v1324
          %1423 = vmatprep.subr.mxu0 0.0
          %1424 = vmatpush1.msra.mxu0 %v1398
          %1425 = vmatprep.subr.mxu0 0.0
          %1426 = vmatpush1.msra.mxu0 %v1412
          %1427 = vmatprep.subr.mxu0 0.0
          %1428 = vmatpush1.msra.mxu0 0.0
          %1429 = vmatprep.subr.mxu0 0.0
          %1430 = vmatpush1.msra.mxu0 0.0
          %1431 = vmatprep.subr.mxu0 0.0
          %1432 = vmatpush1.msra.mxu0 0.0
          %1433 = vmatprep.subr.mxu0 0.0
          %1434 = vmatpush1.msra.mxu0 0.0
          %1435 = vmatprep.subr.mxu0 0.0
          %1436 = vmatpush1.msra.mxu0 0.0
          %1437 = vmatprep.subr.mxu0 0.0
          %1438 = vmatpush1.msra.mxu0 0.0
          %1439 = vmatprep.subr.mxu0 0.0
          %1440 = vmatpush1.msra.mxu0 0.0
          %1441 = vmatprep.subr.mxu0 0.0
          %1442 = vmatpush1.msra.mxu0 0.0
          %1443 = vmatprep.subr.mxu0 0.0
          %1444 = vmatpush1.msra.mxu0 0.0
          %1445 = vmatprep.subr.mxu0 0.0
          %1446 = vmatpush1.msra.mxu0 0.0
          %1447 = vmatprep.subr.mxu0 0.0
          %1448 = vmatpush1.msra.mxu0 0.0
          %1449 = vmatprep.subr.mxu0 0.0
          %1450 = vmatpush1.msra.mxu0 0.0
          %1451 = vmatprep.subr.mxu0 0.0
          %1452 = vmatpush1.msra.mxu0 0.0
          %1453 = vmatprep.subr.mxu0 0.0
          %1454 = vmatpush1.msra.mxu0 0.0
          %1455 = vmatprep.subr.mxu0 0.0
          %1456 = vmatpush1.msra.mxu0 0.0
          %1457 = vmatprep.subr.mxu0 0.0
          %1458 = vmatpush1.msra.mxu0 0.0
          %1459 = vmatprep.subr.mxu0 0.0
          %1460 = vmatpush1.msra.mxu0 0.0
          %1461 = vmatprep.subr.mxu0 0.0
          %1462 = vmatpush1.msra.mxu0 0.0
          %1463 = vmatprep.subr.mxu0 0.0
          %1464 = vmatpush1.msra.mxu0 0.0
          %1465 = vmatprep.subr.mxu0 0.0
          %1466 = vmatpush1.msra.mxu0 0.0
          %1467 = vmatprep.subr.mxu0 0.0
          %1468 = vmatpush1.msra.mxu0 0.0
          %1469 = vmatprep.subr.mxu0 0.0
          %1470 = vmatpush1.msra.mxu0 0.0
          %1471 = vmatprep.subr.mxu0 0.0
          %1472 = vmatpush1.msra.mxu0 0.0
          %1473 = vmatprep.subr.mxu0 0.0
          %1474 = vmatpush1.msra.mxu0 0.0
          %1475 = vmatprep.subr.mxu0 0.0
          %1476 = vmatpush1.msra.mxu0 0.0
          %1477 = vmatprep.mubr.f32.mxu0 0.0
          %1478 = vmatmul.mubr.f32.gmra.mrb[0].mxu0 %v1002
          %v1479 = vpop.f32.mrb[0].mxu0
          %v1480 = vadd.f32 0.0, %v1479
          %v1481 = vpop.f32.mrb[0].mxu0
          %1482 = vmatprep.mubr.f32.mxu0 0.0
          %1483 = vmatmul.mubr.f32.gmra.mrb[0].mxu0 %v1005
          %v1484 = vpop.f32.mrb[0].mxu0
          %v1485 = vadd.f32 0.0, %v1484
          %v1486 = vpop.f32.mrb[0].mxu0
          %1487 = vmatprep.mubr.f32.mxu0 0.0
          %1488 = vmatmul.mubr.f32.gmra.mrb[0].mxu0 %v1008
          %v1489 = vpop.f32.mrb[0].mxu0
          %v1490 = vadd.f32 0.0, %v1489
          %v1491 = vpop.f32.mrb[0].mxu0
          %1492 = vmatprep.mubr.f32.mxu0 0.0
          %1493 = vmatmul.mubr.f32.gmra.mrb[0].mxu0 %v1011
          %v1494 = vpop.f32.mrb[0].mxu0
          %v1495 = vadd.f32 0.0, %v1494
          %v1496 = vpop.f32.mrb[0].mxu0
          %1497 = vmatprep.mubr.f32.mxu0 0.0
          %1498 = vmatmul.mubr.f32.gmra.mrb[0].mxu0 %v1014
          %v1499 = vpop.f32.mrb[0].mxu0
          %v1500 = vadd.f32 0.0, %v1499
          %v1501 = vpop.f32.mrb[0].mxu0
          %1502 = vmatprep.mubr.f32.mxu0 0.0
          %1503 = vmatmul.mubr.f32.gmra.mrb[0].mxu0 %v1017
          %v1504 = vpop.f32.mrb[0].mxu0
          %v1505 = vadd.f32 0.0, %v1504
          %v1506 = vpop.f32.mrb[0].mxu0
          %1507 = vmatprep.mubr.f32.mxu0 0.0
          %1508 = vmatmul.mubr.f32.gmra.mrb[0].mxu0 %v1020
          %v1509 = vpop.f32.mrb[0].mxu0
          %v1510 = vadd.f32 0.0, %v1509
          %v1511 = vpop.f32.mrb[0].mxu0
          %1512 = vmatprep.mubr.f32.mxu0 0.0
          %1513 = vmatmul.mubr.f32.gmra.mrb[0].mxu0 %v1023
          %v1514 = vpop.f32.mrb[0].mxu0
          %v1515 = vadd.f32 0.0, %v1514
          %v1516 = vpop.f32.mrb[0].mxu0
          %1517 = vmatprep.mubr.f32.mxu0 0.0
          %1518 = vmatmul.mubr.f32.gmra.mrb[0].mxu0 %v1026
          %v1519 = vpop.f32.mrb[0].mxu0
          %v1520 = vadd.f32 0.0, %v1519
          %v1521 = vpop.f32.mrb[0].mxu0
          %1522 = vmatprep.mubr.f32.mxu0 0.0
          %1523 = vmatmul.mubr.f32.gmra.mrb[0].mxu0 %v1029
          %v1524 = vpop.f32.mrb[0].mxu0
          %v1525 = vadd.f32 0.0, %v1524
          %v1526 = vpop.f32.mrb[0].mxu0
          %1527 = vmatprep.mubr.f32.mxu0 0.0
          %1528 = vmatmul.mubr.f32.gmra.mrb[0].mxu0 %v1032
          %v1529 = vpop.f32.mrb[0].mxu0
          %v1530 = vadd.f32 0.0, %v1529
          %v1531 = vpop.f32.mrb[0].mxu0
          %1532 = vmatprep.mubr.f32.mxu0 0.0
          %1533 = vmatmul.mubr.f32.gmra.mrb[0].mxu0 %v1035
          %v1534 = vpop.f32.mrb[0].mxu0
          %v1535 = vadd.f32 0.0, %v1534
          %v1536 = vpop.f32.mrb[0].mxu0
          %1537 = vmatprep.mubr.f32.mxu0 0.0
          %1538 = vmatmul.mubr.f32.gmra.mrb[0].mxu0 %v1038
          %v1539 = vpop.f32.mrb[0].mxu0
          %v1540 = vadd.f32 0.0, %v1539
          %v1541 = vpop.f32.mrb[0].mxu0
          %1542 = vmatprep.mubr.f32.mxu0 0.0
          %1543 = vmatmul.mubr.f32.gmra.mrb[0].mxu0 %v1041
          %v1544 = vpop.f32.mrb[0].mxu0
          %v1545 = vadd.f32 0.0, %v1544
          %v1546 = vpop.f32.mrb[0].mxu0
          %1547 = vmatprep.mubr.f32.mxu0 0.0
          %1548 = vmatmul.mubr.f32.gmra.mrb[0].mxu0 %v1044
          %v1549 = vpop.f32.mrb[0].mxu0
          %v1550 = vadd.f32 0.0, %v1549
          %v1551 = vpop.f32.mrb[0].mxu0
          %1552 = vmatprep.mubr.f32.mxu0 0.0
          %1553 = vmatmul.mubr.f32.gmra.mrb[0].mxu0 %v1047
          %v1554 = vpop.f32.mrb[0].mxu0
          %v1555 = vadd.f32 0.0, %v1554
          %v1556 = vpop.f32.mrb[0].mxu0
          %1557 = vmatprep.mubr.f32.mxu0 0.0
          %1558 = vmatmul.mubr.f32.gmra.mrb[0].mxu0 %v1050
          %v1559 = vpop.f32.mrb[0].mxu0
          %v1560 = vadd.f32 0.0, %v1559
          %v1561 = vpop.f32.mrb[0].mxu0
          %1562 = vmatprep.mubr.f32.mxu0 0.0
          %1563 = vmatmul.mubr.f32.gmra.mrb[0].mxu0 %v1053
          %v1564 = vpop.f32.mrb[0].mxu0
          %v1565 = vadd.f32 0.0, %v1564
          %v1566 = vpop.f32.mrb[0].mxu0
          %1567 = vmatprep.mubr.f32.mxu0 0.0
          %1568 = vmatmul.mubr.f32.gmra.mrb[0].mxu0 %v1056
          %v1569 = vpop.f32.mrb[0].mxu0
          %v1570 = vadd.f32 0.0, %v1569
          %v1571 = vpop.f32.mrb[0].mxu0
          %1572 = vmatprep.mubr.f32.mxu0 0.0
          %1573 = vmatmul.mubr.f32.gmra.mrb[0].mxu0 %v1059
          %v1574 = vpop.f32.mrb[0].mxu0
          %v1575 = vadd.f32 0.0, %v1574
          %v1576 = vpop.f32.mrb[0].mxu0
          %1577 = vmatprep.mubr.f32.mxu0 0.0
          %1578 = vmatmul.mubr.f32.gmra.mrb[0].mxu0 %v1062
          %v1579 = vpop.f32.mrb[0].mxu0
          %v1580 = vadd.f32 0.0, %v1579
          %v1581 = vpop.f32.mrb[0].mxu0
          %1582 = vmatprep.mubr.f32.mxu0 0.0
          %1583 = vmatmul.mubr.f32.gmra.mrb[0].mxu0 %v1065
          %v1584 = vpop.f32.mrb[0].mxu0
          %v1585 = vadd.f32 0.0, %v1584
          %v1586 = vpop.f32.mrb[0].mxu0
          %1587 = vmatprep.mubr.f32.mxu0 0.0
          %1588 = vmatmul.mubr.f32.gmra.mrb[0].mxu0 %v1068
          %v1589 = vpop.f32.mrb[0].mxu0
          %v1590 = vadd.f32 0.0, %v1589
          %v1591 = vpop.f32.mrb[0].mxu0
          %1592 = vdwg.mxu0
          %v1593 = vtanh.pop %v1480
          %v1594 = vtanh.pop %v1485
          %v1595 = vtanh.pop %v1490
          %v1596 = vtanh.pop %v1495
          %v1597 = vtanh.pop %v1500
          %v1598 = vtanh.pop %v1505
          %v1599 = vtanh.pop %v1510
          %v1600 = vtanh.pop %v1515
          %v1601 = vtanh.pop %v1520
          %v1602 = vtanh.pop %v1525
          %v1603 = vtanh.pop %v1530
          %v1604 = vtanh.pop %v1535
          %v1605 = vtanh.pop %v1540
          %v1606 = vtanh.pop %v1545
          %v1607 = vtanh.pop %v1550
          %v1608 = vtanh.pop %v1555
          %v1609 = vtanh.pop %v1560
          %v1610 = vtanh.pop %v1565
          %v1611 = vtanh.pop %v1570
          %v1612 = vtanh.pop %v1575
          %v1613 = vmul.f32 %v1593, 0.5
          %v1614 = vmul.f32 %v1594, 0.5
          %v1615 = vmul.f32 %v1595, 0.5
          %v1616 = vmul.f32 %v1596, 0.5
          %v1617 = vmul.f32 %v1597, 0.5
          %v1618 = vadd.f32 %v1613, 0.5
          %v1619 = vadd.f32 %v1614, 0.5
          %v1620 = vadd.f32 %v1615, 0.5
          %v1621 = vadd.f32 %v1616, 0.5
          %v1622 = vadd.f32 %v1617, 0.5
          %v1623 = vmul.f32 %v1598, 0.5
          %v1624 = vmul.f32 %v1599, 0.5
          %v1625 = vmul.f32 %v1600, 0.5
          %v1626 = vmul.f32 %v1601, 0.5
          %v1627 = vmul.f32 %v1602, 0.5
          %v1628 = vadd.f32 %v1623, 0.5
          %v1629 = vadd.f32 %v1624, 0.5
          %v1630 = vadd.f32 %v1625, 0.5
          %v1631 = vadd.f32 %v1626, 0.5
          %v1632 = vadd.f32 %v1627, 0.5
          %v1633 = vmul.f32 %v1608, 0.5
          %v1634 = vmul.f32 %v1609, 0.5
          %v1635 = vmul.f32 %v1610, 0.5
          %v1636 = vmul.f32 %v1611, 0.5
          %v1637 = vmul.f32 %v1612, 0.5
          %v1638 = vadd.f32 %v1633, 0.5
          %v1639 = vadd.f32 %v1634, 0.5
          %v1640 = vadd.f32 %v1635, 0.5
          %v1641 = vadd.f32 %v1636, 0.5
          %v1642 = vadd.f32 %v1637, 0.5
          %v1643 = vmul.f32 %v1628, %v1310
          %v1644 = vmul.f32 %v1629, %v1311
          %v1645 = vmul.f32 %v1630, %v1312
          %v1646 = vmul.f32 %v1631, %v1313
          %v1647 = vmul.f32 %v1632, %v1314
          %v1648 = vmul.f32 %v1618, %v1603
          %v1649 = vmul.f32 %v1619, %v1604
          %v1650 = vmul.f32 %v1620, %v1605
          %v1651 = vmul.f32 %v1621, %v1606
          %v1652 = vmul.f32 %v1622, %v1607
          %v1653 = vadd.f32 %v1643, %v1648
          %v1654 = vadd.f32 %v1644, %v1649
          %v1655 = vadd.f32 %v1645, %v1650
          %v1656 = vadd.f32 %v1646, %v1651
          %v1657 = vadd.f32 %v1647, %v1652
          %v1658 = vtanh.pop %v1653
          %v1659 = vtanh.pop %v1654
          %v1660 = vtanh.pop %v1655
          %v1661 = vtanh.pop %v1656
          %v1662 = vtanh.pop %v1657
          %v1663 = vmul.f32 %v1638, %v1658
          %v1664 = vmul.f32 %v1639, %v1659
          %v1665 = vmul.f32 %v1640, %v1660
          %v1666 = vmul.f32 %v1641, %v1661
          %v1667 = vmul.f32 %v1642, %v1662
          %v1668 = vmul.f32 %v905, %v1663
          %v1669 = vmul.f32 %v910, %v1664
          %v1670 = vmul.f32 %v915, %v1665
          %v1671 = vmul.f32 %v920, %v1666
          %v1672 = vmul.f32 %v925, %v1667
          %v1673 = vadd.f32 %v1668, %v1669
          %v1674 = vadd.f32 %v1673, %v1670
          %v1675 = vadd.f32 %v1674, %v1671
          %v1676 = vadd.f32 %v1675, %v1672
          %v1677 = vrot.slane %v1676, 4
          %v1678 = vadd.f32 %v1676, %v1677
          %v1679 = vrot.slane %v1678, 2
          %v1680 = vadd.f32 %v1678, %v1679
          %v1681 = vrot.slane %v1680, 1
          %v1682 = vadd.f32 %v1680, %v1681
          %v1683 = vadd.f32 %v1682, %v936
          %v1684 = vadd.f32 %v1683, %v1410
          %v1685 = vmul.f32 %v837, %v1684
          %v1687 = vrot.slane %v1341, 7
          %v1689 = vmul.f32 %v837, %v1687
          %v1691 = vrot.slane %v1689, 1
          %v1693 = vadd.f32 %v1685, %v1691
          %v1694 = vrot.slane %v989, 6
          %v1696 = vmul.f32 %v837, %v1694
          %v1698 = vrot.slane %v1696, 2
          %v1700 = vadd.f32 %v1693, %v1698
          %v1702 = vrot.slane %v1374, 5
          %v1704 = vmul.f32 %v837, %v1702
          %v1706 = vrot.slane %v1704, 3
          %v1708 = vsub.f32 %v1700, %v1706
          %v1709 = vrot.slane %v991, 4
          %v1711 = vmul.f32 %v837, %v1709
          %v1713 = vrot.slane %v1711, 4
          %v1715 = vsub.f32 %v1708, %v1713
          %v1716 = vlaneseq
          %v1717 = vshrl.u32 %v1716, 7
          %v1718 = vsub.s32 0, %v1717
          %v1719 = vrot.slane %v1715, %v1718
          %v1720 = vmul.f32 %v867, %v1719
          %v1721 = vmul.f32 %v872, %v1719
          %v1722 = vmul.f32 %v877, %v1719
          %v1723 = vadd.f32 %v1720, %v885
          %v1724 = vadd.f32 %v1721, %v890
          %v1725 = vadd.f32 %v1722, %v895
          %v1726 = vadd.f32 %v1723, %v1580
          %v1727 = vadd.f32 %v1724, %v1585
          %v1728 = vtanh.pop %v1726
          %v1729 = vtanh.pop %v1727
          %v1730 = vmul.f32 %v1728, 0.5
          %v1731 = vmul.f32 %v1729, 0.5
          %v1732 = vadd.f32 %v1730, 0.5
          %v1733 = vadd.f32 %v1731, 0.5
          %v1734 = vmul.f32 %v1732, %v1590
          %v1735 = vadd.f32 %v1725, %v1734
          %v1736 = vtanh.pop %v1735
          %v1737 = vsub.f32 %v1398, %v1736
          %v1738 = vmul.f32 %v1733, %v1737
          %v1739 = vadd.f32 %v1736, %v1738
          %v1740 = vmul.f32 %v941, %v1739
          %v1741 = vrot.slane %v1740, 4
          %v1742 = vadd.f32 %v1740, %v1741
          %v1743 = vrot.slane %v1742, 2
          %v1744 = vadd.f32 %v1742, %v1743
          %v1745 = vrot.slane %v1744, 1
          %v1746 = vadd.f32 %v1744, %v1745
          %v1747 = vadd.f32 %v1746, %v952
          %v1748 = vadd.f32 %v1747, %v1715
          %s1749 = sadd.s32 %s993, 2
          %s1750 = scalar_lea.vmem %s541, %s1749 [#allocation9]
          %v1751 = vld [vmem:[%s1750] sm:$0x1]
          %v1752 = vsel %vm996, %v1751, 1.0
          %v1753 = vsel %vm998, %v1752, 0.0
          %1754 = vmatprep.subr.mxu0 0.0
          %1755 = vmatpush1.msra.mxu0 %v1663
          %1756 = vmatprep.subr.mxu0 0.0
          %1757 = vmatpush1.msra.mxu0 %v1664
          %1758 = vmatprep.subr.mxu0 0.0
          %1759 = vmatpush1.msra.mxu0 %v1665
          %1760 = vmatprep.subr.mxu0 0.0
          %1761 = vmatpush1.msra.mxu0 %v1666
          %1762 = vmatprep.subr.mxu0 0.0
          %1763 = vmatpush1.msra.mxu0 %v1667
          %1764 = vmatprep.subr.mxu0 0.0
          %1765 = vmatpush1.msra.mxu0 %v1739
          %1766 = vmatprep.subr.mxu0 0.0
          %1767 = vmatpush1.msra.mxu0 %v1753
          %1768 = vmatprep.subr.mxu0 0.0
          %1769 = vmatpush1.msra.mxu0 0.0
          %1770 = vmatprep.subr.mxu0 0.0
          %1771 = vmatpush1.msra.mxu0 0.0
          %1772 = vmatprep.subr.mxu0 0.0
          %1773 = vmatpush1.msra.mxu0 0.0
          %1774 = vmatprep.subr.mxu0 0.0
          %1775 = vmatpush1.msra.mxu0 0.0
          %1776 = vmatprep.subr.mxu0 0.0
          %1777 = vmatpush1.msra.mxu0 0.0
          %1778 = vmatprep.subr.mxu0 0.0
          %1779 = vmatpush1.msra.mxu0 0.0
          %1780 = vmatprep.subr.mxu0 0.0
          %1781 = vmatpush1.msra.mxu0 0.0
          %1782 = vmatprep.subr.mxu0 0.0
          %1783 = vmatpush1.msra.mxu0 0.0
          %1784 = vmatprep.subr.mxu0 0.0
          %1785 = vmatpush1.msra.mxu0 0.0
          %1786 = vmatprep.subr.mxu0 0.0
          %1787 = vmatpush1.msra.mxu0 0.0
          %1788 = vmatprep.subr.mxu0 0.0
          %1789 = vmatpush1.msra.mxu0 0.0
          %1790 = vmatprep.subr.mxu0 0.0
          %1791 = vmatpush1.msra.mxu0 0.0
          %1792 = vmatprep.subr.mxu0 0.0
          %1793 = vmatpush1.msra.mxu0 0.0
          %1794 = vmatprep.subr.mxu0 0.0
          %1795 = vmatpush1.msra.mxu0 0.0
          %1796 = vmatprep.subr.mxu0 0.0
          %1797 = vmatpush1.msra.mxu0 0.0
          %1798 = vmatprep.subr.mxu0 0.0
          %1799 = vmatpush1.msra.mxu0 0.0
          %1800 = vmatprep.subr.mxu0 0.0
          %1801 = vmatpush1.msra.mxu0 0.0
          %1802 = vmatprep.subr.mxu0 0.0
          %1803 = vmatpush1.msra.mxu0 0.0
          %1804 = vmatprep.subr.mxu0 0.0
          %1805 = vmatpush1.msra.mxu0 0.0
          %1806 = vmatprep.subr.mxu0 0.0
          %1807 = vmatpush1.msra.mxu0 0.0
          %1808 = vmatprep.subr.mxu0 0.0
          %1809 = vmatpush1.msra.mxu0 0.0
          %1810 = vmatprep.subr.mxu0 0.0
          %1811 = vmatpush1.msra.mxu0 0.0
          %1812 = vmatprep.subr.mxu0 0.0
          %1813 = vmatpush1.msra.mxu0 0.0
          %1814 = vmatprep.subr.mxu0 0.0
          %1815 = vmatpush1.msra.mxu0 0.0
          %1816 = vmatprep.subr.mxu0 0.0
          %1817 = vmatpush1.msra.mxu0 0.0
          %1818 = vmatprep.mubr.f32.mxu0 0.0
          %1819 = vmatmul.mubr.f32.gmra.mrb[0].mxu0 %v1002
          %v1820 = vpop.f32.mrb[0].mxu0
          %v1821 = vadd.f32 0.0, %v1820
          %v1822 = vpop.f32.mrb[0].mxu0
          %1823 = vmatprep.mubr.f32.mxu0 0.0
          %1824 = vmatmul.mubr.f32.gmra.mrb[0].mxu0 %v1005
          %v1825 = vpop.f32.mrb[0].mxu0
          %v1826 = vadd.f32 0.0, %v1825
          %v1827 = vpop.f32.mrb[0].mxu0
          %1828 = vmatprep.mubr.f32.mxu0 0.0
          %1829 = vmatmul.mubr.f32.gmra.mrb[0].mxu0 %v1008
          %v1830 = vpop.f32.mrb[0].mxu0
          %v1831 = vadd.f32 0.0, %v1830
          %v1832 = vpop.f32.mrb[0].mxu0
          %1833 = vmatprep.mubr.f32.mxu0 0.0
          %1834 = vmatmul.mubr.f32.gmra.mrb[0].mxu0 %v1011
          %v1835 = vpop.f32.mrb[0].mxu0
          %v1836 = vadd.f32 0.0, %v1835
          %v1837 = vpop.f32.mrb[0].mxu0
          %1838 = vmatprep.mubr.f32.mxu0 0.0
          %1839 = vmatmul.mubr.f32.gmra.mrb[0].mxu0 %v1014
          %v1840 = vpop.f32.mrb[0].mxu0
          %v1841 = vadd.f32 0.0, %v1840
          %v1842 = vpop.f32.mrb[0].mxu0
          %1843 = vmatprep.mubr.f32.mxu0 0.0
          %1844 = vmatmul.mubr.f32.gmra.mrb[0].mxu0 %v1017
          %v1845 = vpop.f32.mrb[0].mxu0
          %v1846 = vadd.f32 0.0, %v1845
          %v1847 = vpop.f32.mrb[0].mxu0
          %1848 = vmatprep.mubr.f32.mxu0 0.0
          %1849 = vmatmul.mubr.f32.gmra.mrb[0].mxu0 %v1020
          %v1850 = vpop.f32.mrb[0].mxu0
          %v1851 = vadd.f32 0.0, %v1850
          %v1852 = vpop.f32.mrb[0].mxu0
          %1853 = vmatprep.mubr.f32.mxu0 0.0
          %1854 = vmatmul.mubr.f32.gmra.mrb[0].mxu0 %v1023
          %v1855 = vpop.f32.mrb[0].mxu0
          %v1856 = vadd.f32 0.0, %v1855
          %v1857 = vpop.f32.mrb[0].mxu0
          %1858 = vmatprep.mubr.f32.mxu0 0.0
          %1859 = vmatmul.mubr.f32.gmra.mrb[0].mxu0 %v1026
          %v1860 = vpop.f32.mrb[0].mxu0
          %v1861 = vadd.f32 0.0, %v1860
          %v1862 = vpop.f32.mrb[0].mxu0
          %1863 = vmatprep.mubr.f32.mxu0 0.0
          %1864 = vmatmul.mubr.f32.gmra.mrb[0].mxu0 %v1029
          %v1865 = vpop.f32.mrb[0].mxu0
          %v1866 = vadd.f32 0.0, %v1865
          %v1867 = vpop.f32.mrb[0].mxu0
          %1868 = vmatprep.mubr.f32.mxu0 0.0
          %1869 = vmatmul.mubr.f32.gmra.mrb[0].mxu0 %v1032
          %v1870 = vpop.f32.mrb[0].mxu0
          %v1871 = vadd.f32 0.0, %v1870
          %v1872 = vpop.f32.mrb[0].mxu0
          %1873 = vmatprep.mubr.f32.mxu0 0.0
          %1874 = vmatmul.mubr.f32.gmra.mrb[0].mxu0 %v1035
          %v1875 = vpop.f32.mrb[0].mxu0
          %v1876 = vadd.f32 0.0, %v1875
          %v1877 = vpop.f32.mrb[0].mxu0
          %1878 = vmatprep.mubr.f32.mxu0 0.0
          %1879 = vmatmul.mubr.f32.gmra.mrb[0].mxu0 %v1038
          %v1880 = vpop.f32.mrb[0].mxu0
          %v1881 = vadd.f32 0.0, %v1880
          %v1882 = vpop.f32.mrb[0].mxu0
          %1883 = vmatprep.mubr.f32.mxu0 0.0
          %1884 = vmatmul.mubr.f32.gmra.mrb[0].mxu0 %v1041
          %v1885 = vpop.f32.mrb[0].mxu0
          %v1886 = vadd.f32 0.0, %v1885
          %v1887 = vpop.f32.mrb[0].mxu0
          %1888 = vmatprep.mubr.f32.mxu0 0.0
          %1889 = vmatmul.mubr.f32.gmra.mrb[0].mxu0 %v1044
          %v1890 = vpop.f32.mrb[0].mxu0
          %v1891 = vadd.f32 0.0, %v1890
          %v1892 = vpop.f32.mrb[0].mxu0
          %1893 = vmatprep.mubr.f32.mxu0 0.0
          %1894 = vmatmul.mubr.f32.gmra.mrb[0].mxu0 %v1047
          %v1895 = vpop.f32.mrb[0].mxu0
          %v1896 = vadd.f32 0.0, %v1895
          %v1897 = vpop.f32.mrb[0].mxu0
          %1898 = vmatprep.mubr.f32.mxu0 0.0
          %1899 = vmatmul.mubr.f32.gmra.mrb[0].mxu0 %v1050
          %v1900 = vpop.f32.mrb[0].mxu0
          %v1901 = vadd.f32 0.0, %v1900
          %v1902 = vpop.f32.mrb[0].mxu0
          %1903 = vmatprep.mubr.f32.mxu0 0.0
          %1904 = vmatmul.mubr.f32.gmra.mrb[0].mxu0 %v1053
          %v1905 = vpop.f32.mrb[0].mxu0
          %v1906 = vadd.f32 0.0, %v1905
          %v1907 = vpop.f32.mrb[0].mxu0
          %1908 = vmatprep.mubr.f32.mxu0 0.0
          %1909 = vmatmul.mubr.f32.gmra.mrb[0].mxu0 %v1056
          %v1910 = vpop.f32.mrb[0].mxu0
          %v1911 = vadd.f32 0.0, %v1910
          %v1912 = vpop.f32.mrb[0].mxu0
          %1913 = vmatprep.mubr.f32.mxu0 0.0
          %1914 = vmatmul.mubr.f32.gmra.mrb[0].mxu0 %v1059
          %v1915 = vpop.f32.mrb[0].mxu0
          %v1916 = vadd.f32 0.0, %v1915
          %v1917 = vpop.f32.mrb[0].mxu0
          %1918 = vmatprep.mubr.f32.mxu0 0.0
          %1919 = vmatmul.mubr.f32.gmra.mrb[0].mxu0 %v1062
          %v1920 = vpop.f32.mrb[0].mxu0
          %v1921 = vadd.f32 0.0, %v1920
          %v1922 = vpop.f32.mrb[0].mxu0
          %1923 = vmatprep.mubr.f32.mxu0 0.0
          %1924 = vmatmul.mubr.f32.gmra.mrb[0].mxu0 %v1065
          %v1925 = vpop.f32.mrb[0].mxu0
          %v1926 = vadd.f32 0.0, %v1925
          %v1927 = vpop.f32.mrb[0].mxu0
          %1928 = vmatprep.mubr.f32.mxu0 0.0
          %1929 = vmatmul.mubr.f32.gmra.mrb[0].mxu0 %v1068
          %v1930 = vpop.f32.mrb[0].mxu0
          %v1931 = vadd.f32 0.0, %v1930
          %v1932 = vpop.f32.mrb[0].mxu0
          %1933 = vdwg.mxu0
          %v1934 = vtanh.pop %v1821
          %v1935 = vtanh.pop %v1826
          %v1936 = vtanh.pop %v1831
          %v1937 = vtanh.pop %v1836
          %v1938 = vtanh.pop %v1841
          %v1939 = vtanh.pop %v1846
          %v1940 = vtanh.pop %v1851
          %v1941 = vtanh.pop %v1856
          %v1942 = vtanh.pop %v1861
          %v1943 = vtanh.pop %v1866
          %v1944 = vtanh.pop %v1871
          %v1945 = vtanh.pop %v1876
          %v1946 = vtanh.pop %v1881
          %v1947 = vtanh.pop %v1886
          %v1948 = vtanh.pop %v1891
          %v1949 = vtanh.pop %v1896
          %v1950 = vtanh.pop %v1901
          %v1951 = vtanh.pop %v1906
          %v1952 = vtanh.pop %v1911
          %v1953 = vtanh.pop %v1916
          %v1954 = vmul.f32 %v1934, 0.5
          %v1955 = vmul.f32 %v1935, 0.5
          %v1956 = vmul.f32 %v1936, 0.5
          %v1957 = vmul.f32 %v1937, 0.5
          %v1958 = vmul.f32 %v1938, 0.5
          %v1959 = vadd.f32 %v1954, 0.5
          %v1960 = vadd.f32 %v1955, 0.5
          %v1961 = vadd.f32 %v1956, 0.5
          %v1962 = vadd.f32 %v1957, 0.5
          %v1963 = vadd.f32 %v1958, 0.5
          %v1964 = vmul.f32 %v1939, 0.5
          %v1965 = vmul.f32 %v1940, 0.5
          %v1966 = vmul.f32 %v1941, 0.5
          %v1967 = vmul.f32 %v1942, 0.5
          %v1968 = vmul.f32 %v1943, 0.5
          %v1969 = vadd.f32 %v1964, 0.5
          %v1970 = vadd.f32 %v1965, 0.5
          %v1971 = vadd.f32 %v1966, 0.5
          %v1972 = vadd.f32 %v1967, 0.5
          %v1973 = vadd.f32 %v1968, 0.5
          %v1974 = vmul.f32 %v1949, 0.5
          %v1975 = vmul.f32 %v1950, 0.5
          %v1976 = vmul.f32 %v1951, 0.5
          %v1977 = vmul.f32 %v1952, 0.5
          %v1978 = vmul.f32 %v1953, 0.5
          %v1979 = vadd.f32 %v1974, 0.5
          %v1980 = vadd.f32 %v1975, 0.5
          %v1981 = vadd.f32 %v1976, 0.5
          %v1982 = vadd.f32 %v1977, 0.5
          %v1983 = vadd.f32 %v1978, 0.5
          %v1984 = vmul.f32 %v1969, %v1653
          %v1985 = vmul.f32 %v1970, %v1654
          %v1986 = vmul.f32 %v1971, %v1655
          %v1987 = vmul.f32 %v1972, %v1656
          %v1988 = vmul.f32 %v1973, %v1657
          %v1989 = vmul.f32 %v1959, %v1944
          %v1990 = vmul.f32 %v1960, %v1945
          %v1991 = vmul.f32 %v1961, %v1946
          %v1992 = vmul.f32 %v1962, %v1947
          %v1993 = vmul.f32 %v1963, %v1948
          %v1994 = vadd.f32 %v1984, %v1989
          %v1995 = vadd.f32 %v1985, %v1990
          %v1996 = vadd.f32 %v1986, %v1991
          %v1997 = vadd.f32 %v1987, %v1992
          %v1998 = vadd.f32 %v1988, %v1993
          %v1999 = vtanh.pop %v1994
          %v2000 = vtanh.pop %v1995
          %v2001 = vtanh.pop %v1996
          %v2002 = vtanh.pop %v1997
          %v2003 = vtanh.pop %v1998
          %v2004 = vmul.f32 %v1979, %v1999
          %v2005 = vmul.f32 %v1980, %v2000
          %v2006 = vmul.f32 %v1981, %v2001
          %v2007 = vmul.f32 %v1982, %v2002
          %v2008 = vmul.f32 %v1983, %v2003
          %v2009 = vmul.f32 %v905, %v2004
          %v2010 = vmul.f32 %v910, %v2005
          %v2011 = vmul.f32 %v915, %v2006
          %v2012 = vmul.f32 %v920, %v2007
          %v2013 = vmul.f32 %v925, %v2008
          %v2014 = vadd.f32 %v2009, %v2010
          %v2015 = vadd.f32 %v2014, %v2011
          %v2016 = vadd.f32 %v2015, %v2012
          %v2017 = vadd.f32 %v2016, %v2013
          %v2018 = vrot.slane %v2017, 4
          %v2019 = vadd.f32 %v2017, %v2018
          %v2020 = vrot.slane %v2019, 2
          %v2021 = vadd.f32 %v2019, %v2020
          %v2022 = vrot.slane %v2021, 1
          %v2023 = vadd.f32 %v2021, %v2022
          %v2024 = vadd.f32 %v2023, %v936
          %v2025 = vadd.f32 %v2024, %v1751
          %v2026 = vmul.f32 %v837, %v2025
          %v2028 = vrot.slane %v1684, 7
          %v2030 = vmul.f32 %v837, %v2028
          %v2032 = vrot.slane %v2030, 1
          %v2034 = vadd.f32 %v2026, %v2032
          %v2035 = vrot.slane %v1341, 6
          %v2037 = vmul.f32 %v837, %v2035
          %v2039 = vrot.slane %v2037, 2
          %v2041 = vadd.f32 %v2034, %v2039
          %v2043 = vrot.slane %v1715, 5
          %v2045 = vmul.f32 %v837, %v2043
          %v2047 = vrot.slane %v2045, 3
          %v2049 = vsub.f32 %v2041, %v2047
          %v2050 = vrot.slane %v1374, 4
          %v2052 = vmul.f32 %v837, %v2050
          %v2054 = vrot.slane %v2052, 4
          %v2056 = vsub.f32 %v2049, %v2054
          %v2057 = vlaneseq
          %v2058 = vshrl.u32 %v2057, 7
          %v2059 = vsub.s32 0, %v2058
          %v2060 = vrot.slane %v2056, %v2059
          %v2061 = vmul.f32 %v867, %v2060
          %v2062 = vmul.f32 %v872, %v2060
          %v2063 = vmul.f32 %v877, %v2060
          %v2064 = vadd.f32 %v2061, %v885
          %v2065 = vadd.f32 %v2062, %v890
          %v2066 = vadd.f32 %v2063, %v895
          %v2067 = vadd.f32 %v2064, %v1921
          %v2068 = vadd.f32 %v2065, %v1926
          %v2069 = vtanh.pop %v2067
          %v2070 = vtanh.pop %v2068
          %v2071 = vmul.f32 %v2069, 0.5
          %v2072 = vmul.f32 %v2070, 0.5
          %v2073 = vadd.f32 %v2071, 0.5
          %v2074 = vadd.f32 %v2072, 0.5
          %v2075 = vmul.f32 %v2073, %v1931
          %v2076 = vadd.f32 %v2066, %v2075
          %v2077 = vtanh.pop %v2076
          %v2078 = vsub.f32 %v1739, %v2077
          %v2079 = vmul.f32 %v2074, %v2078
          %v2080 = vadd.f32 %v2077, %v2079
          %v2081 = vmul.f32 %v941, %v2080
          %v2082 = vrot.slane %v2081, 4
          %v2083 = vadd.f32 %v2081, %v2082
          %v2084 = vrot.slane %v2083, 2
          %v2085 = vadd.f32 %v2083, %v2084
          %v2086 = vrot.slane %v2085, 1
          %v2087 = vadd.f32 %v2085, %v2086
          %v2088 = vadd.f32 %v2087, %v952
          %v2089 = vadd.f32 %v2088, %v2056
          %s2090 = sadd.s32 %s993, 3
          %s2091 = scalar_lea.vmem %s541, %s2090 [#allocation9]
          %v2092 = vld [vmem:[%s2091] sm:$0x1]
          %v2093 = vsel %vm996, %v2092, 1.0
          %v2094 = vsel %vm998, %v2093, 0.0
          %2095 = vmatprep.subr.mxu0 0.0
          %2096 = vmatpush1.msra.mxu0 %v2004
          %2097 = vmatprep.subr.mxu0 0.0
          %2098 = vmatpush1.msra.mxu0 %v2005
          %2099 = vmatprep.subr.mxu0 0.0
          %2100 = vmatpush1.msra.mxu0 %v2006
          %2101 = vmatprep.subr.mxu0 0.0
          %2102 = vmatpush1.msra.mxu0 %v2007
          %2103 = vmatprep.subr.mxu0 0.0
          %2104 = vmatpush1.msra.mxu0 %v2008
          %2105 = vmatprep.subr.mxu0 0.0
          %2106 = vmatpush1.msra.mxu0 %v2080
          %2107 = vmatprep.subr.mxu0 0.0
          %2108 = vmatpush1.msra.mxu0 %v2094
          %2109 = vmatprep.subr.mxu0 0.0
          %2110 = vmatpush1.msra.mxu0 0.0
          %2111 = vmatprep.subr.mxu0 0.0
          %2112 = vmatpush1.msra.mxu0 0.0
          %2113 = vmatprep.subr.mxu0 0.0
          %2114 = vmatpush1.msra.mxu0 0.0
          %2115 = vmatprep.subr.mxu0 0.0
          %2116 = vmatpush1.msra.mxu0 0.0
          %2117 = vmatprep.subr.mxu0 0.0
          %2118 = vmatpush1.msra.mxu0 0.0
          %2119 = vmatprep.subr.mxu0 0.0
          %2120 = vmatpush1.msra.mxu0 0.0
          %2121 = vmatprep.subr.mxu0 0.0
          %2122 = vmatpush1.msra.mxu0 0.0
          %2123 = vmatprep.subr.mxu0 0.0
          %2124 = vmatpush1.msra.mxu0 0.0
          %2125 = vmatprep.subr.mxu0 0.0
          %2126 = vmatpush1.msra.mxu0 0.0
          %2127 = vmatprep.subr.mxu0 0.0
          %2128 = vmatpush1.msra.mxu0 0.0
          %2129 = vmatprep.subr.mxu0 0.0
          %2130 = vmatpush1.msra.mxu0 0.0
          %2131 = vmatprep.subr.mxu0 0.0
          %2132 = vmatpush1.msra.mxu0 0.0
          %2133 = vmatprep.subr.mxu0 0.0
          %2134 = vmatpush1.msra.mxu0 0.0
          %2135 = vmatprep.subr.mxu0 0.0
          %2136 = vmatpush1.msra.mxu0 0.0
          %2137 = vmatprep.subr.mxu0 0.0
          %2138 = vmatpush1.msra.mxu0 0.0
          %2139 = vmatprep.subr.mxu0 0.0
          %2140 = vmatpush1.msra.mxu0 0.0
          %2141 = vmatprep.subr.mxu0 0.0
          %2142 = vmatpush1.msra.mxu0 0.0
          %2143 = vmatprep.subr.mxu0 0.0
          %2144 = vmatpush1.msra.mxu0 0.0
          %2145 = vmatprep.subr.mxu0 0.0
          %2146 = vmatpush1.msra.mxu0 0.0
          %2147 = vmatprep.subr.mxu0 0.0
          %2148 = vmatpush1.msra.mxu0 0.0
          %2149 = vmatprep.subr.mxu0 0.0
          %2150 = vmatpush1.msra.mxu0 0.0
          %2151 = vmatprep.subr.mxu0 0.0
          %2152 = vmatpush1.msra.mxu0 0.0
          %2153 = vmatprep.subr.mxu0 0.0
          %2154 = vmatpush1.msra.mxu0 0.0
          %2155 = vmatprep.subr.mxu0 0.0
          %2156 = vmatpush1.msra.mxu0 0.0
          %2157 = vmatprep.subr.mxu0 0.0
          %2158 = vmatpush1.msra.mxu0 0.0
          %2159 = vmatprep.mubr.f32.mxu0 0.0
          %2160 = vmatmul.mubr.f32.gmra.mrb[0].mxu0 %v1002
          %v2161 = vpop.f32.mrb[0].mxu0
          %v2162 = vadd.f32 0.0, %v2161
          %v2163 = vpop.f32.mrb[0].mxu0
          %2164 = vmatprep.mubr.f32.mxu0 0.0
          %2165 = vmatmul.mubr.f32.gmra.mrb[0].mxu0 %v1005
          %v2166 = vpop.f32.mrb[0].mxu0
          %v2167 = vadd.f32 0.0, %v2166
          %v2168 = vpop.f32.mrb[0].mxu0
          %2169 = vmatprep.mubr.f32.mxu0 0.0
          %2170 = vmatmul.mubr.f32.gmra.mrb[0].mxu0 %v1008
          %v2171 = vpop.f32.mrb[0].mxu0
          %v2172 = vadd.f32 0.0, %v2171
          %v2173 = vpop.f32.mrb[0].mxu0
          %2174 = vmatprep.mubr.f32.mxu0 0.0
          %2175 = vmatmul.mubr.f32.gmra.mrb[0].mxu0 %v1011
          %v2176 = vpop.f32.mrb[0].mxu0
          %v2177 = vadd.f32 0.0, %v2176
          %v2178 = vpop.f32.mrb[0].mxu0
          %2179 = vmatprep.mubr.f32.mxu0 0.0
          %2180 = vmatmul.mubr.f32.gmra.mrb[0].mxu0 %v1014
          %v2181 = vpop.f32.mrb[0].mxu0
          %v2182 = vadd.f32 0.0, %v2181
          %v2183 = vpop.f32.mrb[0].mxu0
          %2184 = vmatprep.mubr.f32.mxu0 0.0
          %2185 = vmatmul.mubr.f32.gmra.mrb[0].mxu0 %v1017
          %v2186 = vpop.f32.mrb[0].mxu0
          %v2187 = vadd.f32 0.0, %v2186
          %v2188 = vpop.f32.mrb[0].mxu0
          %2189 = vmatprep.mubr.f32.mxu0 0.0
          %2190 = vmatmul.mubr.f32.gmra.mrb[0].mxu0 %v1020
          %v2191 = vpop.f32.mrb[0].mxu0
          %v2192 = vadd.f32 0.0, %v2191
          %v2193 = vpop.f32.mrb[0].mxu0
          %2194 = vmatprep.mubr.f32.mxu0 0.0
          %2195 = vmatmul.mubr.f32.gmra.mrb[0].mxu0 %v1023
          %v2196 = vpop.f32.mrb[0].mxu0
          %v2197 = vadd.f32 0.0, %v2196
          %v2198 = vpop.f32.mrb[0].mxu0
          %2199 = vmatprep.mubr.f32.mxu0 0.0
          %2200 = vmatmul.mubr.f32.gmra.mrb[0].mxu0 %v1026
          %v2201 = vpop.f32.mrb[0].mxu0
          %v2202 = vadd.f32 0.0, %v2201
          %v2203 = vpop.f32.mrb[0].mxu0
          %2204 = vmatprep.mubr.f32.mxu0 0.0
          %2205 = vmatmul.mubr.f32.gmra.mrb[0].mxu0 %v1029
          %v2206 = vpop.f32.mrb[0].mxu0
          %v2207 = vadd.f32 0.0, %v2206
          %v2208 = vpop.f32.mrb[0].mxu0
          %2209 = vmatprep.mubr.f32.mxu0 0.0
          %2210 = vmatmul.mubr.f32.gmra.mrb[0].mxu0 %v1032
          %v2211 = vpop.f32.mrb[0].mxu0
          %v2212 = vadd.f32 0.0, %v2211
          %v2213 = vpop.f32.mrb[0].mxu0
          %2214 = vmatprep.mubr.f32.mxu0 0.0
          %2215 = vmatmul.mubr.f32.gmra.mrb[0].mxu0 %v1035
          %v2216 = vpop.f32.mrb[0].mxu0
          %v2217 = vadd.f32 0.0, %v2216
          %v2218 = vpop.f32.mrb[0].mxu0
          %2219 = vmatprep.mubr.f32.mxu0 0.0
          %2220 = vmatmul.mubr.f32.gmra.mrb[0].mxu0 %v1038
          %v2221 = vpop.f32.mrb[0].mxu0
          %v2222 = vadd.f32 0.0, %v2221
          %v2223 = vpop.f32.mrb[0].mxu0
          %2224 = vmatprep.mubr.f32.mxu0 0.0
          %2225 = vmatmul.mubr.f32.gmra.mrb[0].mxu0 %v1041
          %v2226 = vpop.f32.mrb[0].mxu0
          %v2227 = vadd.f32 0.0, %v2226
          %v2228 = vpop.f32.mrb[0].mxu0
          %2229 = vmatprep.mubr.f32.mxu0 0.0
          %2230 = vmatmul.mubr.f32.gmra.mrb[0].mxu0 %v1044
          %v2231 = vpop.f32.mrb[0].mxu0
          %v2232 = vadd.f32 0.0, %v2231
          %v2233 = vpop.f32.mrb[0].mxu0
          %2234 = vmatprep.mubr.f32.mxu0 0.0
          %2235 = vmatmul.mubr.f32.gmra.mrb[0].mxu0 %v1047
          %v2236 = vpop.f32.mrb[0].mxu0
          %v2237 = vadd.f32 0.0, %v2236
          %v2238 = vpop.f32.mrb[0].mxu0
          %2239 = vmatprep.mubr.f32.mxu0 0.0
          %2240 = vmatmul.mubr.f32.gmra.mrb[0].mxu0 %v1050
          %v2241 = vpop.f32.mrb[0].mxu0
          %v2242 = vadd.f32 0.0, %v2241
          %v2243 = vpop.f32.mrb[0].mxu0
          %2244 = vmatprep.mubr.f32.mxu0 0.0
          %2245 = vmatmul.mubr.f32.gmra.mrb[0].mxu0 %v1053
          %v2246 = vpop.f32.mrb[0].mxu0
          %v2247 = vadd.f32 0.0, %v2246
          %v2248 = vpop.f32.mrb[0].mxu0
          %2249 = vmatprep.mubr.f32.mxu0 0.0
          %2250 = vmatmul.mubr.f32.gmra.mrb[0].mxu0 %v1056
          %v2251 = vpop.f32.mrb[0].mxu0
          %v2252 = vadd.f32 0.0, %v2251
          %v2253 = vpop.f32.mrb[0].mxu0
          %2254 = vmatprep.mubr.f32.mxu0 0.0
          %2255 = vmatmul.mubr.f32.gmra.mrb[0].mxu0 %v1059
          %v2256 = vpop.f32.mrb[0].mxu0
          %v2257 = vadd.f32 0.0, %v2256
          %v2258 = vpop.f32.mrb[0].mxu0
          %2259 = vmatprep.mubr.f32.mxu0 0.0
          %2260 = vmatmul.mubr.f32.gmra.mrb[0].mxu0 %v1062
          %v2261 = vpop.f32.mrb[0].mxu0
          %v2262 = vadd.f32 0.0, %v2261
          %v2263 = vpop.f32.mrb[0].mxu0
          %2264 = vmatprep.mubr.f32.mxu0 0.0
          %2265 = vmatmul.mubr.f32.gmra.mrb[0].mxu0 %v1065
          %v2266 = vpop.f32.mrb[0].mxu0
          %v2267 = vadd.f32 0.0, %v2266
          %v2268 = vpop.f32.mrb[0].mxu0
          %2269 = vmatprep.mubr.f32.mxu0 0.0
          %2270 = vmatmul.mubr.f32.gmra.mrb[0].mxu0 %v1068
          %v2271 = vpop.f32.mrb[0].mxu0
          %v2272 = vadd.f32 0.0, %v2271
          %v2273 = vpop.f32.mrb[0].mxu0
          %2274 = vdwg.mxu0
          %v2275 = vtanh.pop %v2162
          %v2276 = vtanh.pop %v2167
          %v2277 = vtanh.pop %v2172
          %v2278 = vtanh.pop %v2177
          %v2279 = vtanh.pop %v2182
          %v2280 = vtanh.pop %v2187
          %v2281 = vtanh.pop %v2192
          %v2282 = vtanh.pop %v2197
          %v2283 = vtanh.pop %v2202
          %v2284 = vtanh.pop %v2207
          %v2285 = vtanh.pop %v2212
          %v2286 = vtanh.pop %v2217
          %v2287 = vtanh.pop %v2222
          %v2288 = vtanh.pop %v2227
          %v2289 = vtanh.pop %v2232
          %v2290 = vtanh.pop %v2237
          %v2291 = vtanh.pop %v2242
          %v2292 = vtanh.pop %v2247
          %v2293 = vtanh.pop %v2252
          %v2294 = vtanh.pop %v2257
          %v2295 = vmul.f32 %v2275, 0.5
          %v2296 = vmul.f32 %v2276, 0.5
          %v2297 = vmul.f32 %v2277, 0.5
          %v2298 = vmul.f32 %v2278, 0.5
          %v2299 = vmul.f32 %v2279, 0.5
          %v2300 = vadd.f32 %v2295, 0.5
          %v2301 = vadd.f32 %v2296, 0.5
          %v2302 = vadd.f32 %v2297, 0.5
          %v2303 = vadd.f32 %v2298, 0.5
          %v2304 = vadd.f32 %v2299, 0.5
          %v2305 = vmul.f32 %v2280, 0.5
          %v2306 = vmul.f32 %v2281, 0.5
          %v2307 = vmul.f32 %v2282, 0.5
          %v2308 = vmul.f32 %v2283, 0.5
          %v2309 = vmul.f32 %v2284, 0.5
          %v2310 = vadd.f32 %v2305, 0.5
          %v2311 = vadd.f32 %v2306, 0.5
          %v2312 = vadd.f32 %v2307, 0.5
          %v2313 = vadd.f32 %v2308, 0.5
          %v2314 = vadd.f32 %v2309, 0.5
          %v2315 = vmul.f32 %v2290, 0.5
          %v2316 = vmul.f32 %v2291, 0.5
          %v2317 = vmul.f32 %v2292, 0.5
          %v2318 = vmul.f32 %v2293, 0.5
          %v2319 = vmul.f32 %v2294, 0.5
          %v2320 = vadd.f32 %v2315, 0.5
          %v2321 = vadd.f32 %v2316, 0.5
          %v2322 = vadd.f32 %v2317, 0.5
          %v2323 = vadd.f32 %v2318, 0.5
          %v2324 = vadd.f32 %v2319, 0.5
          %v2325 = vmul.f32 %v2310, %v1994
          %v2326 = vmul.f32 %v2311, %v1995
          %v2327 = vmul.f32 %v2312, %v1996
          %v2328 = vmul.f32 %v2313, %v1997
          %v2329 = vmul.f32 %v2314, %v1998
          %v2330 = vmul.f32 %v2300, %v2285
          %v2331 = vmul.f32 %v2301, %v2286
          %v2332 = vmul.f32 %v2302, %v2287
          %v2333 = vmul.f32 %v2303, %v2288
          %v2334 = vmul.f32 %v2304, %v2289
          %v2335 = vadd.f32 %v2325, %v2330
          %v2336 = vadd.f32 %v2326, %v2331
          %v2337 = vadd.f32 %v2327, %v2332
          %v2338 = vadd.f32 %v2328, %v2333
          %v2339 = vadd.f32 %v2329, %v2334
          %v2340 = vtanh.pop %v2335
          %v2341 = vtanh.pop %v2336
          %v2342 = vtanh.pop %v2337
          %v2343 = vtanh.pop %v2338
          %v2344 = vtanh.pop %v2339
          %v2345 = vmul.f32 %v2320, %v2340
          %v2346 = vmul.f32 %v2321, %v2341
          %v2347 = vmul.f32 %v2322, %v2342
          %v2348 = vmul.f32 %v2323, %v2343
          %v2349 = vmul.f32 %v2324, %v2344
          %v2350 = vmul.f32 %v905, %v2345
          %v2351 = vmul.f32 %v910, %v2346
          %v2352 = vmul.f32 %v915, %v2347
          %v2353 = vmul.f32 %v920, %v2348
          %v2354 = vmul.f32 %v925, %v2349
          %v2355 = vadd.f32 %v2350, %v2351
          %v2356 = vadd.f32 %v2355, %v2352
          %v2357 = vadd.f32 %v2356, %v2353
          %v2358 = vadd.f32 %v2357, %v2354
          %v2359 = vrot.slane %v2358, 4
          %v2360 = vadd.f32 %v2358, %v2359
          %v2361 = vrot.slane %v2360, 2
          %v2362 = vadd.f32 %v2360, %v2361
          %v2363 = vrot.slane %v2362, 1
          %v2364 = vadd.f32 %v2362, %v2363
          %v2365 = vadd.f32 %v2364, %v936
          %v2366 = vadd.f32 %v2365, %v2092
          %v2367 = vmul.f32 %v837, %v2366
          %v2369 = vrot.slane %v2025, 7
          %v2371 = vmul.f32 %v837, %v2369
          %v2373 = vrot.slane %v2371, 1
          %v2375 = vadd.f32 %v2367, %v2373
          %v2376 = vrot.slane %v1684, 6
          %v2378 = vmul.f32 %v837, %v2376
          %v2380 = vrot.slane %v2378, 2
          %v2382 = vadd.f32 %v2375, %v2380
          %v2384 = vrot.slane %v2056, 5
          %v2386 = vmul.f32 %v837, %v2384
          %v2388 = vrot.slane %v2386, 3
          %v2390 = vsub.f32 %v2382, %v2388
          %v2391 = vrot.slane %v1715, 4
          %v2393 = vmul.f32 %v837, %v2391
          %v2395 = vrot.slane %v2393, 4
          %v2397 = vsub.f32 %v2390, %v2395
          %v2398 = vlaneseq
          %v2399 = vshrl.u32 %v2398, 7
          %v2400 = vsub.s32 0, %v2399
          %v2401 = vrot.slane %v2397, %v2400
          %v2402 = vmul.f32 %v867, %v2401
          %v2403 = vmul.f32 %v872, %v2401
          %v2404 = vmul.f32 %v877, %v2401
          %v2405 = vadd.f32 %v2402, %v885
          %v2406 = vadd.f32 %v2403, %v890
          %v2407 = vadd.f32 %v2404, %v895
          %v2408 = vadd.f32 %v2405, %v2262
          %v2409 = vadd.f32 %v2406, %v2267
          %v2410 = vtanh.pop %v2408
          %v2411 = vtanh.pop %v2409
          %v2412 = vmul.f32 %v2410, 0.5
          %v2413 = vmul.f32 %v2411, 0.5
          %v2414 = vadd.f32 %v2412, 0.5
          %v2415 = vadd.f32 %v2413, 0.5
          %v2416 = vmul.f32 %v2414, %v2272
          %v2417 = vadd.f32 %v2407, %v2416
          %v2418 = vtanh.pop %v2417
          %v2419 = vsub.f32 %v2080, %v2418
          %v2420 = vmul.f32 %v2415, %v2419
          %v2421 = vadd.f32 %v2418, %v2420
          %v2422 = vmul.f32 %v941, %v2421
          %v2423 = vrot.slane %v2422, 4
          %v2424 = vadd.f32 %v2422, %v2423
          %v2425 = vrot.slane %v2424, 2
          %v2426 = vadd.f32 %v2424, %v2425
          %v2427 = vrot.slane %v2426, 1
          %v2428 = vadd.f32 %v2426, %v2427
          %v2429 = vadd.f32 %v2428, %v952
          %v2430 = vadd.f32 %v2429, %v2397
          %s2431 = sadd.s32 %s993, 4
          %s2432 = scalar_lea.vmem %s541, %s2431 [#allocation9]
          %v2433 = vld [vmem:[%s2432] sm:$0x1]
          %v2434 = vsel %vm996, %v2433, 1.0
          %v2435 = vsel %vm998, %v2434, 0.0
          %2436 = vmatprep.subr.mxu0 0.0
          %2437 = vmatpush1.msra.mxu0 %v2345
          %2438 = vmatprep.subr.mxu0 0.0
          %2439 = vmatpush1.msra.mxu0 %v2346
          %2440 = vmatprep.subr.mxu0 0.0
          %2441 = vmatpush1.msra.mxu0 %v2347
          %2442 = vmatprep.subr.mxu0 0.0
          %2443 = vmatpush1.msra.mxu0 %v2348
          %2444 = vmatprep.subr.mxu0 0.0
          %2445 = vmatpush1.msra.mxu0 %v2349
          %2446 = vmatprep.subr.mxu0 0.0
          %2447 = vmatpush1.msra.mxu0 %v2421
          %2448 = vmatprep.subr.mxu0 0.0
          %2449 = vmatpush1.msra.mxu0 %v2435
          %2450 = vmatprep.subr.mxu0 0.0
          %2451 = vmatpush1.msra.mxu0 0.0
          %2452 = vmatprep.subr.mxu0 0.0
          %2453 = vmatpush1.msra.mxu0 0.0
          %2454 = vmatprep.subr.mxu0 0.0
          %2455 = vmatpush1.msra.mxu0 0.0
          %2456 = vmatprep.subr.mxu0 0.0
          %2457 = vmatpush1.msra.mxu0 0.0
          %2458 = vmatprep.subr.mxu0 0.0
          %2459 = vmatpush1.msra.mxu0 0.0
          %2460 = vmatprep.subr.mxu0 0.0
          %2461 = vmatpush1.msra.mxu0 0.0
          %2462 = vmatprep.subr.mxu0 0.0
          %2463 = vmatpush1.msra.mxu0 0.0
          %2464 = vmatprep.subr.mxu0 0.0
          %2465 = vmatpush1.msra.mxu0 0.0
          %2466 = vmatprep.subr.mxu0 0.0
          %2467 = vmatpush1.msra.mxu0 0.0
          %2468 = vmatprep.subr.mxu0 0.0
          %2469 = vmatpush1.msra.mxu0 0.0
          %2470 = vmatprep.subr.mxu0 0.0
          %2471 = vmatpush1.msra.mxu0 0.0
          %2472 = vmatprep.subr.mxu0 0.0
          %2473 = vmatpush1.msra.mxu0 0.0
          %2474 = vmatprep.subr.mxu0 0.0
          %2475 = vmatpush1.msra.mxu0 0.0
          %2476 = vmatprep.subr.mxu0 0.0
          %2477 = vmatpush1.msra.mxu0 0.0
          %2478 = vmatprep.subr.mxu0 0.0
          %2479 = vmatpush1.msra.mxu0 0.0
          %2480 = vmatprep.subr.mxu0 0.0
          %2481 = vmatpush1.msra.mxu0 0.0
          %2482 = vmatprep.subr.mxu0 0.0
          %2483 = vmatpush1.msra.mxu0 0.0
          %2484 = vmatprep.subr.mxu0 0.0
          %2485 = vmatpush1.msra.mxu0 0.0
          %2486 = vmatprep.subr.mxu0 0.0
          %2487 = vmatpush1.msra.mxu0 0.0
          %2488 = vmatprep.subr.mxu0 0.0
          %2489 = vmatpush1.msra.mxu0 0.0
          %2490 = vmatprep.subr.mxu0 0.0
          %2491 = vmatpush1.msra.mxu0 0.0
          %2492 = vmatprep.subr.mxu0 0.0
          %2493 = vmatpush1.msra.mxu0 0.0
          %2494 = vmatprep.subr.mxu0 0.0
          %2495 = vmatpush1.msra.mxu0 0.0
          %2496 = vmatprep.subr.mxu0 0.0
          %2497 = vmatpush1.msra.mxu0 0.0
          %2498 = vmatprep.subr.mxu0 0.0
          %2499 = vmatpush1.msra.mxu0 0.0
          %2500 = vmatprep.mubr.f32.mxu0 0.0
          %2501 = vmatmul.mubr.f32.gmra.mrb[0].mxu0 %v1002
          %v2502 = vpop.f32.mrb[0].mxu0
          %v2503 = vadd.f32 0.0, %v2502
          %v2504 = vpop.f32.mrb[0].mxu0
          %2505 = vmatprep.mubr.f32.mxu0 0.0
          %2506 = vmatmul.mubr.f32.gmra.mrb[0].mxu0 %v1005
          %v2507 = vpop.f32.mrb[0].mxu0
          %v2508 = vadd.f32 0.0, %v2507
          %v2509 = vpop.f32.mrb[0].mxu0
          %2510 = vmatprep.mubr.f32.mxu0 0.0
          %2511 = vmatmul.mubr.f32.gmra.mrb[0].mxu0 %v1008
          %v2512 = vpop.f32.mrb[0].mxu0
          %v2513 = vadd.f32 0.0, %v2512
          %v2514 = vpop.f32.mrb[0].mxu0
          %2515 = vmatprep.mubr.f32.mxu0 0.0
          %2516 = vmatmul.mubr.f32.gmra.mrb[0].mxu0 %v1011
          %v2517 = vpop.f32.mrb[0].mxu0
          %v2518 = vadd.f32 0.0, %v2517
          %v2519 = vpop.f32.mrb[0].mxu0
          %2520 = vmatprep.mubr.f32.mxu0 0.0
          %2521 = vmatmul.mubr.f32.gmra.mrb[0].mxu0 %v1014
          %v2522 = vpop.f32.mrb[0].mxu0
          %v2523 = vadd.f32 0.0, %v2522
          %v2524 = vpop.f32.mrb[0].mxu0
          %2525 = vmatprep.mubr.f32.mxu0 0.0
          %2526 = vmatmul.mubr.f32.gmra.mrb[0].mxu0 %v1017
          %v2527 = vpop.f32.mrb[0].mxu0
          %v2528 = vadd.f32 0.0, %v2527
          %v2529 = vpop.f32.mrb[0].mxu0
          %2530 = vmatprep.mubr.f32.mxu0 0.0
          %2531 = vmatmul.mubr.f32.gmra.mrb[0].mxu0 %v1020
          %v2532 = vpop.f32.mrb[0].mxu0
          %v2533 = vadd.f32 0.0, %v2532
          %v2534 = vpop.f32.mrb[0].mxu0
          %2535 = vmatprep.mubr.f32.mxu0 0.0
          %2536 = vmatmul.mubr.f32.gmra.mrb[0].mxu0 %v1023
          %v2537 = vpop.f32.mrb[0].mxu0
          %v2538 = vadd.f32 0.0, %v2537
          %v2539 = vpop.f32.mrb[0].mxu0
          %2540 = vmatprep.mubr.f32.mxu0 0.0
          %2541 = vmatmul.mubr.f32.gmra.mrb[0].mxu0 %v1026
          %v2542 = vpop.f32.mrb[0].mxu0
          %v2543 = vadd.f32 0.0, %v2542
          %v2544 = vpop.f32.mrb[0].mxu0
          %2545 = vmatprep.mubr.f32.mxu0 0.0
          %2546 = vmatmul.mubr.f32.gmra.mrb[0].mxu0 %v1029
          %v2547 = vpop.f32.mrb[0].mxu0
          %v2548 = vadd.f32 0.0, %v2547
          %v2549 = vpop.f32.mrb[0].mxu0
          %2550 = vmatprep.mubr.f32.mxu0 0.0
          %2551 = vmatmul.mubr.f32.gmra.mrb[0].mxu0 %v1032
          %v2552 = vpop.f32.mrb[0].mxu0
          %v2553 = vadd.f32 0.0, %v2552
          %v2554 = vpop.f32.mrb[0].mxu0
          %2555 = vmatprep.mubr.f32.mxu0 0.0
          %2556 = vmatmul.mubr.f32.gmra.mrb[0].mxu0 %v1035
          %v2557 = vpop.f32.mrb[0].mxu0
          %v2558 = vadd.f32 0.0, %v2557
          %v2559 = vpop.f32.mrb[0].mxu0
          %2560 = vmatprep.mubr.f32.mxu0 0.0
          %2561 = vmatmul.mubr.f32.gmra.mrb[0].mxu0 %v1038
          %v2562 = vpop.f32.mrb[0].mxu0
          %v2563 = vadd.f32 0.0, %v2562
          %v2564 = vpop.f32.mrb[0].mxu0
          %2565 = vmatprep.mubr.f32.mxu0 0.0
          %2566 = vmatmul.mubr.f32.gmra.mrb[0].mxu0 %v1041
          %v2567 = vpop.f32.mrb[0].mxu0
          %v2568 = vadd.f32 0.0, %v2567
          %v2569 = vpop.f32.mrb[0].mxu0
          %2570 = vmatprep.mubr.f32.mxu0 0.0
          %2571 = vmatmul.mubr.f32.gmra.mrb[0].mxu0 %v1044
          %v2572 = vpop.f32.mrb[0].mxu0
          %v2573 = vadd.f32 0.0, %v2572
          %v2574 = vpop.f32.mrb[0].mxu0
          %2575 = vmatprep.mubr.f32.mxu0 0.0
          %2576 = vmatmul.mubr.f32.gmra.mrb[0].mxu0 %v1047
          %v2577 = vpop.f32.mrb[0].mxu0
          %v2578 = vadd.f32 0.0, %v2577
          %v2579 = vpop.f32.mrb[0].mxu0
          %2580 = vmatprep.mubr.f32.mxu0 0.0
          %2581 = vmatmul.mubr.f32.gmra.mrb[0].mxu0 %v1050
          %v2582 = vpop.f32.mrb[0].mxu0
          %v2583 = vadd.f32 0.0, %v2582
          %v2584 = vpop.f32.mrb[0].mxu0
          %2585 = vmatprep.mubr.f32.mxu0 0.0
          %2586 = vmatmul.mubr.f32.gmra.mrb[0].mxu0 %v1053
          %v2587 = vpop.f32.mrb[0].mxu0
          %v2588 = vadd.f32 0.0, %v2587
          %v2589 = vpop.f32.mrb[0].mxu0
          %2590 = vmatprep.mubr.f32.mxu0 0.0
          %2591 = vmatmul.mubr.f32.gmra.mrb[0].mxu0 %v1056
          %v2592 = vpop.f32.mrb[0].mxu0
          %v2593 = vadd.f32 0.0, %v2592
          %v2594 = vpop.f32.mrb[0].mxu0
          %2595 = vmatprep.mubr.f32.mxu0 0.0
          %2596 = vmatmul.mubr.f32.gmra.mrb[0].mxu0 %v1059
          %v2597 = vpop.f32.mrb[0].mxu0
          %v2598 = vadd.f32 0.0, %v2597
          %v2599 = vpop.f32.mrb[0].mxu0
          %2600 = vmatprep.mubr.f32.mxu0 0.0
          %2601 = vmatmul.mubr.f32.gmra.mrb[0].mxu0 %v1062
          %v2602 = vpop.f32.mrb[0].mxu0
          %v2603 = vadd.f32 0.0, %v2602
          %v2604 = vpop.f32.mrb[0].mxu0
          %2605 = vmatprep.mubr.f32.mxu0 0.0
          %2606 = vmatmul.mubr.f32.gmra.mrb[0].mxu0 %v1065
          %v2607 = vpop.f32.mrb[0].mxu0
          %v2608 = vadd.f32 0.0, %v2607
          %v2609 = vpop.f32.mrb[0].mxu0
          %2610 = vmatprep.mubr.f32.mxu0 0.0
          %2611 = vmatmul.mubr.f32.gmra.mrb[0].mxu0 %v1068
          %v2612 = vpop.f32.mrb[0].mxu0
          %v2613 = vadd.f32 0.0, %v2612
          %v2614 = vpop.f32.mrb[0].mxu0
          %2615 = vdwg.mxu0
          %v2616 = vtanh.pop %v2503
          %v2617 = vtanh.pop %v2508
          %v2618 = vtanh.pop %v2513
          %v2619 = vtanh.pop %v2518
          %v2620 = vtanh.pop %v2523
          %v2621 = vtanh.pop %v2528
          %v2622 = vtanh.pop %v2533
          %v2623 = vtanh.pop %v2538
          %v2624 = vtanh.pop %v2543
          %v2625 = vtanh.pop %v2548
          %v2626 = vtanh.pop %v2553
          %v2627 = vtanh.pop %v2558
          %v2628 = vtanh.pop %v2563
          %v2629 = vtanh.pop %v2568
          %v2630 = vtanh.pop %v2573
          %v2631 = vtanh.pop %v2578
          %v2632 = vtanh.pop %v2583
          %v2633 = vtanh.pop %v2588
          %v2634 = vtanh.pop %v2593
          %v2635 = vtanh.pop %v2598
          %v2636 = vmul.f32 %v2616, 0.5
          %v2637 = vmul.f32 %v2617, 0.5
          %v2638 = vmul.f32 %v2618, 0.5
          %v2639 = vmul.f32 %v2619, 0.5
          %v2640 = vmul.f32 %v2620, 0.5
          %v2641 = vadd.f32 %v2636, 0.5
          %v2642 = vadd.f32 %v2637, 0.5
          %v2643 = vadd.f32 %v2638, 0.5
          %v2644 = vadd.f32 %v2639, 0.5
          %v2645 = vadd.f32 %v2640, 0.5
          %v2646 = vmul.f32 %v2621, 0.5
          %v2647 = vmul.f32 %v2622, 0.5
          %v2648 = vmul.f32 %v2623, 0.5
          %v2649 = vmul.f32 %v2624, 0.5
          %v2650 = vmul.f32 %v2625, 0.5
          %v2651 = vadd.f32 %v2646, 0.5
          %v2652 = vadd.f32 %v2647, 0.5
          %v2653 = vadd.f32 %v2648, 0.5
          %v2654 = vadd.f32 %v2649, 0.5
          %v2655 = vadd.f32 %v2650, 0.5
          %v2656 = vmul.f32 %v2631, 0.5
          %v2657 = vmul.f32 %v2632, 0.5
          %v2658 = vmul.f32 %v2633, 0.5
          %v2659 = vmul.f32 %v2634, 0.5
          %v2660 = vmul.f32 %v2635, 0.5
          %v2661 = vadd.f32 %v2656, 0.5
          %v2662 = vadd.f32 %v2657, 0.5
          %v2663 = vadd.f32 %v2658, 0.5
          %v2664 = vadd.f32 %v2659, 0.5
          %v2665 = vadd.f32 %v2660, 0.5
          %v2666 = vmul.f32 %v2651, %v2335
          %v2667 = vmul.f32 %v2652, %v2336
          %v2668 = vmul.f32 %v2653, %v2337
          %v2669 = vmul.f32 %v2654, %v2338
          %v2670 = vmul.f32 %v2655, %v2339
          %v2671 = vmul.f32 %v2641, %v2626
          %v2672 = vmul.f32 %v2642, %v2627
          %v2673 = vmul.f32 %v2643, %v2628
          %v2674 = vmul.f32 %v2644, %v2629
          %v2675 = vmul.f32 %v2645, %v2630
          %v2676 = vadd.f32 %v2666, %v2671
          %v2677 = vadd.f32 %v2667, %v2672
          %v2678 = vadd.f32 %v2668, %v2673
          %v2679 = vadd.f32 %v2669, %v2674
          %v2680 = vadd.f32 %v2670, %v2675
          %v2681 = vtanh.pop %v2676
          %v2682 = vtanh.pop %v2677
          %v2683 = vtanh.pop %v2678
          %v2684 = vtanh.pop %v2679
          %v2685 = vtanh.pop %v2680
          %v2686 = vmul.f32 %v2661, %v2681
          %v2687 = vmul.f32 %v2662, %v2682
          %v2688 = vmul.f32 %v2663, %v2683
          %v2689 = vmul.f32 %v2664, %v2684
          %v2690 = vmul.f32 %v2665, %v2685
          %v2691 = vmul.f32 %v905, %v2686
          %v2692 = vmul.f32 %v910, %v2687
          %v2693 = vmul.f32 %v915, %v2688
          %v2694 = vmul.f32 %v920, %v2689
          %v2695 = vmul.f32 %v925, %v2690
          %v2696 = vadd.f32 %v2691, %v2692
          %v2697 = vadd.f32 %v2696, %v2693
          %v2698 = vadd.f32 %v2697, %v2694
          %v2699 = vadd.f32 %v2698, %v2695
          %v2700 = vrot.slane %v2699, 4
          %v2701 = vadd.f32 %v2699, %v2700
          %v2702 = vrot.slane %v2701, 2
          %v2703 = vadd.f32 %v2701, %v2702
          %v2704 = vrot.slane %v2703, 1
          %v2705 = vadd.f32 %v2703, %v2704
          %v2706 = vadd.f32 %v2705, %v936
          %v2707 = vadd.f32 %v2706, %v2433
          %v2708 = vmul.f32 %v837, %v2707
          %v2710 = vrot.slane %v2366, 7
          %v2712 = vmul.f32 %v837, %v2710
          %v2714 = vrot.slane %v2712, 1
          %v2716 = vadd.f32 %v2708, %v2714
          %v2717 = vrot.slane %v2025, 6
          %v2719 = vmul.f32 %v837, %v2717
          %v2721 = vrot.slane %v2719, 2
          %v2723 = vadd.f32 %v2716, %v2721
          %v2725 = vrot.slane %v2397, 5
          %v2727 = vmul.f32 %v837, %v2725
          %v2729 = vrot.slane %v2727, 3
          %v2731 = vsub.f32 %v2723, %v2729
          %v2732 = vrot.slane %v2056, 4
          %v2734 = vmul.f32 %v837, %v2732
          %v2736 = vrot.slane %v2734, 4
          %v2738 = vsub.f32 %v2731, %v2736
          %v2739 = vlaneseq
          %v2740 = vshrl.u32 %v2739, 7
          %v2741 = vsub.s32 0, %v2740
          %v2742 = vrot.slane %v2738, %v2741
          %v2743 = vmul.f32 %v867, %v2742
          %v2744 = vmul.f32 %v872, %v2742
          %v2745 = vmul.f32 %v877, %v2742
          %v2746 = vadd.f32 %v2743, %v885
          %v2747 = vadd.f32 %v2744, %v890
          %v2748 = vadd.f32 %v2745, %v895
          %v2749 = vadd.f32 %v2746, %v2603
          %v2750 = vadd.f32 %v2747, %v2608
          %v2751 = vtanh.pop %v2749
          %v2752 = vtanh.pop %v2750
          %v2753 = vmul.f32 %v2751, 0.5
          %v2754 = vmul.f32 %v2752, 0.5
          %v2755 = vadd.f32 %v2753, 0.5
          %v2756 = vadd.f32 %v2754, 0.5
          %v2757 = vmul.f32 %v2755, %v2613
          %v2758 = vadd.f32 %v2748, %v2757
          %v2759 = vtanh.pop %v2758
          %v2760 = vsub.f32 %v2421, %v2759
          %v2761 = vmul.f32 %v2756, %v2760
          %v2762 = vadd.f32 %v2759, %v2761
          %v2763 = vmul.f32 %v941, %v2762
          %v2764 = vrot.slane %v2763, 4
          %v2765 = vadd.f32 %v2763, %v2764
          %v2766 = vrot.slane %v2765, 2
          %v2767 = vadd.f32 %v2765, %v2766
          %v2768 = vrot.slane %v2767, 1
          %v2769 = vadd.f32 %v2767, %v2768
          %v2770 = vadd.f32 %v2769, %v952
          %v2771 = vadd.f32 %v2770, %v2738
          %s2772 = sadd.s32 %s993, 5
          %s2773 = scalar_lea.vmem %s541, %s2772 [#allocation9]
          %v2774 = vld [vmem:[%s2773] sm:$0x1]
          %v2775 = vsel %vm996, %v2774, 1.0
          %v2776 = vsel %vm998, %v2775, 0.0
          %2777 = vmatprep.subr.mxu0 0.0
          %2778 = vmatpush1.msra.mxu0 %v2686
          %2779 = vmatprep.subr.mxu0 0.0
          %2780 = vmatpush1.msra.mxu0 %v2687
          %2781 = vmatprep.subr.mxu0 0.0
          %2782 = vmatpush1.msra.mxu0 %v2688
          %2783 = vmatprep.subr.mxu0 0.0
          %2784 = vmatpush1.msra.mxu0 %v2689
          %2785 = vmatprep.subr.mxu0 0.0
          %2786 = vmatpush1.msra.mxu0 %v2690
          %2787 = vmatprep.subr.mxu0 0.0
          %2788 = vmatpush1.msra.mxu0 %v2762
          %2789 = vmatprep.subr.mxu0 0.0
          %2790 = vmatpush1.msra.mxu0 %v2776
          %2791 = vmatprep.subr.mxu0 0.0
          %2792 = vmatpush1.msra.mxu0 0.0
          %2793 = vmatprep.subr.mxu0 0.0
          %2794 = vmatpush1.msra.mxu0 0.0
          %2795 = vmatprep.subr.mxu0 0.0
          %2796 = vmatpush1.msra.mxu0 0.0
          %2797 = vmatprep.subr.mxu0 0.0
          %2798 = vmatpush1.msra.mxu0 0.0
          %2799 = vmatprep.subr.mxu0 0.0
          %2800 = vmatpush1.msra.mxu0 0.0
          %2801 = vmatprep.subr.mxu0 0.0
          %2802 = vmatpush1.msra.mxu0 0.0
          %2803 = vmatprep.subr.mxu0 0.0
          %2804 = vmatpush1.msra.mxu0 0.0
          %2805 = vmatprep.subr.mxu0 0.0
          %2806 = vmatpush1.msra.mxu0 0.0
          %2807 = vmatprep.subr.mxu0 0.0
          %2808 = vmatpush1.msra.mxu0 0.0
          %2809 = vmatprep.subr.mxu0 0.0
          %2810 = vmatpush1.msra.mxu0 0.0
          %2811 = vmatprep.subr.mxu0 0.0
          %2812 = vmatpush1.msra.mxu0 0.0
          %2813 = vmatprep.subr.mxu0 0.0
          %2814 = vmatpush1.msra.mxu0 0.0
          %2815 = vmatprep.subr.mxu0 0.0
          %2816 = vmatpush1.msra.mxu0 0.0
          %2817 = vmatprep.subr.mxu0 0.0
          %2818 = vmatpush1.msra.mxu0 0.0
          %2819 = vmatprep.subr.mxu0 0.0
          %2820 = vmatpush1.msra.mxu0 0.0
          %2821 = vmatprep.subr.mxu0 0.0
          %2822 = vmatpush1.msra.mxu0 0.0
          %2823 = vmatprep.subr.mxu0 0.0
          %2824 = vmatpush1.msra.mxu0 0.0
          %2825 = vmatprep.subr.mxu0 0.0
          %2826 = vmatpush1.msra.mxu0 0.0
          %2827 = vmatprep.subr.mxu0 0.0
          %2828 = vmatpush1.msra.mxu0 0.0
          %2829 = vmatprep.subr.mxu0 0.0
          %2830 = vmatpush1.msra.mxu0 0.0
          %2831 = vmatprep.subr.mxu0 0.0
          %2832 = vmatpush1.msra.mxu0 0.0
          %2833 = vmatprep.subr.mxu0 0.0
          %2834 = vmatpush1.msra.mxu0 0.0
          %2835 = vmatprep.subr.mxu0 0.0
          %2836 = vmatpush1.msra.mxu0 0.0
          %2837 = vmatprep.subr.mxu0 0.0
          %2838 = vmatpush1.msra.mxu0 0.0
          %2839 = vmatprep.subr.mxu0 0.0
          %2840 = vmatpush1.msra.mxu0 0.0
          %2841 = vmatprep.mubr.f32.mxu0 0.0
          %2842 = vmatmul.mubr.f32.gmra.mrb[0].mxu0 %v1002
          %v2843 = vpop.f32.mrb[0].mxu0
          %v2844 = vadd.f32 0.0, %v2843
          %v2845 = vpop.f32.mrb[0].mxu0
          %2846 = vmatprep.mubr.f32.mxu0 0.0
          %2847 = vmatmul.mubr.f32.gmra.mrb[0].mxu0 %v1005
          %v2848 = vpop.f32.mrb[0].mxu0
          %v2849 = vadd.f32 0.0, %v2848
          %v2850 = vpop.f32.mrb[0].mxu0
          %2851 = vmatprep.mubr.f32.mxu0 0.0
          %2852 = vmatmul.mubr.f32.gmra.mrb[0].mxu0 %v1008
          %v2853 = vpop.f32.mrb[0].mxu0
          %v2854 = vadd.f32 0.0, %v2853
          %v2855 = vpop.f32.mrb[0].mxu0
          %2856 = vmatprep.mubr.f32.mxu0 0.0
          %2857 = vmatmul.mubr.f32.gmra.mrb[0].mxu0 %v1011
          %v2858 = vpop.f32.mrb[0].mxu0
          %v2859 = vadd.f32 0.0, %v2858
          %v2860 = vpop.f32.mrb[0].mxu0
          %2861 = vmatprep.mubr.f32.mxu0 0.0
          %2862 = vmatmul.mubr.f32.gmra.mrb[0].mxu0 %v1014
          %v2863 = vpop.f32.mrb[0].mxu0
          %v2864 = vadd.f32 0.0, %v2863
          %v2865 = vpop.f32.mrb[0].mxu0
          %2866 = vmatprep.mubr.f32.mxu0 0.0
          %2867 = vmatmul.mubr.f32.gmra.mrb[0].mxu0 %v1017
          %v2868 = vpop.f32.mrb[0].mxu0
          %v2869 = vadd.f32 0.0, %v2868
          %v2870 = vpop.f32.mrb[0].mxu0
          %2871 = vmatprep.mubr.f32.mxu0 0.0
          %2872 = vmatmul.mubr.f32.gmra.mrb[0].mxu0 %v1020
          %v2873 = vpop.f32.mrb[0].mxu0
          %v2874 = vadd.f32 0.0, %v2873
          %v2875 = vpop.f32.mrb[0].mxu0
          %2876 = vmatprep.mubr.f32.mxu0 0.0
          %2877 = vmatmul.mubr.f32.gmra.mrb[0].mxu0 %v1023
          %v2878 = vpop.f32.mrb[0].mxu0
          %v2879 = vadd.f32 0.0, %v2878
          %v2880 = vpop.f32.mrb[0].mxu0
          %2881 = vmatprep.mubr.f32.mxu0 0.0
          %2882 = vmatmul.mubr.f32.gmra.mrb[0].mxu0 %v1026
          %v2883 = vpop.f32.mrb[0].mxu0
          %v2884 = vadd.f32 0.0, %v2883
          %v2885 = vpop.f32.mrb[0].mxu0
          %2886 = vmatprep.mubr.f32.mxu0 0.0
          %2887 = vmatmul.mubr.f32.gmra.mrb[0].mxu0 %v1029
          %v2888 = vpop.f32.mrb[0].mxu0
          %v2889 = vadd.f32 0.0, %v2888
          %v2890 = vpop.f32.mrb[0].mxu0
          %2891 = vmatprep.mubr.f32.mxu0 0.0
          %2892 = vmatmul.mubr.f32.gmra.mrb[0].mxu0 %v1032
          %v2893 = vpop.f32.mrb[0].mxu0
          %v2894 = vadd.f32 0.0, %v2893
          %v2895 = vpop.f32.mrb[0].mxu0
          %2896 = vmatprep.mubr.f32.mxu0 0.0
          %2897 = vmatmul.mubr.f32.gmra.mrb[0].mxu0 %v1035
          %v2898 = vpop.f32.mrb[0].mxu0
          %v2899 = vadd.f32 0.0, %v2898
          %v2900 = vpop.f32.mrb[0].mxu0
          %2901 = vmatprep.mubr.f32.mxu0 0.0
          %2902 = vmatmul.mubr.f32.gmra.mrb[0].mxu0 %v1038
          %v2903 = vpop.f32.mrb[0].mxu0
          %v2904 = vadd.f32 0.0, %v2903
          %v2905 = vpop.f32.mrb[0].mxu0
          %2906 = vmatprep.mubr.f32.mxu0 0.0
          %2907 = vmatmul.mubr.f32.gmra.mrb[0].mxu0 %v1041
          %v2908 = vpop.f32.mrb[0].mxu0
          %v2909 = vadd.f32 0.0, %v2908
          %v2910 = vpop.f32.mrb[0].mxu0
          %2911 = vmatprep.mubr.f32.mxu0 0.0
          %2912 = vmatmul.mubr.f32.gmra.mrb[0].mxu0 %v1044
          %v2913 = vpop.f32.mrb[0].mxu0
          %v2914 = vadd.f32 0.0, %v2913
          %v2915 = vpop.f32.mrb[0].mxu0
          %2916 = vmatprep.mubr.f32.mxu0 0.0
          %2917 = vmatmul.mubr.f32.gmra.mrb[0].mxu0 %v1047
          %v2918 = vpop.f32.mrb[0].mxu0
          %v2919 = vadd.f32 0.0, %v2918
          %v2920 = vpop.f32.mrb[0].mxu0
          %2921 = vmatprep.mubr.f32.mxu0 0.0
          %2922 = vmatmul.mubr.f32.gmra.mrb[0].mxu0 %v1050
          %v2923 = vpop.f32.mrb[0].mxu0
          %v2924 = vadd.f32 0.0, %v2923
          %v2925 = vpop.f32.mrb[0].mxu0
          %2926 = vmatprep.mubr.f32.mxu0 0.0
          %2927 = vmatmul.mubr.f32.gmra.mrb[0].mxu0 %v1053
          %v2928 = vpop.f32.mrb[0].mxu0
          %v2929 = vadd.f32 0.0, %v2928
          %v2930 = vpop.f32.mrb[0].mxu0
          %2931 = vmatprep.mubr.f32.mxu0 0.0
          %2932 = vmatmul.mubr.f32.gmra.mrb[0].mxu0 %v1056
          %v2933 = vpop.f32.mrb[0].mxu0
          %v2934 = vadd.f32 0.0, %v2933
          %v2935 = vpop.f32.mrb[0].mxu0
          %2936 = vmatprep.mubr.f32.mxu0 0.0
          %2937 = vmatmul.mubr.f32.gmra.mrb[0].mxu0 %v1059
          %v2938 = vpop.f32.mrb[0].mxu0
          %v2939 = vadd.f32 0.0, %v2938
          %v2940 = vpop.f32.mrb[0].mxu0
          %2941 = vmatprep.mubr.f32.mxu0 0.0
          %2942 = vmatmul.mubr.f32.gmra.mrb[0].mxu0 %v1062
          %v2943 = vpop.f32.mrb[0].mxu0
          %v2944 = vadd.f32 0.0, %v2943
          %v2945 = vpop.f32.mrb[0].mxu0
          %2946 = vmatprep.mubr.f32.mxu0 0.0
          %2947 = vmatmul.mubr.f32.gmra.mrb[0].mxu0 %v1065
          %v2948 = vpop.f32.mrb[0].mxu0
          %v2949 = vadd.f32 0.0, %v2948
          %v2950 = vpop.f32.mrb[0].mxu0
          %2951 = vmatprep.mubr.f32.mxu0 0.0
          %2952 = vmatmul.mubr.f32.gmra.mrb[0].mxu0 %v1068
          %v2953 = vpop.f32.mrb[0].mxu0
          %v2954 = vadd.f32 0.0, %v2953
          %v2955 = vpop.f32.mrb[0].mxu0
          %2956 = vdwg.mxu0
          %v2957 = vtanh.pop %v2844
          %v2958 = vtanh.pop %v2849
          %v2959 = vtanh.pop %v2854
          %v2960 = vtanh.pop %v2859
          %v2961 = vtanh.pop %v2864
          %v2962 = vtanh.pop %v2869
          %v2963 = vtanh.pop %v2874
          %v2964 = vtanh.pop %v2879
          %v2965 = vtanh.pop %v2884
          %v2966 = vtanh.pop %v2889
          %v2967 = vtanh.pop %v2894
          %v2968 = vtanh.pop %v2899
          %v2969 = vtanh.pop %v2904
          %v2970 = vtanh.pop %v2909
          %v2971 = vtanh.pop %v2914
          %v2972 = vtanh.pop %v2919
          %v2973 = vtanh.pop %v2924
          %v2974 = vtanh.pop %v2929
          %v2975 = vtanh.pop %v2934
          %v2976 = vtanh.pop %v2939
          %v2977 = vmul.f32 %v2957, 0.5
          %v2978 = vmul.f32 %v2958, 0.5
          %v2979 = vmul.f32 %v2959, 0.5
          %v2980 = vmul.f32 %v2960, 0.5
          %v2981 = vmul.f32 %v2961, 0.5
          %v2982 = vadd.f32 %v2977, 0.5
          %v2983 = vadd.f32 %v2978, 0.5
          %v2984 = vadd.f32 %v2979, 0.5
          %v2985 = vadd.f32 %v2980, 0.5
          %v2986 = vadd.f32 %v2981, 0.5
          %v2987 = vmul.f32 %v2962, 0.5
          %v2988 = vmul.f32 %v2963, 0.5
          %v2989 = vmul.f32 %v2964, 0.5
          %v2990 = vmul.f32 %v2965, 0.5
          %v2991 = vmul.f32 %v2966, 0.5
          %v2992 = vadd.f32 %v2987, 0.5
          %v2993 = vadd.f32 %v2988, 0.5
          %v2994 = vadd.f32 %v2989, 0.5
          %v2995 = vadd.f32 %v2990, 0.5
          %v2996 = vadd.f32 %v2991, 0.5
          %v2997 = vmul.f32 %v2972, 0.5
          %v2998 = vmul.f32 %v2973, 0.5
          %v2999 = vmul.f32 %v2974, 0.5
          %v3000 = vmul.f32 %v2975, 0.5
          %v3001 = vmul.f32 %v2976, 0.5
          %v3002 = vadd.f32 %v2997, 0.5
          %v3003 = vadd.f32 %v2998, 0.5
          %v3004 = vadd.f32 %v2999, 0.5
          %v3005 = vadd.f32 %v3000, 0.5
          %v3006 = vadd.f32 %v3001, 0.5
          %v3007 = vmul.f32 %v2992, %v2676
          %v3008 = vmul.f32 %v2993, %v2677
          %v3009 = vmul.f32 %v2994, %v2678
          %v3010 = vmul.f32 %v2995, %v2679
          %v3011 = vmul.f32 %v2996, %v2680
          %v3012 = vmul.f32 %v2982, %v2967
          %v3013 = vmul.f32 %v2983, %v2968
          %v3014 = vmul.f32 %v2984, %v2969
          %v3015 = vmul.f32 %v2985, %v2970
          %v3016 = vmul.f32 %v2986, %v2971
          %v3017 = vadd.f32 %v3007, %v3012
          %v3018 = vadd.f32 %v3008, %v3013
          %v3019 = vadd.f32 %v3009, %v3014
          %v3020 = vadd.f32 %v3010, %v3015
          %v3021 = vadd.f32 %v3011, %v3016
          %v3022 = vtanh.pop %v3017
          %v3023 = vtanh.pop %v3018
          %v3024 = vtanh.pop %v3019
          %v3025 = vtanh.pop %v3020
          %v3026 = vtanh.pop %v3021
          %v3027 = vmul.f32 %v3002, %v3022
          %v3028 = vmul.f32 %v3003, %v3023
          %v3029 = vmul.f32 %v3004, %v3024
          %v3030 = vmul.f32 %v3005, %v3025
          %v3031 = vmul.f32 %v3006, %v3026
          %v3032 = vmul.f32 %v905, %v3027
          %v3033 = vmul.f32 %v910, %v3028
          %v3034 = vmul.f32 %v915, %v3029
          %v3035 = vmul.f32 %v920, %v3030
          %v3036 = vmul.f32 %v925, %v3031
          %v3037 = vadd.f32 %v3032, %v3033
          %v3038 = vadd.f32 %v3037, %v3034
          %v3039 = vadd.f32 %v3038, %v3035
          %v3040 = vadd.f32 %v3039, %v3036
          %v3041 = vrot.slane %v3040, 4
          %v3042 = vadd.f32 %v3040, %v3041
          %v3043 = vrot.slane %v3042, 2
          %v3044 = vadd.f32 %v3042, %v3043
          %v3045 = vrot.slane %v3044, 1
          %v3046 = vadd.f32 %v3044, %v3045
          %v3047 = vadd.f32 %v3046, %v936
          %v3048 = vadd.f32 %v3047, %v2774
          %v3049 = vmul.f32 %v837, %v3048
          %v3051 = vrot.slane %v2707, 7
          %v3053 = vmul.f32 %v837, %v3051
          %v3055 = vrot.slane %v3053, 1
          %v3057 = vadd.f32 %v3049, %v3055
          %v3058 = vrot.slane %v2366, 6
          %v3060 = vmul.f32 %v837, %v3058
          %v3062 = vrot.slane %v3060, 2
          %v3064 = vadd.f32 %v3057, %v3062
          %v3066 = vrot.slane %v2738, 5
          %v3068 = vmul.f32 %v837, %v3066
          %v3070 = vrot.slane %v3068, 3
          %v3072 = vsub.f32 %v3064, %v3070
          %v3073 = vrot.slane %v2397, 4
          %v3075 = vmul.f32 %v837, %v3073
          %v3077 = vrot.slane %v3075, 4
          %v3079 = vsub.f32 %v3072, %v3077
          %v3080 = vlaneseq
          %v3081 = vshrl.u32 %v3080, 7
          %v3082 = vsub.s32 0, %v3081
          %v3083 = vrot.slane %v3079, %v3082
          %v3084 = vmul.f32 %v867, %v3083
          %v3085 = vmul.f32 %v872, %v3083
          %v3086 = vmul.f32 %v877, %v3083
          %v3087 = vadd.f32 %v3084, %v885
          %v3088 = vadd.f32 %v3085, %v890
          %v3089 = vadd.f32 %v3086, %v895
          %v3090 = vadd.f32 %v3087, %v2944
          %v3091 = vadd.f32 %v3088, %v2949
          %v3092 = vtanh.pop %v3090
          %v3093 = vtanh.pop %v3091
          %v3094 = vmul.f32 %v3092, 0.5
          %v3095 = vmul.f32 %v3093, 0.5
          %v3096 = vadd.f32 %v3094, 0.5
          %v3097 = vadd.f32 %v3095, 0.5
          %v3098 = vmul.f32 %v3096, %v2954
          %v3099 = vadd.f32 %v3089, %v3098
          %v3100 = vtanh.pop %v3099
          %v3101 = vsub.f32 %v2762, %v3100
          %v3102 = vmul.f32 %v3097, %v3101
          %v3103 = vadd.f32 %v3100, %v3102
          %v3104 = vmul.f32 %v941, %v3103
          %v3105 = vrot.slane %v3104, 4
          %v3106 = vadd.f32 %v3104, %v3105
          %v3107 = vrot.slane %v3106, 2
          %v3108 = vadd.f32 %v3106, %v3107
          %v3109 = vrot.slane %v3108, 1
          %v3110 = vadd.f32 %v3108, %v3109
          %v3111 = vadd.f32 %v3110, %v952
          %v3112 = vadd.f32 %v3111, %v3079
          %s3113 = sadd.s32 %s993, 6
          %s3114 = scalar_lea.vmem %s541, %s3113 [#allocation9]
          %v3115 = vld [vmem:[%s3114] sm:$0x1]
          %v3116 = vsel %vm996, %v3115, 1.0
          %v3117 = vsel %vm998, %v3116, 0.0
          %3118 = vmatprep.subr.mxu0 0.0
          %3119 = vmatpush1.msra.mxu0 %v3027
          %3120 = vmatprep.subr.mxu0 0.0
          %3121 = vmatpush1.msra.mxu0 %v3028
          %3122 = vmatprep.subr.mxu0 0.0
          %3123 = vmatpush1.msra.mxu0 %v3029
          %3124 = vmatprep.subr.mxu0 0.0
          %3125 = vmatpush1.msra.mxu0 %v3030
          %3126 = vmatprep.subr.mxu0 0.0
          %3127 = vmatpush1.msra.mxu0 %v3031
          %3128 = vmatprep.subr.mxu0 0.0
          %3129 = vmatpush1.msra.mxu0 %v3103
          %3130 = vmatprep.subr.mxu0 0.0
          %3131 = vmatpush1.msra.mxu0 %v3117
          %3132 = vmatprep.subr.mxu0 0.0
          %3133 = vmatpush1.msra.mxu0 0.0
          %3134 = vmatprep.subr.mxu0 0.0
          %3135 = vmatpush1.msra.mxu0 0.0
          %3136 = vmatprep.subr.mxu0 0.0
          %3137 = vmatpush1.msra.mxu0 0.0
          %3138 = vmatprep.subr.mxu0 0.0
          %3139 = vmatpush1.msra.mxu0 0.0
          %3140 = vmatprep.subr.mxu0 0.0
          %3141 = vmatpush1.msra.mxu0 0.0
          %3142 = vmatprep.subr.mxu0 0.0
          %3143 = vmatpush1.msra.mxu0 0.0
          %3144 = vmatprep.subr.mxu0 0.0
          %3145 = vmatpush1.msra.mxu0 0.0
          %3146 = vmatprep.subr.mxu0 0.0
          %3147 = vmatpush1.msra.mxu0 0.0
          %3148 = vmatprep.subr.mxu0 0.0
          %3149 = vmatpush1.msra.mxu0 0.0
          %3150 = vmatprep.subr.mxu0 0.0
          %3151 = vmatpush1.msra.mxu0 0.0
          %3152 = vmatprep.subr.mxu0 0.0
          %3153 = vmatpush1.msra.mxu0 0.0
          %3154 = vmatprep.subr.mxu0 0.0
          %3155 = vmatpush1.msra.mxu0 0.0
          %3156 = vmatprep.subr.mxu0 0.0
          %3157 = vmatpush1.msra.mxu0 0.0
          %3158 = vmatprep.subr.mxu0 0.0
          %3159 = vmatpush1.msra.mxu0 0.0
          %3160 = vmatprep.subr.mxu0 0.0
          %3161 = vmatpush1.msra.mxu0 0.0
          %3162 = vmatprep.subr.mxu0 0.0
          %3163 = vmatpush1.msra.mxu0 0.0
          %3164 = vmatprep.subr.mxu0 0.0
          %3165 = vmatpush1.msra.mxu0 0.0
          %3166 = vmatprep.subr.mxu0 0.0
          %3167 = vmatpush1.msra.mxu0 0.0
          %3168 = vmatprep.subr.mxu0 0.0
          %3169 = vmatpush1.msra.mxu0 0.0
          %3170 = vmatprep.subr.mxu0 0.0
          %3171 = vmatpush1.msra.mxu0 0.0
          %3172 = vmatprep.subr.mxu0 0.0
          %3173 = vmatpush1.msra.mxu0 0.0
          %3174 = vmatprep.subr.mxu0 0.0
          %3175 = vmatpush1.msra.mxu0 0.0
          %3176 = vmatprep.subr.mxu0 0.0
          %3177 = vmatpush1.msra.mxu0 0.0
          %3178 = vmatprep.subr.mxu0 0.0
          %3179 = vmatpush1.msra.mxu0 0.0
          %3180 = vmatprep.subr.mxu0 0.0
          %3181 = vmatpush1.msra.mxu0 0.0
          %3182 = vmatprep.mubr.f32.mxu0 0.0
          %3183 = vmatmul.mubr.f32.gmra.mrb[0].mxu0 %v1002
          %v3184 = vpop.f32.mrb[0].mxu0
          %v3185 = vadd.f32 0.0, %v3184
          %v3186 = vpop.f32.mrb[0].mxu0
          %3187 = vmatprep.mubr.f32.mxu0 0.0
          %3188 = vmatmul.mubr.f32.gmra.mrb[0].mxu0 %v1005
          %v3189 = vpop.f32.mrb[0].mxu0
          %v3190 = vadd.f32 0.0, %v3189
          %v3191 = vpop.f32.mrb[0].mxu0
          %3192 = vmatprep.mubr.f32.mxu0 0.0
          %3193 = vmatmul.mubr.f32.gmra.mrb[0].mxu0 %v1008
          %v3194 = vpop.f32.mrb[0].mxu0
          %v3195 = vadd.f32 0.0, %v3194
          %v3196 = vpop.f32.mrb[0].mxu0
          %3197 = vmatprep.mubr.f32.mxu0 0.0
          %3198 = vmatmul.mubr.f32.gmra.mrb[0].mxu0 %v1011
          %v3199 = vpop.f32.mrb[0].mxu0
          %v3200 = vadd.f32 0.0, %v3199
          %v3201 = vpop.f32.mrb[0].mxu0
          %3202 = vmatprep.mubr.f32.mxu0 0.0
          %3203 = vmatmul.mubr.f32.gmra.mrb[0].mxu0 %v1014
          %v3204 = vpop.f32.mrb[0].mxu0
          %v3205 = vadd.f32 0.0, %v3204
          %v3206 = vpop.f32.mrb[0].mxu0
          %3207 = vmatprep.mubr.f32.mxu0 0.0
          %3208 = vmatmul.mubr.f32.gmra.mrb[0].mxu0 %v1017
          %v3209 = vpop.f32.mrb[0].mxu0
          %v3210 = vadd.f32 0.0, %v3209
          %v3211 = vpop.f32.mrb[0].mxu0
          %3212 = vmatprep.mubr.f32.mxu0 0.0
          %3213 = vmatmul.mubr.f32.gmra.mrb[0].mxu0 %v1020
          %v3214 = vpop.f32.mrb[0].mxu0
          %v3215 = vadd.f32 0.0, %v3214
          %v3216 = vpop.f32.mrb[0].mxu0
          %3217 = vmatprep.mubr.f32.mxu0 0.0
          %3218 = vmatmul.mubr.f32.gmra.mrb[0].mxu0 %v1023
          %v3219 = vpop.f32.mrb[0].mxu0
          %v3220 = vadd.f32 0.0, %v3219
          %v3221 = vpop.f32.mrb[0].mxu0
          %3222 = vmatprep.mubr.f32.mxu0 0.0
          %3223 = vmatmul.mubr.f32.gmra.mrb[0].mxu0 %v1026
          %v3224 = vpop.f32.mrb[0].mxu0
          %v3225 = vadd.f32 0.0, %v3224
          %v3226 = vpop.f32.mrb[0].mxu0
          %3227 = vmatprep.mubr.f32.mxu0 0.0
          %3228 = vmatmul.mubr.f32.gmra.mrb[0].mxu0 %v1029
          %v3229 = vpop.f32.mrb[0].mxu0
          %v3230 = vadd.f32 0.0, %v3229
          %v3231 = vpop.f32.mrb[0].mxu0
          %3232 = vmatprep.mubr.f32.mxu0 0.0
          %3233 = vmatmul.mubr.f32.gmra.mrb[0].mxu0 %v1032
          %v3234 = vpop.f32.mrb[0].mxu0
          %v3235 = vadd.f32 0.0, %v3234
          %v3236 = vpop.f32.mrb[0].mxu0
          %3237 = vmatprep.mubr.f32.mxu0 0.0
          %3238 = vmatmul.mubr.f32.gmra.mrb[0].mxu0 %v1035
          %v3239 = vpop.f32.mrb[0].mxu0
          %v3240 = vadd.f32 0.0, %v3239
          %v3241 = vpop.f32.mrb[0].mxu0
          %3242 = vmatprep.mubr.f32.mxu0 0.0
          %3243 = vmatmul.mubr.f32.gmra.mrb[0].mxu0 %v1038
          %v3244 = vpop.f32.mrb[0].mxu0
          %v3245 = vadd.f32 0.0, %v3244
          %v3246 = vpop.f32.mrb[0].mxu0
          %3247 = vmatprep.mubr.f32.mxu0 0.0
          %3248 = vmatmul.mubr.f32.gmra.mrb[0].mxu0 %v1041
          %v3249 = vpop.f32.mrb[0].mxu0
          %v3250 = vadd.f32 0.0, %v3249
          %v3251 = vpop.f32.mrb[0].mxu0
          %3252 = vmatprep.mubr.f32.mxu0 0.0
          %3253 = vmatmul.mubr.f32.gmra.mrb[0].mxu0 %v1044
          %v3254 = vpop.f32.mrb[0].mxu0
          %v3255 = vadd.f32 0.0, %v3254
          %v3256 = vpop.f32.mrb[0].mxu0
          %3257 = vmatprep.mubr.f32.mxu0 0.0
          %3258 = vmatmul.mubr.f32.gmra.mrb[0].mxu0 %v1047
          %v3259 = vpop.f32.mrb[0].mxu0
          %v3260 = vadd.f32 0.0, %v3259
          %v3261 = vpop.f32.mrb[0].mxu0
          %3262 = vmatprep.mubr.f32.mxu0 0.0
          %3263 = vmatmul.mubr.f32.gmra.mrb[0].mxu0 %v1050
          %v3264 = vpop.f32.mrb[0].mxu0
          %v3265 = vadd.f32 0.0, %v3264
          %v3266 = vpop.f32.mrb[0].mxu0
          %3267 = vmatprep.mubr.f32.mxu0 0.0
          %3268 = vmatmul.mubr.f32.gmra.mrb[0].mxu0 %v1053
          %v3269 = vpop.f32.mrb[0].mxu0
          %v3270 = vadd.f32 0.0, %v3269
          %v3271 = vpop.f32.mrb[0].mxu0
          %3272 = vmatprep.mubr.f32.mxu0 0.0
          %3273 = vmatmul.mubr.f32.gmra.mrb[0].mxu0 %v1056
          %v3274 = vpop.f32.mrb[0].mxu0
          %v3275 = vadd.f32 0.0, %v3274
          %v3276 = vpop.f32.mrb[0].mxu0
          %3277 = vmatprep.mubr.f32.mxu0 0.0
          %3278 = vmatmul.mubr.f32.gmra.mrb[0].mxu0 %v1059
          %v3279 = vpop.f32.mrb[0].mxu0
          %v3280 = vadd.f32 0.0, %v3279
          %v3281 = vpop.f32.mrb[0].mxu0
          %3282 = vmatprep.mubr.f32.mxu0 0.0
          %3283 = vmatmul.mubr.f32.gmra.mrb[0].mxu0 %v1062
          %v3284 = vpop.f32.mrb[0].mxu0
          %v3285 = vadd.f32 0.0, %v3284
          %v3286 = vpop.f32.mrb[0].mxu0
          %3287 = vmatprep.mubr.f32.mxu0 0.0
          %3288 = vmatmul.mubr.f32.gmra.mrb[0].mxu0 %v1065
          %v3289 = vpop.f32.mrb[0].mxu0
          %v3290 = vadd.f32 0.0, %v3289
          %v3291 = vpop.f32.mrb[0].mxu0
          %3292 = vmatprep.mubr.f32.mxu0 0.0
          %3293 = vmatmul.mubr.f32.gmra.mrb[0].mxu0 %v1068
          %v3294 = vpop.f32.mrb[0].mxu0
          %v3295 = vadd.f32 0.0, %v3294
          %v3296 = vpop.f32.mrb[0].mxu0
          %3297 = vdwg.mxu0
          %v3298 = vtanh.pop %v3185
          %v3299 = vtanh.pop %v3190
          %v3300 = vtanh.pop %v3195
          %v3301 = vtanh.pop %v3200
          %v3302 = vtanh.pop %v3205
          %v3303 = vtanh.pop %v3210
          %v3304 = vtanh.pop %v3215
          %v3305 = vtanh.pop %v3220
          %v3306 = vtanh.pop %v3225
          %v3307 = vtanh.pop %v3230
          %v3308 = vtanh.pop %v3235
          %v3309 = vtanh.pop %v3240
          %v3310 = vtanh.pop %v3245
          %v3311 = vtanh.pop %v3250
          %v3312 = vtanh.pop %v3255
          %v3313 = vtanh.pop %v3260
          %v3314 = vtanh.pop %v3265
          %v3315 = vtanh.pop %v3270
          %v3316 = vtanh.pop %v3275
          %v3317 = vtanh.pop %v3280
          %v3318 = vmul.f32 %v3298, 0.5
          %v3319 = vmul.f32 %v3299, 0.5
          %v3320 = vmul.f32 %v3300, 0.5
          %v3321 = vmul.f32 %v3301, 0.5
          %v3322 = vmul.f32 %v3302, 0.5
          %v3323 = vadd.f32 %v3318, 0.5
          %v3324 = vadd.f32 %v3319, 0.5
          %v3325 = vadd.f32 %v3320, 0.5
          %v3326 = vadd.f32 %v3321, 0.5
          %v3327 = vadd.f32 %v3322, 0.5
          %v3328 = vmul.f32 %v3303, 0.5
          %v3329 = vmul.f32 %v3304, 0.5
          %v3330 = vmul.f32 %v3305, 0.5
          %v3331 = vmul.f32 %v3306, 0.5
          %v3332 = vmul.f32 %v3307, 0.5
          %v3333 = vadd.f32 %v3328, 0.5
          %v3334 = vadd.f32 %v3329, 0.5
          %v3335 = vadd.f32 %v3330, 0.5
          %v3336 = vadd.f32 %v3331, 0.5
          %v3337 = vadd.f32 %v3332, 0.5
          %v3338 = vmul.f32 %v3313, 0.5
          %v3339 = vmul.f32 %v3314, 0.5
          %v3340 = vmul.f32 %v3315, 0.5
          %v3341 = vmul.f32 %v3316, 0.5
          %v3342 = vmul.f32 %v3317, 0.5
          %v3343 = vadd.f32 %v3338, 0.5
          %v3344 = vadd.f32 %v3339, 0.5
          %v3345 = vadd.f32 %v3340, 0.5
          %v3346 = vadd.f32 %v3341, 0.5
          %v3347 = vadd.f32 %v3342, 0.5
          %v3348 = vmul.f32 %v3333, %v3017
          %v3349 = vmul.f32 %v3334, %v3018
          %v3350 = vmul.f32 %v3335, %v3019
          %v3351 = vmul.f32 %v3336, %v3020
          %v3352 = vmul.f32 %v3337, %v3021
          %v3353 = vmul.f32 %v3323, %v3308
          %v3354 = vmul.f32 %v3324, %v3309
          %v3355 = vmul.f32 %v3325, %v3310
          %v3356 = vmul.f32 %v3326, %v3311
          %v3357 = vmul.f32 %v3327, %v3312
          %v3358 = vadd.f32 %v3348, %v3353
          %v3359 = vadd.f32 %v3349, %v3354
          %v3360 = vadd.f32 %v3350, %v3355
          %v3361 = vadd.f32 %v3351, %v3356
          %v3362 = vadd.f32 %v3352, %v3357
          %v3363 = vtanh.pop %v3358
          %v3364 = vtanh.pop %v3359
          %v3365 = vtanh.pop %v3360
          %v3366 = vtanh.pop %v3361
          %v3367 = vtanh.pop %v3362
          %v3368 = vmul.f32 %v3343, %v3363
          %v3369 = vmul.f32 %v3344, %v3364
          %v3370 = vmul.f32 %v3345, %v3365
          %v3371 = vmul.f32 %v3346, %v3366
          %v3372 = vmul.f32 %v3347, %v3367
          %v3373 = vmul.f32 %v905, %v3368
          %v3374 = vmul.f32 %v910, %v3369
          %v3375 = vmul.f32 %v915, %v3370
          %v3376 = vmul.f32 %v920, %v3371
          %v3377 = vmul.f32 %v925, %v3372
          %v3378 = vadd.f32 %v3373, %v3374
          %v3379 = vadd.f32 %v3378, %v3375
          %v3380 = vadd.f32 %v3379, %v3376
          %v3381 = vadd.f32 %v3380, %v3377
          %v3382 = vrot.slane %v3381, 4
          %v3383 = vadd.f32 %v3381, %v3382
          %v3384 = vrot.slane %v3383, 2
          %v3385 = vadd.f32 %v3383, %v3384
          %v3386 = vrot.slane %v3385, 1
          %v3387 = vadd.f32 %v3385, %v3386
          %v3388 = vadd.f32 %v3387, %v936
          %v3389 = vadd.f32 %v3388, %v3115
          %v3390 = vmul.f32 %v837, %v3389
          %v3392 = vrot.slane %v3048, 7
          %v3394 = vmul.f32 %v837, %v3392
          %v3396 = vrot.slane %v3394, 1
          %v3398 = vadd.f32 %v3390, %v3396
          %v3399 = vrot.slane %v2707, 6
          %v3401 = vmul.f32 %v837, %v3399
          %v3403 = vrot.slane %v3401, 2
          %v3405 = vadd.f32 %v3398, %v3403
          %v3407 = vrot.slane %v3079, 5
          %v3409 = vmul.f32 %v837, %v3407
          %v3411 = vrot.slane %v3409, 3
          %v3413 = vsub.f32 %v3405, %v3411
          %v3414 = vrot.slane %v2738, 4
          %v3416 = vmul.f32 %v837, %v3414
          %v3418 = vrot.slane %v3416, 4
          %v3420 = vsub.f32 %v3413, %v3418
          %v3421 = vlaneseq
          %v3422 = vshrl.u32 %v3421, 7
          %v3423 = vsub.s32 0, %v3422
          %v3424 = vrot.slane %v3420, %v3423
          %v3425 = vmul.f32 %v867, %v3424
          %v3426 = vmul.f32 %v872, %v3424
          %v3427 = vmul.f32 %v877, %v3424
          %v3428 = vadd.f32 %v3425, %v885
          %v3429 = vadd.f32 %v3426, %v890
          %v3430 = vadd.f32 %v3427, %v895
          %v3431 = vadd.f32 %v3428, %v3285
          %v3432 = vadd.f32 %v3429, %v3290
          %v3433 = vtanh.pop %v3431
          %v3434 = vtanh.pop %v3432
          %v3435 = vmul.f32 %v3433, 0.5
          %v3436 = vmul.f32 %v3434, 0.5
          %v3437 = vadd.f32 %v3435, 0.5
          %v3438 = vadd.f32 %v3436, 0.5
          %v3439 = vmul.f32 %v3437, %v3295
          %v3440 = vadd.f32 %v3430, %v3439
          %v3441 = vtanh.pop %v3440
          %v3442 = vsub.f32 %v3103, %v3441
          %v3443 = vmul.f32 %v3438, %v3442
          %v3444 = vadd.f32 %v3441, %v3443
          %v3445 = vmul.f32 %v941, %v3444
          %v3446 = vrot.slane %v3445, 4
          %v3447 = vadd.f32 %v3445, %v3446
          %v3448 = vrot.slane %v3447, 2
          %v3449 = vadd.f32 %v3447, %v3448
          %v3450 = vrot.slane %v3449, 1
          %v3451 = vadd.f32 %v3449, %v3450
          %v3452 = vadd.f32 %v3451, %v952
          %v3453 = vadd.f32 %v3452, %v3420
          %s3454 = sadd.s32 %s993, 7
          %s3455 = scalar_lea.vmem %s541, %s3454 [#allocation9]
          %v3456 = vld [vmem:[%s3455] sm:$0x1]
          %v3457 = vsel %vm996, %v3456, 1.0
          %v3458 = vsel %vm998, %v3457, 0.0
          %3459 = vmatprep.subr.mxu0 0.0
          %3460 = vmatpush1.msra.mxu0 %v3368
          %3461 = vmatprep.subr.mxu0 0.0
          %3462 = vmatpush1.msra.mxu0 %v3369
          %3463 = vmatprep.subr.mxu0 0.0
          %3464 = vmatpush1.msra.mxu0 %v3370
          %3465 = vmatprep.subr.mxu0 0.0
          %3466 = vmatpush1.msra.mxu0 %v3371
          %3467 = vmatprep.subr.mxu0 0.0
          %3468 = vmatpush1.msra.mxu0 %v3372
          %3469 = vmatprep.subr.mxu0 0.0
          %3470 = vmatpush1.msra.mxu0 %v3444
          %3471 = vmatprep.subr.mxu0 0.0
          %3472 = vmatpush1.msra.mxu0 %v3458
          %3473 = vmatprep.subr.mxu0 0.0
          %3474 = vmatpush1.msra.mxu0 0.0
          %3475 = vmatprep.subr.mxu0 0.0
          %3476 = vmatpush1.msra.mxu0 0.0
          %3477 = vmatprep.subr.mxu0 0.0
          %3478 = vmatpush1.msra.mxu0 0.0
          %3479 = vmatprep.subr.mxu0 0.0
          %3480 = vmatpush1.msra.mxu0 0.0
          %3481 = vmatprep.subr.mxu0 0.0
          %3482 = vmatpush1.msra.mxu0 0.0
          %3483 = vmatprep.subr.mxu0 0.0
          %3484 = vmatpush1.msra.mxu0 0.0
          %3485 = vmatprep.subr.mxu0 0.0
          %3486 = vmatpush1.msra.mxu0 0.0
          %3487 = vmatprep.subr.mxu0 0.0
          %3488 = vmatpush1.msra.mxu0 0.0
          %3489 = vmatprep.subr.mxu0 0.0
          %3490 = vmatpush1.msra.mxu0 0.0
          %3491 = vmatprep.subr.mxu0 0.0
          %3492 = vmatpush1.msra.mxu0 0.0
          %3493 = vmatprep.subr.mxu0 0.0
          %3494 = vmatpush1.msra.mxu0 0.0
          %3495 = vmatprep.subr.mxu0 0.0
          %3496 = vmatpush1.msra.mxu0 0.0
          %3497 = vmatprep.subr.mxu0 0.0
          %3498 = vmatpush1.msra.mxu0 0.0
          %3499 = vmatprep.subr.mxu0 0.0
          %3500 = vmatpush1.msra.mxu0 0.0
          %3501 = vmatprep.subr.mxu0 0.0
          %3502 = vmatpush1.msra.mxu0 0.0
          %3503 = vmatprep.subr.mxu0 0.0
          %3504 = vmatpush1.msra.mxu0 0.0
          %3505 = vmatprep.subr.mxu0 0.0
          %3506 = vmatpush1.msra.mxu0 0.0
          %3507 = vmatprep.subr.mxu0 0.0
          %3508 = vmatpush1.msra.mxu0 0.0
          %3509 = vmatprep.subr.mxu0 0.0
          %3510 = vmatpush1.msra.mxu0 0.0
          %3511 = vmatprep.subr.mxu0 0.0
          %3512 = vmatpush1.msra.mxu0 0.0
          %3513 = vmatprep.subr.mxu0 0.0
          %3514 = vmatpush1.msra.mxu0 0.0
          %3515 = vmatprep.subr.mxu0 0.0
          %3516 = vmatpush1.msra.mxu0 0.0
          %3517 = vmatprep.subr.mxu0 0.0
          %3518 = vmatpush1.msra.mxu0 0.0
          %3519 = vmatprep.subr.mxu0 0.0
          %3520 = vmatpush1.msra.mxu0 0.0
          %3521 = vmatprep.subr.mxu0 0.0
          %3522 = vmatpush1.msra.mxu0 0.0
          %3523 = vmatprep.mubr.f32.mxu0 0.0
          %3524 = vmatmul.mubr.f32.gmra.mrb[0].mxu0 %v1002
          %v3525 = vpop.f32.mrb[0].mxu0
          %v3526 = vadd.f32 0.0, %v3525
          %v3527 = vpop.f32.mrb[0].mxu0
          %3528 = vmatprep.mubr.f32.mxu0 0.0
          %3529 = vmatmul.mubr.f32.gmra.mrb[0].mxu0 %v1005
          %v3530 = vpop.f32.mrb[0].mxu0
          %v3531 = vadd.f32 0.0, %v3530
          %v3532 = vpop.f32.mrb[0].mxu0
          %3533 = vmatprep.mubr.f32.mxu0 0.0
          %3534 = vmatmul.mubr.f32.gmra.mrb[0].mxu0 %v1008
          %v3535 = vpop.f32.mrb[0].mxu0
          %v3536 = vadd.f32 0.0, %v3535
          %v3537 = vpop.f32.mrb[0].mxu0
          %3538 = vmatprep.mubr.f32.mxu0 0.0
          %3539 = vmatmul.mubr.f32.gmra.mrb[0].mxu0 %v1011
          %v3540 = vpop.f32.mrb[0].mxu0
          %v3541 = vadd.f32 0.0, %v3540
          %v3542 = vpop.f32.mrb[0].mxu0
          %3543 = vmatprep.mubr.f32.mxu0 0.0
          %3544 = vmatmul.mubr.f32.gmra.mrb[0].mxu0 %v1014
          %v3545 = vpop.f32.mrb[0].mxu0
          %v3546 = vadd.f32 0.0, %v3545
          %v3547 = vpop.f32.mrb[0].mxu0
          %3548 = vmatprep.mubr.f32.mxu0 0.0
          %3549 = vmatmul.mubr.f32.gmra.mrb[0].mxu0 %v1017
          %v3550 = vpop.f32.mrb[0].mxu0
          %v3551 = vadd.f32 0.0, %v3550
          %v3552 = vpop.f32.mrb[0].mxu0
          %3553 = vmatprep.mubr.f32.mxu0 0.0
          %3554 = vmatmul.mubr.f32.gmra.mrb[0].mxu0 %v1020
          %v3555 = vpop.f32.mrb[0].mxu0
          %v3556 = vadd.f32 0.0, %v3555
          %v3557 = vpop.f32.mrb[0].mxu0
          %3558 = vmatprep.mubr.f32.mxu0 0.0
          %3559 = vmatmul.mubr.f32.gmra.mrb[0].mxu0 %v1023
          %v3560 = vpop.f32.mrb[0].mxu0
          %v3561 = vadd.f32 0.0, %v3560
          %v3562 = vpop.f32.mrb[0].mxu0
          %3563 = vmatprep.mubr.f32.mxu0 0.0
          %3564 = vmatmul.mubr.f32.gmra.mrb[0].mxu0 %v1026
          %v3565 = vpop.f32.mrb[0].mxu0
          %v3566 = vadd.f32 0.0, %v3565
          %v3567 = vpop.f32.mrb[0].mxu0
          %3568 = vmatprep.mubr.f32.mxu0 0.0
          %3569 = vmatmul.mubr.f32.gmra.mrb[0].mxu0 %v1029
          %v3570 = vpop.f32.mrb[0].mxu0
          %v3571 = vadd.f32 0.0, %v3570
          %v3572 = vpop.f32.mrb[0].mxu0
          %3573 = vmatprep.mubr.f32.mxu0 0.0
          %3574 = vmatmul.mubr.f32.gmra.mrb[0].mxu0 %v1032
          %v3575 = vpop.f32.mrb[0].mxu0
          %v3576 = vadd.f32 0.0, %v3575
          %v3577 = vpop.f32.mrb[0].mxu0
          %3578 = vmatprep.mubr.f32.mxu0 0.0
          %3579 = vmatmul.mubr.f32.gmra.mrb[0].mxu0 %v1035
          %v3580 = vpop.f32.mrb[0].mxu0
          %v3581 = vadd.f32 0.0, %v3580
          %v3582 = vpop.f32.mrb[0].mxu0
          %3583 = vmatprep.mubr.f32.mxu0 0.0
          %3584 = vmatmul.mubr.f32.gmra.mrb[0].mxu0 %v1038
          %v3585 = vpop.f32.mrb[0].mxu0
          %v3586 = vadd.f32 0.0, %v3585
          %v3587 = vpop.f32.mrb[0].mxu0
          %3588 = vmatprep.mubr.f32.mxu0 0.0
          %3589 = vmatmul.mubr.f32.gmra.mrb[0].mxu0 %v1041
          %v3590 = vpop.f32.mrb[0].mxu0
          %v3591 = vadd.f32 0.0, %v3590
          %v3592 = vpop.f32.mrb[0].mxu0
          %3593 = vmatprep.mubr.f32.mxu0 0.0
          %3594 = vmatmul.mubr.f32.gmra.mrb[0].mxu0 %v1044
          %v3595 = vpop.f32.mrb[0].mxu0
          %v3596 = vadd.f32 0.0, %v3595
          %v3597 = vpop.f32.mrb[0].mxu0
          %3598 = vmatprep.mubr.f32.mxu0 0.0
          %3599 = vmatmul.mubr.f32.gmra.mrb[0].mxu0 %v1047
          %v3600 = vpop.f32.mrb[0].mxu0
          %v3601 = vadd.f32 0.0, %v3600
          %v3602 = vpop.f32.mrb[0].mxu0
          %3603 = vmatprep.mubr.f32.mxu0 0.0
          %3604 = vmatmul.mubr.f32.gmra.mrb[0].mxu0 %v1050
          %v3605 = vpop.f32.mrb[0].mxu0
          %v3606 = vadd.f32 0.0, %v3605
          %v3607 = vpop.f32.mrb[0].mxu0
          %3608 = vmatprep.mubr.f32.mxu0 0.0
          %3609 = vmatmul.mubr.f32.gmra.mrb[0].mxu0 %v1053
          %v3610 = vpop.f32.mrb[0].mxu0
          %v3611 = vadd.f32 0.0, %v3610
          %v3612 = vpop.f32.mrb[0].mxu0
          %3613 = vmatprep.mubr.f32.mxu0 0.0
          %3614 = vmatmul.mubr.f32.gmra.mrb[0].mxu0 %v1056
          %v3615 = vpop.f32.mrb[0].mxu0
          %v3616 = vadd.f32 0.0, %v3615
          %v3617 = vpop.f32.mrb[0].mxu0
          %3618 = vmatprep.mubr.f32.mxu0 0.0
          %3619 = vmatmul.mubr.f32.gmra.mrb[0].mxu0 %v1059
          %v3620 = vpop.f32.mrb[0].mxu0
          %v3621 = vadd.f32 0.0, %v3620
          %v3622 = vpop.f32.mrb[0].mxu0
          %3623 = vmatprep.mubr.f32.mxu0 0.0
          %3624 = vmatmul.mubr.f32.gmra.mrb[0].mxu0 %v1062
          %v3625 = vpop.f32.mrb[0].mxu0
          %v3626 = vadd.f32 0.0, %v3625
          %v3627 = vpop.f32.mrb[0].mxu0
          %3628 = vmatprep.mubr.f32.mxu0 0.0
          %3629 = vmatmul.mubr.f32.gmra.mrb[0].mxu0 %v1065
          %v3630 = vpop.f32.mrb[0].mxu0
          %v3631 = vadd.f32 0.0, %v3630
          %v3632 = vpop.f32.mrb[0].mxu0
          %3633 = vmatprep.mubr.f32.mxu0 0.0
          %3634 = vmatmul.mubr.f32.gmra.mrb[0].mxu0 %v1068
          %v3635 = vpop.f32.mrb[0].mxu0
          %v3636 = vadd.f32 0.0, %v3635
          %v3637 = vpop.f32.mrb[0].mxu0
          %3638 = vdwg.mxu0
          %v3639 = vtanh.pop %v3526
          %v3640 = vtanh.pop %v3531
          %v3641 = vtanh.pop %v3536
          %v3642 = vtanh.pop %v3541
          %v3643 = vtanh.pop %v3546
          %v3644 = vtanh.pop %v3551
          %v3645 = vtanh.pop %v3556
          %v3646 = vtanh.pop %v3561
          %v3647 = vtanh.pop %v3566
          %v3648 = vtanh.pop %v3571
          %v3649 = vtanh.pop %v3576
          %v3650 = vtanh.pop %v3581
          %v3651 = vtanh.pop %v3586
          %v3652 = vtanh.pop %v3591
          %v3653 = vtanh.pop %v3596
          %v3654 = vtanh.pop %v3601
          %v3655 = vtanh.pop %v3606
          %v3656 = vtanh.pop %v3611
          %v3657 = vtanh.pop %v3616
          %v3658 = vtanh.pop %v3621
          %v3659 = vmul.f32 %v3639, 0.5
          %v3660 = vmul.f32 %v3640, 0.5
          %v3661 = vmul.f32 %v3641, 0.5
          %v3662 = vmul.f32 %v3642, 0.5
          %v3663 = vmul.f32 %v3643, 0.5
          %v3664 = vadd.f32 %v3659, 0.5
          %v3665 = vadd.f32 %v3660, 0.5
          %v3666 = vadd.f32 %v3661, 0.5
          %v3667 = vadd.f32 %v3662, 0.5
          %v3668 = vadd.f32 %v3663, 0.5
          %v3669 = vmul.f32 %v3644, 0.5
          %v3670 = vmul.f32 %v3645, 0.5
          %v3671 = vmul.f32 %v3646, 0.5
          %v3672 = vmul.f32 %v3647, 0.5
          %v3673 = vmul.f32 %v3648, 0.5
          %v3674 = vadd.f32 %v3669, 0.5
          %v3675 = vadd.f32 %v3670, 0.5
          %v3676 = vadd.f32 %v3671, 0.5
          %v3677 = vadd.f32 %v3672, 0.5
          %v3678 = vadd.f32 %v3673, 0.5
          %v3679 = vmul.f32 %v3654, 0.5
          %v3680 = vmul.f32 %v3655, 0.5
          %v3681 = vmul.f32 %v3656, 0.5
          %v3682 = vmul.f32 %v3657, 0.5
          %v3683 = vmul.f32 %v3658, 0.5
          %v3684 = vadd.f32 %v3679, 0.5
          %v3685 = vadd.f32 %v3680, 0.5
          %v3686 = vadd.f32 %v3681, 0.5
          %v3687 = vadd.f32 %v3682, 0.5
          %v3688 = vadd.f32 %v3683, 0.5
          %v3689 = vmul.f32 %v3674, %v3358
          %v3690 = vmul.f32 %v3675, %v3359
          %v3691 = vmul.f32 %v3676, %v3360
          %v3692 = vmul.f32 %v3677, %v3361
          %v3693 = vmul.f32 %v3678, %v3362
          %v3694 = vmul.f32 %v3664, %v3649
          %v3695 = vmul.f32 %v3665, %v3650
          %v3696 = vmul.f32 %v3666, %v3651
          %v3697 = vmul.f32 %v3667, %v3652
          %v3698 = vmul.f32 %v3668, %v3653
          %v3699 = vadd.f32 %v3689, %v3694
          %v3700 = vadd.f32 %v3690, %v3695
          %v3701 = vadd.f32 %v3691, %v3696
          %v3702 = vadd.f32 %v3692, %v3697
          %v3703 = vadd.f32 %v3693, %v3698
          %v3704 = vtanh.pop %v3699
          %v3705 = vtanh.pop %v3700
          %v3706 = vtanh.pop %v3701
          %v3707 = vtanh.pop %v3702
          %v3708 = vtanh.pop %v3703
          %v3709 = vmul.f32 %v3684, %v3704
          %v3710 = vmul.f32 %v3685, %v3705
          %v3711 = vmul.f32 %v3686, %v3706
          %v3712 = vmul.f32 %v3687, %v3707
          %v3713 = vmul.f32 %v3688, %v3708
          %v3714 = vmul.f32 %v905, %v3709
          %v3715 = vmul.f32 %v910, %v3710
          %v3716 = vmul.f32 %v915, %v3711
          %v3717 = vmul.f32 %v920, %v3712
          %v3718 = vmul.f32 %v925, %v3713
          %v3719 = vadd.f32 %v3714, %v3715
          %v3720 = vadd.f32 %v3719, %v3716
          %v3721 = vadd.f32 %v3720, %v3717
          %v3722 = vadd.f32 %v3721, %v3718
          %v3723 = vrot.slane %v3722, 4
          %v3724 = vadd.f32 %v3722, %v3723
          %v3725 = vrot.slane %v3724, 2
          %v3726 = vadd.f32 %v3724, %v3725
          %v3727 = vrot.slane %v3726, 1
          %v3728 = vadd.f32 %v3726, %v3727
          %v3729 = vadd.f32 %v3728, %v936
          %v3730 = vadd.f32 %v3729, %v3456
          %v3731 = vmul.f32 %v837, %v3730
          %v3733 = vrot.slane %v3389, 7
          %v3735 = vmul.f32 %v837, %v3733
          %v3737 = vrot.slane %v3735, 1
          %v3739 = vadd.f32 %v3731, %v3737
          %v3740 = vrot.slane %v3048, 6
          %v3742 = vmul.f32 %v837, %v3740
          %v3744 = vrot.slane %v3742, 2
          %v3746 = vadd.f32 %v3739, %v3744
          %v3748 = vrot.slane %v3420, 5
          %v3750 = vmul.f32 %v837, %v3748
          %v3752 = vrot.slane %v3750, 3
          %v3754 = vsub.f32 %v3746, %v3752
          %v3755 = vrot.slane %v3079, 4
          %v3757 = vmul.f32 %v837, %v3755
          %v3759 = vrot.slane %v3757, 4
          %v3761 = vsub.f32 %v3754, %v3759
          %v3762 = vlaneseq
          %v3763 = vshrl.u32 %v3762, 7
          %v3764 = vsub.s32 0, %v3763
          %v3765 = vrot.slane %v3761, %v3764
          %v3766 = vmul.f32 %v867, %v3765
          %v3767 = vmul.f32 %v872, %v3765
          %v3768 = vmul.f32 %v877, %v3765
          %v3769 = vadd.f32 %v3766, %v885
          %v3770 = vadd.f32 %v3767, %v890
          %v3771 = vadd.f32 %v3768, %v895
          %v3772 = vadd.f32 %v3769, %v3626
          %v3773 = vadd.f32 %v3770, %v3631
          %v3774 = vtanh.pop %v3772
          %v3775 = vtanh.pop %v3773
          %v3776 = vmul.f32 %v3774, 0.5
          %v3777 = vmul.f32 %v3775, 0.5
          %v3778 = vadd.f32 %v3776, 0.5
          %v3779 = vadd.f32 %v3777, 0.5
          %v3780 = vmul.f32 %v3778, %v3636
          %v3781 = vadd.f32 %v3771, %v3780
          %v3782 = vtanh.pop %v3781
          %v3783 = vsub.f32 %v3444, %v3782
          %v3784 = vmul.f32 %v3779, %v3783
          %v3785 = vadd.f32 %v3782, %v3784
          %v3786 = vmul.f32 %v941, %v3785
          %v3787 = vrot.slane %v3786, 4
          %v3788 = vadd.f32 %v3786, %v3787
          %v3789 = vrot.slane %v3788, 2
          %v3790 = vadd.f32 %v3788, %v3789
          %v3791 = vrot.slane %v3790, 1
          %v3792 = vadd.f32 %v3790, %v3791
          %v3793 = vadd.f32 %v3792, %v952
          %v3794 = vadd.f32 %v3793, %v3761
          %v3796 = vrot.slane %v1748, 7
          %v3799 = vrot.slane %v2089, 6
          %v3802 = vrot.slane %v2430, 5
          %v3805 = vrot.slane %v2771, 4
          %v3808 = vrot.slane %v3112, 3
          %v3811 = vrot.slane %v3453, 2
          %v3814 = vrot.slane %v3794, 1
          %v3816 = vsel %vm996, %v1407, %v3796
          %v3817 = vsel %vm998, %v3816, %v3799
          %vm3818 = vcmask 1042432
          %v3819 = vsel %vm3818, %v3817, %v3802
          %vm3820 = vcmask 1043456
          %v3821 = vsel %vm3820, %v3819, %v3805
          %vm3822 = vcmask 1044480
          %v3823 = vsel %vm3822, %v3821, %v3808
          %vm3824 = vcmask 1045504
          %v3825 = vsel %vm3824, %v3823, %v3811
          %vm3826 = vcmask 1046528
          %v3827 = vsel %vm3826, %v3825, %v3814
          %s3828 = scalar_lea.vmem %s623, %s993 [#allocation27]
          %3829 = vst [vmem:[%s3828] sm:$0xff] %v3827
        $region125: #{amp_forward.1} parent=71 // loop_footer
          %s977 = sadd.s32 1, %s973
        $region126: #{amp_forward.1} parent=71 // loop_footer_branch
          %972 = sbr.rel target = $region122
        $region127: #{amp_forward.1} parent=71 // loop_exit
          _
        %3830 = vst [vmem:[#allocation3] sm:$0xff] %v978
        %3831 = vst [vmem:[#allocation3 + $0x8] sm:$0xff] %v979
        %3832 = vst [vmem:[#allocation3 + $0x10] sm:$0xff] %v980
        %3833 = vst [vmem:[#allocation3 + $0x18] sm:$0xff] %v981
        %3834 = vst [vmem:[#allocation3 + $0x20] sm:$0xff] %v982
        %3835 = vst [vmem:[#allocation4] sm:$0xff] %v983
        %3836 = vst [vmem:[#allocation4 + $0x8] sm:$0xff] %v984
        %3837 = vst [vmem:[#allocation4 + $0x10] sm:$0xff] %v985
        %3838 = vst [vmem:[#allocation4 + $0x18] sm:$0xff] %v986
        %3839 = vst [vmem:[#allocation4 + $0x20] sm:$0xff] %v987
        %3840 = vst [vmem:[#allocation5] sm:$0xff] %v988
        %3841 = vst [vmem:[#allocation6] sm:$0x1] %v989
        %3842 = vst [vmem:[#allocation6 + $0x1] sm:$0x1] %v990
        %3843 = vst [vmem:[#allocation6 + $0x2] sm:$0x1] %v991
        %3844 = vst [vmem:[#allocation6 + $0x3] sm:$0x1] %v992
        %s3845 = sand.u32 %s346, 1
        %s3846 = scalar_lea.sflag [#allocation11], %s3845
        %s3847 = sand.u32 %s346, 1
        %s3848 = smul.addr %s3847, 32
        %s3849 = scalar_lea.vmem [#allocation27], %s3848
        // Predicated region
        $region128: #{amp_forward.1} parent=71 // pred_check
          %p3850 = pneg %p356
        $region129: #{amp_forward.1} parent=71 // pred_check_branch
          %3852 = sbr.rel (%p3850) target = $region131
        $region130: #{amp_forward.1} parent=71 // pred_region
          %s3853 = smul.u32 4, %s44
          %s3855 = ssub.s32 512, 512
          %3856 = vsyncadd %s3846, %s3855
          %s3857 = sadd.s32 %s43, %s3853
          %s3858 = smul.addr %s3857, 128
          %s3859 = scalar_lea.hbm %s13, %s3858
          %s3860 = sshll.u32 %s3849, 4
          %s3861 = int_to_ptr.vmem [resolvable:$true] %s3860
          %3866 = dma.vmem_to_hbm [thread:$0]  %s3861, 512, %s3859, %s3846, 128, 128, 8
        $region131: #{amp_forward.1} parent=71 // pred_fallthru
          _
      $region72: #{amp_forward.1} parent=5 // pred_fallthru
        _
      %p3867 = scmp.le.s32.totalorder 2, %s34
      // Predicated region
      $region132: #{amp_forward.1} parent=5 // pred_check
        %p3868 = pneg %p3867
      $region133: #{amp_forward.1} parent=5 // pred_check_branch
        %3870 = sbr.rel (%p3868) target = $region135
      $region134: #{amp_forward.1} parent=5 // pred_region
        %s3871 = ssub.s32 %s34, 2
        // Predicated region
        $region136: #{amp_forward.1} parent=134 // pred_check
          %p3872 = pneg %p362
        $region137: #{amp_forward.1} parent=134 // pred_check_branch
          %3874 = sbr.rel (%p3872) target = $region139
        $region138: #{amp_forward.1} parent=134 // pred_region
          %s3875 = sand.u32 %s347, 1
          %s3876 = scalar_lea.sflag [#allocation11], %s3875
          %s3877 = sand.u32 %s347, 1
          %s3878 = smul.addr %s3877, 32
          %s3879 = scalar_lea.vmem [#allocation27], %s3878
          %3880 = dma.done %s3876, 512
        $region139: #{amp_forward.1} parent=134 // pred_fallthru
          _
      $region135: #{amp_forward.1} parent=5 // pred_fallthru
        _
    $region6: #{amp_forward.1} parent=1 // loop_footer
      %s38 = sadd.s32 1, %s34
    $region7: #{amp_forward.1} parent=1 // loop_footer_branch
      %33 = sbr.rel target = $region3
    $region8: #{amp_forward.1} parent=1 // loop_exit
      _
    %3881 = vsyncpa [#allocation10], 1
    %s3882 = scalar_lea.sflag [#allocation10], 1
    %3883 = vsyncpa %s3882, 1
    %3884 = vsyncpa [#allocation13], 1
    %3885 = vsyncpa [#allocation16], 1
    %3886 = vsyncpa [#allocation19], 1
    %3887 = vsyncpa [#allocation22], 1
    %3888 = vsyncpa [#allocation25], 1
    %3889 = vsyncpa [#allocation11], 1
    %s3890 = scalar_lea.sflag [#allocation11], 1
    %3891 = vsyncpa %s3890, 1

</llo_original>
